<compile_context>
chip_gen: v7x
topology: tpu7x:2x2x1
jax: 0.10.0
libtpu: 0.0.40
codegen_flags: <defaults>
</compile_context>

<pallas_src>
import functools
import math

import jax
import jax.numpy as jnp
from jax.experimental import pallas as pl
from jax.experimental.pallas import tpu as pltpu

# Right-sized VMEM request: working sets are a few MiB at realistic shapes; keep well
# below v7x's 64 MiB physical per-TC VMEM so Mosaic scratch / double buffers fit.
_VMEM_LIMIT = 32 * 1024 * 1024


def _layer_norm(x, g, b, eps=1e-5):
    mu = jnp.mean(x, axis=-1, keepdims=True)
    var = jnp.mean(jnp.square(x - mu), axis=-1, keepdims=True)
    return (x - mu) * jax.lax.rsqrt(var + eps) * g + b


def _erf(x):
    # Abramowitz & Stegun 7.1.26 polynomial (|err| <= 1.5e-7): matches the exact
    # erf-based F.gelu to well below bf16 noise using only exp/div/select.
    a1, a2, a3, a4, a5 = 0.254829592, -0.284496736, 1.421413741, -1.453152027, 1.061405429
    p = 0.3275911
    ax = jnp.abs(x)
    t = 1.0 / (1.0 + p * ax)
    poly = ((((a5 * t + a4) * t + a3) * t + a2) * t + a1) * t
    y = 1.0 - poly * jnp.exp(-ax * ax)
    return jnp.where(x >= 0, y, -y)


def _gelu_exact(x):
    return 0.5 * x * (1.0 + _erf(x * 0.7071067811865476))


# --------------------------- kernel 1: self-attn + Q proj ---------------------------
def _self_attn_q_kernel(
    q_ref,
    n1g_ref, n1b_ref,
    wq_sa_ref, wk_sa_ref, wv_sa_ref, bq_sa_ref, bk_sa_ref, bv_sa_ref,
    saw_ref, sab_ref,
    n2g_ref, n2b_ref, wqc_ref, bqc_ref,
    x1_ref, qc_ref,
    *, nhead,
):
    bf16, f32 = jnp.bfloat16, jnp.float32
    hd = wq_sa_ref.shape[2]
    x = q_ref[...].astype(f32)                                   # (L, E) residual stream
    qn = _layer_norm(x, n1g_ref[...], n1b_ref[...]).astype(bf16)
    scale = 1.0 / math.sqrt(hd)

    # Per-head 2-D matmuls against head-major weight slices (sliced in the wrapper):
    # no in-kernel activation slicing at hd-lane boundaries, no jnp.stack relayouts.
    sa = sab_ref[...].astype(f32)                                # (1, E) out-proj bias
    for h in range(nhead):
        qh = (jnp.dot(qn, wq_sa_ref[h], preferred_element_type=f32) + bq_sa_ref[h]) * scale
        kh = jnp.dot(qn, wk_sa_ref[h], preferred_element_type=f32) + bk_sa_ref[h]
        vh = jnp.dot(qn, wv_sa_ref[h], preferred_element_type=f32) + bv_sa_ref[h]
        att = jax.lax.dot_general(qh.astype(bf16), kh.astype(bf16),
                                  (((1,), (1,)), ((), ())),
                                  preferred_element_type=f32)    # (L, L)
        att = att - jnp.max(att, axis=-1, keepdims=True)
        p = jnp.exp(att)
        p = p / jnp.sum(p, axis=-1, keepdims=True)
        oh = jnp.dot(p.astype(bf16), vh.astype(bf16), preferred_element_type=f32)
        sa = sa + jnp.dot(oh.astype(bf16), saw_ref[h], preferred_element_type=f32)

    x1 = x + sa                                                  # dropout == identity
    x1_ref[0] = x1
    qn2 = _layer_norm(x1, n2g_ref[...], n2b_ref[...])
    # wqc/bqc already carry the 1/sqrt(d_model) cross-attention score scale.
    qc = jnp.dot(qn2.astype(bf16), wqc_ref[...], preferred_element_type=f32) + bqc_ref[...]
    qc_ref[0] = qc.astype(bf16)


# ----------------------- kernel 2: masked cross-attn (flash) ------------------------
def _cross_attn_kernel(qc_ref, mem_ref, pm_ref, wk_ref, bk_ref, wv_ref, bv_ref,
                       ao_ref, m_scr, l_scr, acc_scr):
    bf16, f32 = jnp.bfloat16, jnp.float32
    s_idx = pl.program_id(1)

    @pl.when(s_idx == 0)
    def _init():
        m_scr[...] = jnp.full(m_scr.shape, -jnp.inf, dtype=f32)
        l_scr[...] = jnp.zeros(l_scr.shape, dtype=f32)
        acc_scr[...] = jnp.zeros(acc_scr.shape, dtype=f32)

    mem = mem_ref[...].astype(bf16)                              # (TS, E) cast in-kernel
    # K / V emitted directly in bf16 (MXU still accumulates f32 internally).
    k = jnp.dot(mem, wk_ref[...], preferred_element_type=bf16) + bk_ref[...]
    v = jnp.dot(mem, wv_ref[...], preferred_element_type=bf16) + bv_ref[...]
    # qc is pre-scaled by 1/sqrt(d_model).
    # TODO(synk): per perf review, inspect lower_as_mlir for a vxpose on this K tile
    # (both operands contract on dim 1); restructure the K path if one is emitted.
    scores = jax.lax.dot_general(qc_ref[0], k, (((1,), (1,)), ((), ())),
                                 preferred_element_type=f32)     # (L, TS)
    scores = scores + jnp.log(pm_ref[0].astype(f32) + 1e-6)      # mask bias, log in-kernel

    m_prev = m_scr[...]
    m_new = jnp.maximum(m_prev, jnp.max(scores, axis=-1, keepdims=True))
    alpha = jnp.exp(m_prev - m_new)
    p = jnp.exp(scores - m_new)
    l_scr[...] = alpha * l_scr[...] + jnp.sum(p, axis=-1, keepdims=True)
    acc_scr[...] = alpha * acc_scr[...] + jnp.dot(p.astype(bf16), v,
                                                  preferred_element_type=f32)
    m_scr[...] = m_new

    @pl.when(s_idx == pl.num_programs(1) - 1)
    def _finalize():
        ao_ref[0] = acc_scr[...] / l_scr[...]                    # exact divide, once per batch


# -------------------------- kernel 3: out-proj + FFN (B*L rows) ---------------------
def _ffn_kernel(x1_ref, ao_ref, wo_ref, bo_ref, n3g_ref, n3b_ref,
                w1_ref, b1_ref, w2_ref, b2_ref, qo_ref, qbf_ref):
    bf16, f32 = jnp.bfloat16, jnp.float32
    x = x1_ref[...] + jnp.dot(ao_ref[...].astype(bf16), wo_ref[...],
                              preferred_element_type=f32) + bo_ref[...]
    qn3 = _layer_norm(x, n3g_ref[...], n3b_ref[...])
    h = jnp.dot(qn3.astype(bf16), w1_ref[...], preferred_element_type=f32) + b1_ref[...]
    h = _gelu_exact(h)                                           # exact erf gelu (F.gelu default)
    x = x + jnp.dot(h.astype(bf16), w2_ref[...], preferred_element_type=f32) + b2_ref[...]
    qo_ref[...] = x
    qbf_ref[...] = x.astype(bf16)                                # bf16 copy for the mask head


# -------------------------------- kernel 4: mask head -------------------------------
def _mask_kernel(q_ref, wm_ref, bm_ref, mo_ref):
    logits = jnp.dot(q_ref[...], wm_ref[...], preferred_element_type=jnp.float32) + bm_ref[...]
    mo_ref[...] = jax.nn.sigmoid(logits).astype(mo_ref.dtype)


def _pick_tile(total, candidates, fits=None):
    for c in candidates:
        if total % c == 0 and (fits is None or fits(c)):
            return c
    # TODO(synk): when `total` has no 128-multiple divisor the fallback uses one full
    # tile (lane dim not 128-aligned); pad HW upstream for such shapes.
    return total


def masked_decoder_layer(query, memory, spatial_shape, prev_mask, params, nhead,
                         mask_dtype=jnp.float32):
    """query: (L, B, E); memory: (S, B, E); prev_mask: (B, L, H, W).

    mask_dtype=jnp.bfloat16 halves the dominant (B, L, HW) HBM write (v5e win);
    default f32 for parity with the PyTorch reference.
    """
    L, B, E = query.shape
    S = memory.shape[0]
    H, W = spatial_shape
    HW = H * W
    assert S == HW, "memory length must equal H*W for the mask bias"
    assert E % nhead == 0
    assert E % 128 == 0, "d_model must be a multiple of 128 (TPU lane width)"
    hd = E // nhead
    BL = B * L

    f32, bf16 = jnp.float32, jnp.bfloat16

    (n1g, n1b, inw, inb, saw, sab, n2g, n2b,
     wq, bq, wk, bk, wv, bv, wo, bo,
     n3g, n3b, w1, b1, w2, b2, wm, bm) = params

    # Head-major split of the self-attention in/out projection weights (tiny, once).
    inw3 = inw.reshape(E, 3, nhead, hd)
    wq_sa = jnp.transpose(inw3[:, 0], (1, 0, 2)).astype(bf16)    # (nhead, E, hd)
    wk_sa = jnp.transpose(inw3[:, 1], (1, 0, 2)).astype(bf16)
    wv_sa = jnp.transpose(inw3[:, 2], (1, 0, 2)).astype(bf16)
    inb3 = inb.reshape(3, nhead, 1, hd).astype(f32)
    bq_sa, bk_sa, bv_sa = inb3[0], inb3[1], inb3[2]              # (nhead, 1, hd)
    saw3 = saw.reshape(nhead, hd, E).astype(bf16)                # (nhead, hd, E)

    # Fold the 1/sqrt(d_model) cross-attention score scale into linear_q.
    qscale = 1.0 / math.sqrt(E)
    wqc = (wq * qscale).astype(bf16)
    bqc = (bq * qscale).astype(f32)

    # Free (bitcast) reshapes -- no wrapper transpose / cast passes over big tensors.
    q2d = query.reshape(L, B * E)                                # (L, B*E)
    mem2d = memory.reshape(S, B * E)                             # original (S, B, E) layout
    pm_flat = prev_mask.reshape(B, L, HW)                        # log taken in-kernel

    # ------------------ call 1: self-attention + cross-attn Q projection ------------
    sa_params = (n1g.astype(f32), n1b.astype(f32),
                 wq_sa, wk_sa, wv_sa, bq_sa, bk_sa, bv_sa,
                 saw3, sab.astype(f32),
                 n2g.astype(f32), n2b.astype(f32), wqc, bqc)
    full1 = lambda a: pl.BlockSpec(a.shape, lambda b, _nd=a.ndim: (0,) * _nd)
    x1, qc = pl.pallas_call(
        functools.partial(_self_attn_q_kernel, nhead=nhead),
        grid=(B,),
        in_specs=[pl.BlockSpec((L, E), lambda b: (0, b))] + [full1(p) for p in sa_params],
        out_specs=[pl.BlockSpec((1, L, E), lambda b: (b, 0, 0)),
                   pl.BlockSpec((1, L, E), lambda b: (b, 0, 0))],
        out_shape=[jax.ShapeDtypeStruct((B, L, E), f32),
                   jax.ShapeDtypeStruct((B, L, E), bf16)],
        compiler_params=pltpu.CompilerParams(
            dimension_semantics=("parallel",), vmem_limit_bytes=_VMEM_LIMIT),
    )(q2d, *sa_params)

    # ------------------------ call 2: masked cross-attention ------------------------
    ts = _pick_tile(HW, (2048, 1024, 512, 256, 128))
    n_s = HW // ts
    cross_w = (wk.astype(bf16), bk.astype(bf16), wv.astype(bf16), bv.astype(bf16))

    def _cross_call(single_buffer_weights):
        def wspec(a):
            imap = lambda b, s, _nd=a.ndim: (0,) * _nd
            if single_buffer_weights:
                # Grid-invariant weights: single buffer (v7x VMEM hygiene).
                return pl.BlockSpec(a.shape, imap, pipeline_mode=pl.Buffered(1))
            return pl.BlockSpec(a.shape, imap)
        return pl.pallas_call(
            _cross_attn_kernel,
            grid=(B, n_s),
            in_specs=[pl.BlockSpec((1, L, E), lambda b, s: (b, 0, 0)),
                      pl.BlockSpec((ts, E), lambda b, s: (s, b)),
                      pl.BlockSpec((1, L, ts), lambda b, s: (b, 0, s))]
                     + [wspec(p) for p in cross_w],
            out_specs=pl.BlockSpec((1, L, E), lambda b, s: (b, 0, 0)),
            out_shape=jax.ShapeDtypeStruct((B, L, E), f32),
            scratch_shapes=[pltpu.VMEM((L, 1), f32),     # online-softmax running max
                            pltpu.VMEM((L, 1), f32),     # online-softmax running sum
                            pltpu.VMEM((L, E), f32)],    # weighted-V accumulator
            compiler_params=pltpu.CompilerParams(
                dimension_semantics=("parallel", "arbitrary"),
                vmem_limit_bytes=_VMEM_LIMIT),
        )(qc, mem2d, pm_flat, *cross_w)

    try:
        ao = _cross_call(single_buffer_weights=hasattr(pl, "Buffered"))
    except Exception:  # pipeline_mode unsupported on this jax version -> default buffering
        ao = _cross_call(single_buffer_weights=False)

    # ----------------------- call 3: out-proj + FFN over B*L rows -------------------
    x1_2d = x1.reshape(BL, E)
    ao_2d = ao.reshape(BL, E)
    ffn_w = (wo.astype(bf16), bo.astype(f32), n3g.astype(f32), n3b.astype(f32),
             w1.astype(bf16), b1.astype(f32), w2.astype(bf16), b2.astype(f32))
    rt = BL if BL <= 2048 else _pick_tile(BL, (2048, 1024, 512, 256, 128))
    n_r = BL // rt
    full3 = lambda a: pl.BlockSpec(a.shape, lambda r, _nd=a.ndim: (0,) * _nd)
    q_out2d, q_bf = pl.pallas_call(
        _ffn_kernel,
        grid=(n_r,),
        in_specs=[pl.BlockSpec((rt, E), lambda r: (r, 0)),
                  pl.BlockSpec((rt, E), lambda r: (r, 0))] + [full3(p) for p in ffn_w],
        out_specs=[pl.BlockSpec((rt, E), lambda r: (r, 0)),
                   pl.BlockSpec((rt, E), lambda r: (r, 0))],
        out_shape=[jax.ShapeDtypeStruct((BL, E), f32),
                   jax.ShapeDtypeStruct((BL, E), bf16)],
        compiler_params=pltpu.CompilerParams(
            dimension_semantics=("parallel",), vmem_limit_bytes=_VMEM_LIMIT),
    )(x1_2d, ao_2d, *ffn_w)

    # --------------------- call 4: mask predictor + sigmoid (B*L rows) --------------
    itemsize = jnp.dtype(mask_dtype).itemsize
    def _fits(c):  # double-buffered output + wm tiles must fit comfortably in VMEM
        return (BL * c * itemsize + E * c * 2) * 2 <= 24 * 1024 * 1024
    t_hw = _pick_tile(HW, (4096, 2048, 1024, 512, 256, 128), fits=_fits)
    n_hw = HW // t_hw
    mask2d = pl.pallas_call(
        _mask_kernel,
        grid=(n_hw,),
        in_specs=[pl.BlockSpec((BL, E), lambda t: (0, 0)),
                  pl.BlockSpec((E, t_hw), lambda t: (0, t)),
                  pl.BlockSpec((1, t_hw), lambda t: (0, t))],
        out_specs=pl.BlockSpec((BL, t_hw), lambda t: (0, t)),
        out_shape=jax.ShapeDtypeStruct((BL, HW), mask_dtype),
        compiler_params=pltpu.CompilerParams(
            dimension_semantics=("parallel",), vmem_limit_bytes=_VMEM_LIMIT),
    )(q_bf, wm.astype(bf16), bm.astype(f32))

    q_out = jnp.transpose(q_out2d.reshape(B, L, E), (1, 0, 2))   # back to (L, B, E)
    pred_mask = mask2d.reshape(B, L, H, W)
    return q_out, pred_mask


if __name__ == "__main__":
    B, L, E, nhead = 2, 16, 128, 4
    H = W = 8
    S = HW = H * W
    FFN = 4 * E

    key = jax.random.PRNGKey(0)
    keys = jax.random.split(key, 40)
    _it = iter(keys)

    def w(shape, scale=0.05):
        return scale * jax.random.normal(next(_it), shape, dtype=jnp.float32)

    # Deterministic synthetic parameters (PyTorch Linear weights pre-transposed to (in, out)).
    params = (
        jnp.ones((1, E), jnp.float32), jnp.zeros((1, E), jnp.float32),   # norm1
        w((E, 3 * E)), w((1, 3 * E)),                                    # self_attn in_proj
        w((E, E)), w((1, E)),                                            # self_attn out_proj
        jnp.ones((1, E), jnp.float32), jnp.zeros((1, E), jnp.float32),   # norm2
        w((E, E)), w((1, E)),                                            # linear_q
        w((E, E)), w((1, E)),                                            # linear_k
        w((E, E)), w((1, E)),                                            # linear_v
        w((E, E)), w((1, E)),                                            # out_proj (cross-attn)
        jnp.ones((1, E), jnp.float32), jnp.zeros((1, E), jnp.float32),   # norm3
        w((E, FFN)), w((1, FFN)),                                        # linear1
        w((FFN, E)), w((1, E)),                                          # linear2
        w((E, HW)), w((1, HW)),                                          # mask_predictor
    )

    query = jax.random.normal(next(_it), (L, B, E), dtype=jnp.float32)
    memory = jax.random.normal(next(_it), (S, B, E), dtype=jnp.float32)
    prev_mask = jax.nn.sigmoid(
        jax.random.normal(next(_it), (B, L, H, W), dtype=jnp.float32))

    q_out, pred_mask = masked_decoder_layer(query, memory, (H, W), prev_mask, params, nhead)
    jax.block_until_ready((q_out, pred_mask))
    assert q_out.shape == (L, B, E)
    assert pred_mask.shape == (B, L, H, W)
    print("KERNEL_OK")
</pallas_src>

<mosaic_0001>
module attributes {stable_mosaic.version = 11 : i64} {
  func.func @_self_attn_q_kernel(%arg0: i32, %arg1: memref<16x128xf32, #tpu.memory_space<vmem>>, %arg2: memref<1x128xf32, #tpu.memory_space<vmem>>, %arg3: memref<1x128xf32, #tpu.memory_space<vmem>>, %arg4: memref<4x128x32xbf16, #tpu.memory_space<vmem>>, %arg5: memref<4x128x32xbf16, #tpu.memory_space<vmem>>, %arg6: memref<4x128x32xbf16, #tpu.memory_space<vmem>>, %arg7: memref<4x1x32xf32, #tpu.memory_space<vmem>>, %arg8: memref<4x1x32xf32, #tpu.memory_space<vmem>>, %arg9: memref<4x1x32xf32, #tpu.memory_space<vmem>>, %arg10: memref<4x32x128xbf16, #tpu.memory_space<vmem>>, %arg11: memref<1x128xf32, #tpu.memory_space<vmem>>, %arg12: memref<1x128xf32, #tpu.memory_space<vmem>>, %arg13: memref<1x128xf32, #tpu.memory_space<vmem>>, %arg14: memref<128x128xbf16, #tpu.memory_space<vmem>>, %arg15: memref<1x128xf32, #tpu.memory_space<vmem>>, %arg16: memref<1x16x128xf32, #tpu.memory_space<vmem>>, %arg17: memref<1x16x128xbf16, #tpu.memory_space<vmem>>) attributes {dimension_semantics = [#tpu.dimension_semantics<parallel>], iteration_bounds = array<i64: 2>, scalar_prefetch = 0 : i64, scratch_operands = 0 : i64, tpu.core_type = #tpu.core_type<tc>, window_params = [{transform_indices = @transform_0, window_bounds = array<i64: 16, 128>}, {pipeline_mode = #tpu.pipeline_mode<synchronous>, transform_indices = @transform_1, window_bounds = array<i64: 1, 128>}, {pipeline_mode = #tpu.pipeline_mode<synchronous>, transform_indices = @transform_2, window_bounds = array<i64: 1, 128>}, {pipeline_mode = #tpu.pipeline_mode<synchronous>, transform_indices = @transform_3, window_bounds = array<i64: 4, 128, 32>}, {pipeline_mode = #tpu.pipeline_mode<synchronous>, transform_indices = @transform_4, window_bounds = array<i64: 4, 128, 32>}, {pipeline_mode = #tpu.pipeline_mode<synchronous>, transform_indices = @transform_5, window_bounds = array<i64: 4, 128, 32>}, {pipeline_mode = #tpu.pipeline_mode<synchronous>, transform_indices = @transform_6, window_bounds = array<i64: 4, 1, 32>}, {pipeline_mode = #tpu.pipeline_mode<synchronous>, transform_indices = @transform_7, window_bounds = array<i64: 4, 1, 32>}, {pipeline_mode = #tpu.pipeline_mode<synchronous>, transform_indices = @transform_8, window_bounds = array<i64: 4, 1, 32>}, {pipeline_mode = #tpu.pipeline_mode<synchronous>, transform_indices = @transform_9, window_bounds = array<i64: 4, 32, 128>}, {pipeline_mode = #tpu.pipeline_mode<synchronous>, transform_indices = @transform_10, window_bounds = array<i64: 1, 128>}, {pipeline_mode = #tpu.pipeline_mode<synchronous>, transform_indices = @transform_11, window_bounds = array<i64: 1, 128>}, {pipeline_mode = #tpu.pipeline_mode<synchronous>, transform_indices = @transform_12, window_bounds = array<i64: 1, 128>}, {pipeline_mode = #tpu.pipeline_mode<synchronous>, transform_indices = @transform_13, window_bounds = array<i64: 128, 128>}, {pipeline_mode = #tpu.pipeline_mode<synchronous>, transform_indices = @transform_14, window_bounds = array<i64: 1, 128>}, {transform_indices = @transform_15, window_bounds = array<i64: 1, 16, 128>}, {transform_indices = @transform_16, window_bounds = array<i64: 1, 16, 128>}]} {
    %c0 = arith.constant 0 : index
    %c0_0 = arith.constant 0 : index
    %0 = vector.load %arg1[%c0, %c0_0] : memref<16x128xf32, #tpu.memory_space<vmem>>, vector<16x128xf32>
    %c0_1 = arith.constant 0 : index
    %c0_2 = arith.constant 0 : index
    %1 = vector.load %arg2[%c0_1, %c0_2] : memref<1x128xf32, #tpu.memory_space<vmem>>, vector<1x128xf32>
    %c0_3 = arith.constant 0 : index
    %c0_4 = arith.constant 0 : index
    %2 = vector.load %arg3[%c0_3, %c0_4] : memref<1x128xf32, #tpu.memory_space<vmem>>, vector<1x128xf32>
    %cst = arith.constant dense<0.000000e+00> : vector<16xf32>
    %3 = vector.multi_reduction <add>, %0, %cst [1] : vector<16x128xf32> to vector<16xf32>
    %4 = vector.shape_cast %3 : vector<16xf32> to vector<16x1xf32>
    %cst_5 = arith.constant 1.280000e+02 : f32
    %5 = vector.broadcast %cst_5 : f32 to vector<16x1xf32>
    %6 = arith.divf %4, %5 : vector<16x1xf32>
    %7 = vector.broadcast %6 : vector<16x1xf32> to vector<16x128xf32>
    %8 = arith.subf %0, %7 : vector<16x128xf32>
    %9 = arith.mulf %8, %8 : vector<16x128xf32>
    %cst_6 = arith.constant dense<0.000000e+00> : vector<16xf32>
    %10 = vector.multi_reduction <add>, %9, %cst_6 [1] : vector<16x128xf32> to vector<16xf32>
    %11 = vector.shape_cast %10 : vector<16xf32> to vector<16x1xf32>
    %cst_7 = arith.constant 1.280000e+02 : f32
    %12 = vector.broadcast %cst_7 : f32 to vector<16x1xf32>
    %13 = arith.divf %11, %12 : vector<16x1xf32>
    %14 = vector.broadcast %6 : vector<16x1xf32> to vector<16x128xf32>
    %15 = arith.subf %0, %14 : vector<16x128xf32>
    %cst_8 = arith.constant 9.99999974E-6 : f32
    %16 = vector.broadcast %cst_8 : f32 to vector<16x1xf32>
    %17 = arith.addf %13, %16 : vector<16x1xf32>
    %18 = math.rsqrt %17 : vector<16x1xf32>
    %19 = vector.broadcast %18 : vector<16x1xf32> to vector<16x128xf32>
    %20 = arith.mulf %15, %19 : vector<16x128xf32>
    %21 = vector.broadcast %1 : vector<1x128xf32> to vector<16x128xf32>
    %22 = arith.mulf %20, %21 : vector<16x128xf32>
    %23 = vector.broadcast %2 : vector<1x128xf32> to vector<16x128xf32>
    %24 = arith.addf %22, %23 : vector<16x128xf32>
    %25 = arith.truncf %24 : vector<16x128xf32> to vector<16x128xbf16>
    %c0_9 = arith.constant 0 : index
    %c0_10 = arith.constant 0 : index
    %26 = vector.load %arg11[%c0_9, %c0_10] : memref<1x128xf32, #tpu.memory_space<vmem>>, vector<1x128xf32>
    %c0_11 = arith.constant 0 : index
    %c0_12 = arith.constant 0 : index
    %c0_13 = arith.constant 0 : index
    %27 = vector.load %arg4[%c0_11, %c0_12, %c0_13] : memref<4x128x32xbf16, #tpu.memory_space<vmem>>, vector<1x128x32xbf16>
    %28 = vector.shape_cast %27 : vector<1x128x32xbf16> to vector<128x32xbf16>
    %cst_14 = arith.constant dense<0.000000e+00> : vector<16x32xf32>
    %29 = tpu.matmul %25, %28, %cst_14 {dimension_numbers = #tpu.dot_dimension_numbers<[1], [0], [0], [1], [0, 0, 1, 1], [], []>} : vector<16x128xbf16>, vector<128x32xbf16>, vector<16x32xf32> -> vector<16x32xf32>
    %c0_15 = arith.constant 0 : index
    %c0_16 = arith.constant 0 : index
    %c0_17 = arith.constant 0 : index
    %30 = vector.load %arg7[%c0_15, %c0_16, %c0_17] : memref<4x1x32xf32, #tpu.memory_space<vmem>>, vector<1x1x32xf32>
    %31 = vector.shape_cast %30 : vector<1x1x32xf32> to vector<1x32xf32>
    %32 = vector.broadcast %31 : vector<1x32xf32> to vector<16x32xf32>
    %33 = arith.addf %29, %32 : vector<16x32xf32>
    %cst_18 = arith.constant 0.176776692 : f32
    %34 = vector.broadcast %cst_18 : f32 to vector<16x32xf32>
    %35 = arith.mulf %33, %34 : vector<16x32xf32>
    %c0_19 = arith.constant 0 : index
    %c0_20 = arith.constant 0 : index
    %c0_21 = arith.constant 0 : index
    %36 = vector.load %arg5[%c0_19, %c0_20, %c0_21] : memref<4x128x32xbf16, #tpu.memory_space<vmem>>, vector<1x128x32xbf16>
    %37 = vector.shape_cast %36 : vector<1x128x32xbf16> to vector<128x32xbf16>
    %cst_22 = arith.constant dense<0.000000e+00> : vector<16x32xf32>
    %38 = tpu.matmul %25, %37, %cst_22 {dimension_numbers = #tpu.dot_dimension_numbers<[1], [0], [0], [1], [0, 0, 1, 1], [], []>} : vector<16x128xbf16>, vector<128x32xbf16>, vector<16x32xf32> -> vector<16x32xf32>
    %c0_23 = arith.constant 0 : index
    %c0_24 = arith.constant 0 : index
    %c0_25 = arith.constant 0 : index
    %39 = vector.load %arg8[%c0_23, %c0_24, %c0_25] : memref<4x1x32xf32, #tpu.memory_space<vmem>>, vector<1x1x32xf32>
    %40 = vector.shape_cast %39 : vector<1x1x32xf32> to vector<1x32xf32>
    %41 = vector.broadcast %40 : vector<1x32xf32> to vector<16x32xf32>
    %42 = arith.addf %38, %41 : vector<16x32xf32>
    %c0_26 = arith.constant 0 : index
    %c0_27 = arith.constant 0 : index
    %c0_28 = arith.constant 0 : index
    %43 = vector.load %arg6[%c0_26, %c0_27, %c0_28] : memref<4x128x32xbf16, #tpu.memory_space<vmem>>, vector<1x128x32xbf16>
    %44 = vector.shape_cast %43 : vector<1x128x32xbf16> to vector<128x32xbf16>
    %cst_29 = arith.constant dense<0.000000e+00> : vector<16x32xf32>
    %45 = tpu.matmul %25, %44, %cst_29 {dimension_numbers = #tpu.dot_dimension_numbers<[1], [0], [0], [1], [0, 0, 1, 1], [], []>} : vector<16x128xbf16>, vector<128x32xbf16>, vector<16x32xf32> -> vector<16x32xf32>
    %c0_30 = arith.constant 0 : index
    %c0_31 = arith.constant 0 : index
    %c0_32 = arith.constant 0 : index
    %46 = vector.load %arg9[%c0_30, %c0_31, %c0_32] : memref<4x1x32xf32, #tpu.memory_space<vmem>>, vector<1x1x32xf32>
    %47 = vector.shape_cast %46 : vector<1x1x32xf32> to vector<1x32xf32>
    %48 = vector.broadcast %47 : vector<1x32xf32> to vector<16x32xf32>
    %49 = arith.addf %45, %48 : vector<16x32xf32>
    %50 = arith.truncf %35 : vector<16x32xf32> to vector<16x32xbf16>
    %51 = arith.truncf %42 : vector<16x32xf32> to vector<16x32xbf16>
    %cst_33 = arith.constant dense<0.000000e+00> : vector<16x16xf32>
    %52 = tpu.matmul %50, %51, %cst_33 {dimension_numbers = #tpu.dot_dimension_numbers<[1], [1], [0], [0], [0, 0, 1, 0], [], []>} : vector<16x32xbf16>, vector<16x32xbf16>, vector<16x16xf32> -> vector<16x16xf32>
    %cst_34 = arith.constant dense<0xFF800000> : vector<16xf32>
    %53 = vector.multi_reduction <maximumf>, %52, %cst_34 [1] : vector<16x16xf32> to vector<16xf32>
    %54 = vector.shape_cast %53 : vector<16xf32> to vector<16x1xf32>
    %55 = vector.broadcast %54 : vector<16x1xf32> to vector<16x16xf32>
    %56 = arith.subf %52, %55 : vector<16x16xf32>
    %57 = math.exp %56 : vector<16x16xf32>
    %cst_35 = arith.constant dense<0.000000e+00> : vector<16xf32>
    %58 = vector.multi_reduction <add>, %57, %cst_35 [1] : vector<16x16xf32> to vector<16xf32>
    %59 = vector.shape_cast %58 : vector<16xf32> to vector<16x1xf32>
    %60 = vector.broadcast %59 : vector<16x1xf32> to vector<16x16xf32>
    %61 = arith.divf %57, %60 : vector<16x16xf32>
    %62 = arith.truncf %61 : vector<16x16xf32> to vector<16x16xbf16>
    %63 = arith.truncf %49 : vector<16x32xf32> to vector<16x32xbf16>
    %cst_36 = arith.constant dense<0.000000e+00> : vector<16x32xf32>
    %64 = tpu.matmul %62, %63, %cst_36 {dimension_numbers = #tpu.dot_dimension_numbers<[1], [0], [0], [1], [0, 0, 1, 1], [], []>} : vector<16x16xbf16>, vector<16x32xbf16>, vector<16x32xf32> -> vector<16x32xf32>
    %65 = arith.truncf %64 : vector<16x32xf32> to vector<16x32xbf16>
    %c0_37 = arith.constant 0 : index
    %c0_38 = arith.constant 0 : index
    %c0_39 = arith.constant 0 : index
    %66 = vector.load %arg10[%c0_37, %c0_38, %c0_39] : memref<4x32x128xbf16, #tpu.memory_space<vmem>>, vector<1x32x128xbf16>
    %67 = vector.shape_cast %66 : vector<1x32x128xbf16> to vector<32x128xbf16>
    %cst_40 = arith.constant dense<0.000000e+00> : vector<16x128xf32>
    %68 = tpu.matmul %65, %67, %cst_40 {dimension_numbers = #tpu.dot_dimension_numbers<[1], [0], [0], [1], [0, 0, 1, 1], [], []>} : vector<16x32xbf16>, vector<32x128xbf16>, vector<16x128xf32> -> vector<16x128xf32>
    %69 = vector.broadcast %26 : vector<1x128xf32> to vector<16x128xf32>
    %70 = arith.addf %69, %68 : vector<16x128xf32>
    %c1 = arith.constant 1 : index
    %c0_41 = arith.constant 0 : index
    %c0_42 = arith.constant 0 : index
    %71 = vector.load %arg4[%c1, %c0_41, %c0_42] : memref<4x128x32xbf16, #tpu.memory_space<vmem>>, vector<1x128x32xbf16>
    %72 = vector.shape_cast %71 : vector<1x128x32xbf16> to vector<128x32xbf16>
    %cst_43 = arith.constant dense<0.000000e+00> : vector<16x32xf32>
    %73 = tpu.matmul %25, %72, %cst_43 {dimension_numbers = #tpu.dot_dimension_numbers<[1], [0], [0], [1], [0, 0, 1, 1], [], []>} : vector<16x128xbf16>, vector<128x32xbf16>, vector<16x32xf32> -> vector<16x32xf32>
    %c1_44 = arith.constant 1 : index
    %c0_45 = arith.constant 0 : index
    %c0_46 = arith.constant 0 : index
    %74 = vector.load %arg7[%c1_44, %c0_45, %c0_46] : memref<4x1x32xf32, #tpu.memory_space<vmem>>, vector<1x1x32xf32>
    %75 = vector.shape_cast %74 : vector<1x1x32xf32> to vector<1x32xf32>
    %76 = vector.broadcast %75 : vector<1x32xf32> to vector<16x32xf32>
    %77 = arith.addf %73, %76 : vector<16x32xf32>
    %cst_47 = arith.constant 0.176776692 : f32
    %78 = vector.broadcast %cst_47 : f32 to vector<16x32xf32>
    %79 = arith.mulf %77, %78 : vector<16x32xf32>
    %c1_48 = arith.constant 1 : index
    %c0_49 = arith.constant 0 : index
    %c0_50 = arith.constant 0 : index
    %80 = vector.load %arg5[%c1_48, %c0_49, %c0_50] : memref<4x128x32xbf16, #tpu.memory_space<vmem>>, vector<1x128x32xbf16>
    %81 = vector.shape_cast %80 : vector<1x128x32xbf16> to vector<128x32xbf16>
    %cst_51 = arith.constant dense<0.000000e+00> : vector<16x32xf32>
    %82 = tpu.matmul %25, %81, %cst_51 {dimension_numbers = #tpu.dot_dimension_numbers<[1], [0], [0], [1], [0, 0, 1, 1], [], []>} : vector<16x128xbf16>, vector<128x32xbf16>, vector<16x32xf32> -> vector<16x32xf32>
    %c1_52 = arith.constant 1 : index
    %c0_53 = arith.constant 0 : index
    %c0_54 = arith.constant 0 : index
    %83 = vector.load %arg8[%c1_52, %c0_53, %c0_54] : memref<4x1x32xf32, #tpu.memory_space<vmem>>, vector<1x1x32xf32>
    %84 = vector.shape_cast %83 : vector<1x1x32xf32> to vector<1x32xf32>
    %85 = vector.broadcast %84 : vector<1x32xf32> to vector<16x32xf32>
    %86 = arith.addf %82, %85 : vector<16x32xf32>
    %c1_55 = arith.constant 1 : index
    %c0_56 = arith.constant 0 : index
    %c0_57 = arith.constant 0 : index
    %87 = vector.load %arg6[%c1_55, %c0_56, %c0_57] : memref<4x128x32xbf16, #tpu.memory_space<vmem>>, vector<1x128x32xbf16>
    %88 = vector.shape_cast %87 : vector<1x128x32xbf16> to vector<128x32xbf16>
    %cst_58 = arith.constant dense<0.000000e+00> : vector<16x32xf32>
    %89 = tpu.matmul %25, %88, %cst_58 {dimension_numbers = #tpu.dot_dimension_numbers<[1], [0], [0], [1], [0, 0, 1, 1], [], []>} : vector<16x128xbf16>, vector<128x32xbf16>, vector<16x32xf32> -> vector<16x32xf32>
    %c1_59 = arith.constant 1 : index
    %c0_60 = arith.constant 0 : index
    %c0_61 = arith.constant 0 : index
    %90 = vector.load %arg9[%c1_59, %c0_60, %c0_61] : memref<4x1x32xf32, #tpu.memory_space<vmem>>, vector<1x1x32xf32>
    %91 = vector.shape_cast %90 : vector<1x1x32xf32> to vector<1x32xf32>
    %92 = vector.broadcast %91 : vector<1x32xf32> to vector<16x32xf32>
    %93 = arith.addf %89, %92 : vector<16x32xf32>
    %94 = arith.truncf %79 : vector<16x32xf32> to vector<16x32xbf16>
    %95 = arith.truncf %86 : vector<16x32xf32> to vector<16x32xbf16>
    %cst_62 = arith.constant dense<0.000000e+00> : vector<16x16xf32>
    %96 = tpu.matmul %94, %95, %cst_62 {dimension_numbers = #tpu.dot_dimension_numbers<[1], [1], [0], [0], [0, 0, 1, 0], [], []>} : vector<16x32xbf16>, vector<16x32xbf16>, vector<16x16xf32> -> vector<16x16xf32>
    %cst_63 = arith.constant dense<0xFF800000> : vector<16xf32>
    %97 = vector.multi_reduction <maximumf>, %96, %cst_63 [1] : vector<16x16xf32> to vector<16xf32>
    %98 = vector.shape_cast %97 : vector<16xf32> to vector<16x1xf32>
    %99 = vector.broadcast %98 : vector<16x1xf32> to vector<16x16xf32>
    %100 = arith.subf %96, %99 : vector<16x16xf32>
    %101 = math.exp %100 : vector<16x16xf32>
    %cst_64 = arith.constant dense<0.000000e+00> : vector<16xf32>
    %102 = vector.multi_reduction <add>, %101, %cst_64 [1] : vector<16x16xf32> to vector<16xf32>
    %103 = vector.shape_cast %102 : vector<16xf32> to vector<16x1xf32>
    %104 = vector.broadcast %103 : vector<16x1xf32> to vector<16x16xf32>
    %105 = arith.divf %101, %104 : vector<16x16xf32>
    %106 = arith.truncf %105 : vector<16x16xf32> to vector<16x16xbf16>
    %107 = arith.truncf %93 : vector<16x32xf32> to vector<16x32xbf16>
    %cst_65 = arith.constant dense<0.000000e+00> : vector<16x32xf32>
    %108 = tpu.matmul %106, %107, %cst_65 {dimension_numbers = #tpu.dot_dimension_numbers<[1], [0], [0], [1], [0, 0, 1, 1], [], []>} : vector<16x16xbf16>, vector<16x32xbf16>, vector<16x32xf32> -> vector<16x32xf32>
    %109 = arith.truncf %108 : vector<16x32xf32> to vector<16x32xbf16>
    %c1_66 = arith.constant 1 : index
    %c0_67 = arith.constant 0 : index
    %c0_68 = arith.constant 0 : index
    %110 = vector.load %arg10[%c1_66, %c0_67, %c0_68] : memref<4x32x128xbf16, #tpu.memory_space<vmem>>, vector<1x32x128xbf16>
    %111 = vector.shape_cast %110 : vector<1x32x128xbf16> to vector<32x128xbf16>
    %cst_69 = arith.constant dense<0.000000e+00> : vector<16x128xf32>
    %112 = tpu.matmul %109, %111, %cst_69 {dimension_numbers = #tpu.dot_dimension_numbers<[1], [0], [0], [1], [0, 0, 1, 1], [], []>} : vector<16x32xbf16>, vector<32x128xbf16>, vector<16x128xf32> -> vector<16x128xf32>
    %113 = arith.addf %70, %112 : vector<16x128xf32>
    %c2 = arith.constant 2 : index
    %c0_70 = arith.constant 0 : index
    %c0_71 = arith.constant 0 : index
    %114 = vector.load %arg4[%c2, %c0_70, %c0_71] : memref<4x128x32xbf16, #tpu.memory_space<vmem>>, vector<1x128x32xbf16>
    %115 = vector.shape_cast %114 : vector<1x128x32xbf16> to vector<128x32xbf16>
    %cst_72 = arith.constant dense<0.000000e+00> : vector<16x32xf32>
    %116 = tpu.matmul %25, %115, %cst_72 {dimension_numbers = #tpu.dot_dimension_numbers<[1], [0], [0], [1], [0, 0, 1, 1], [], []>} : vector<16x128xbf16>, vector<128x32xbf16>, vector<16x32xf32> -> vector<16x32xf32>
    %c2_73 = arith.constant 2 : index
    %c0_74 = arith.constant 0 : index
    %c0_75 = arith.constant 0 : index
    %117 = vector.load %arg7[%c2_73, %c0_74, %c0_75] : memref<4x1x32xf32, #tpu.memory_space<vmem>>, vector<1x1x32xf32>
    %118 = vector.shape_cast %117 : vector<1x1x32xf32> to vector<1x32xf32>
    %119 = vector.broadcast %118 : vector<1x32xf32> to vector<16x32xf32>
    %120 = arith.addf %116, %119 : vector<16x32xf32>
    %cst_76 = arith.constant 0.176776692 : f32
    %121 = vector.broadcast %cst_76 : f32 to vector<16x32xf32>
    %122 = arith.mulf %120, %121 : vector<16x32xf32>
    %c2_77 = arith.constant 2 : index
    %c0_78 = arith.constant 0 : index
    %c0_79 = arith.constant 0 : index
    %123 = vector.load %arg5[%c2_77, %c0_78, %c0_79] : memref<4x128x32xbf16, #tpu.memory_space<vmem>>, vector<1x128x32xbf16>
    %124 = vector.shape_cast %123 : vector<1x128x32xbf16> to vector<128x32xbf16>
    %cst_80 = arith.constant dense<0.000000e+00> : vector<16x32xf32>
    %125 = tpu.matmul %25, %124, %cst_80 {dimension_numbers = #tpu.dot_dimension_numbers<[1], [0], [0], [1], [0, 0, 1, 1], [], []>} : vector<16x128xbf16>, vector<128x32xbf16>, vector<16x32xf32> -> vector<16x32xf32>
    %c2_81 = arith.constant 2 : index
    %c0_82 = arith.constant 0 : index
    %c0_83 = arith.constant 0 : index
    %126 = vector.load %arg8[%c2_81, %c0_82, %c0_83] : memref<4x1x32xf32, #tpu.memory_space<vmem>>, vector<1x1x32xf32>
    %127 = vector.shape_cast %126 : vector<1x1x32xf32> to vector<1x32xf32>
    %128 = vector.broadcast %127 : vector<1x32xf32> to vector<16x32xf32>
    %129 = arith.addf %125, %128 : vector<16x32xf32>
    %c2_84 = arith.constant 2 : index
    %c0_85 = arith.constant 0 : index
    %c0_86 = arith.constant 0 : index
    %130 = vector.load %arg6[%c2_84, %c0_85, %c0_86] : memref<4x128x32xbf16, #tpu.memory_space<vmem>>, vector<1x128x32xbf16>
    %131 = vector.shape_cast %130 : vector<1x128x32xbf16> to vector<128x32xbf16>
    %cst_87 = arith.constant dense<0.000000e+00> : vector<16x32xf32>
    %132 = tpu.matmul %25, %131, %cst_87 {dimension_numbers = #tpu.dot_dimension_numbers<[1], [0], [0], [1], [0, 0, 1, 1], [], []>} : vector<16x128xbf16>, vector<128x32xbf16>, vector<16x32xf32> -> vector<16x32xf32>
    %c2_88 = arith.constant 2 : index
    %c0_89 = arith.constant 0 : index
    %c0_90 = arith.constant 0 : index
    %133 = vector.load %arg9[%c2_88, %c0_89, %c0_90] : memref<4x1x32xf32, #tpu.memory_space<vmem>>, vector<1x1x32xf32>
    %134 = vector.shape_cast %133 : vector<1x1x32xf32> to vector<1x32xf32>
    %135 = vector.broadcast %134 : vector<1x32xf32> to vector<16x32xf32>
    %136 = arith.addf %132, %135 : vector<16x32xf32>
    %137 = arith.truncf %122 : vector<16x32xf32> to vector<16x32xbf16>
    %138 = arith.truncf %129 : vector<16x32xf32> to vector<16x32xbf16>
    %cst_91 = arith.constant dense<0.000000e+00> : vector<16x16xf32>
    %139 = tpu.matmul %137, %138, %cst_91 {dimension_numbers = #tpu.dot_dimension_numbers<[1], [1], [0], [0], [0, 0, 1, 0], [], []>} : vector<16x32xbf16>, vector<16x32xbf16>, vector<16x16xf32> -> vector<16x16xf32>
    %cst_92 = arith.constant dense<0xFF800000> : vector<16xf32>
    %140 = vector.multi_reduction <maximumf>, %139, %cst_92 [1] : vector<16x16xf32> to vector<16xf32>
    %141 = vector.shape_cast %140 : vector<16xf32> to vector<16x1xf32>
    %142 = vector.broadcast %141 : vector<16x1xf32> to vector<16x16xf32>
    %143 = arith.subf %139, %142 : vector<16x16xf32>
    %144 = math.exp %143 : vector<16x16xf32>
    %cst_93 = arith.constant dense<0.000000e+00> : vector<16xf32>
    %145 = vector.multi_reduction <add>, %144, %cst_93 [1] : vector<16x16xf32> to vector<16xf32>
    %146 = vector.shape_cast %145 : vector<16xf32> to vector<16x1xf32>
    %147 = vector.broadcast %146 : vector<16x1xf32> to vector<16x16xf32>
    %148 = arith.divf %144, %147 : vector<16x16xf32>
    %149 = arith.truncf %148 : vector<16x16xf32> to vector<16x16xbf16>
    %150 = arith.truncf %136 : vector<16x32xf32> to vector<16x32xbf16>
    %cst_94 = arith.constant dense<0.000000e+00> : vector<16x32xf32>
    %151 = tpu.matmul %149, %150, %cst_94 {dimension_numbers = #tpu.dot_dimension_numbers<[1], [0], [0], [1], [0, 0, 1, 1], [], []>} : vector<16x16xbf16>, vector<16x32xbf16>, vector<16x32xf32> -> vector<16x32xf32>
    %152 = arith.truncf %151 : vector<16x32xf32> to vector<16x32xbf16>
    %c2_95 = arith.constant 2 : index
    %c0_96 = arith.constant 0 : index
    %c0_97 = arith.constant 0 : index
    %153 = vector.load %arg10[%c2_95, %c0_96, %c0_97] : memref<4x32x128xbf16, #tpu.memory_space<vmem>>, vector<1x32x128xbf16>
    %154 = vector.shape_cast %153 : vector<1x32x128xbf16> to vector<32x128xbf16>
    %cst_98 = arith.constant dense<0.000000e+00> : vector<16x128xf32>
    %155 = tpu.matmul %152, %154, %cst_98 {dimension_numbers = #tpu.dot_dimension_numbers<[1], [0], [0], [1], [0, 0, 1, 1], [], []>} : vector<16x32xbf16>, vector<32x128xbf16>, vector<16x128xf32> -> vector<16x128xf32>
    %156 = arith.addf %113, %155 : vector<16x128xf32>
    %c3 = arith.constant 3 : index
    %c0_99 = arith.constant 0 : index
    %c0_100 = arith.constant 0 : index
    %157 = vector.load %arg4[%c3, %c0_99, %c0_100] : memref<4x128x32xbf16, #tpu.memory_space<vmem>>, vector<1x128x32xbf16>
    %158 = vector.shape_cast %157 : vector<1x128x32xbf16> to vector<128x32xbf16>
    %cst_101 = arith.constant dense<0.000000e+00> : vector<16x32xf32>
    %159 = tpu.matmul %25, %158, %cst_101 {dimension_numbers = #tpu.dot_dimension_numbers<[1], [0], [0], [1], [0, 0, 1, 1], [], []>} : vector<16x128xbf16>, vector<128x32xbf16>, vector<16x32xf32> -> vector<16x32xf32>
    %c3_102 = arith.constant 3 : index
    %c0_103 = arith.constant 0 : index
    %c0_104 = arith.constant 0 : index
    %160 = vector.load %arg7[%c3_102, %c0_103, %c0_104] : memref<4x1x32xf32, #tpu.memory_space<vmem>>, vector<1x1x32xf32>
    %161 = vector.shape_cast %160 : vector<1x1x32xf32> to vector<1x32xf32>
    %162 = vector.broadcast %161 : vector<1x32xf32> to vector<16x32xf32>
    %163 = arith.addf %159, %162 : vector<16x32xf32>
    %cst_105 = arith.constant 0.176776692 : f32
    %164 = vector.broadcast %cst_105 : f32 to vector<16x32xf32>
    %165 = arith.mulf %163, %164 : vector<16x32xf32>
    %c3_106 = arith.constant 3 : index
    %c0_107 = arith.constant 0 : index
    %c0_108 = arith.constant 0 : index
    %166 = vector.load %arg5[%c3_106, %c0_107, %c0_108] : memref<4x128x32xbf16, #tpu.memory_space<vmem>>, vector<1x128x32xbf16>
    %167 = vector.shape_cast %166 : vector<1x128x32xbf16> to vector<128x32xbf16>
    %cst_109 = arith.constant dense<0.000000e+00> : vector<16x32xf32>
    %168 = tpu.matmul %25, %167, %cst_109 {dimension_numbers = #tpu.dot_dimension_numbers<[1], [0], [0], [1], [0, 0, 1, 1], [], []>} : vector<16x128xbf16>, vector<128x32xbf16>, vector<16x32xf32> -> vector<16x32xf32>
    %c3_110 = arith.constant 3 : index
    %c0_111 = arith.constant 0 : index
    %c0_112 = arith.constant 0 : index
    %169 = vector.load %arg8[%c3_110, %c0_111, %c0_112] : memref<4x1x32xf32, #tpu.memory_space<vmem>>, vector<1x1x32xf32>
    %170 = vector.shape_cast %169 : vector<1x1x32xf32> to vector<1x32xf32>
    %171 = vector.broadcast %170 : vector<1x32xf32> to vector<16x32xf32>
    %172 = arith.addf %168, %171 : vector<16x32xf32>
    %c3_113 = arith.constant 3 : index
    %c0_114 = arith.constant 0 : index
    %c0_115 = arith.constant 0 : index
    %173 = vector.load %arg6[%c3_113, %c0_114, %c0_115] : memref<4x128x32xbf16, #tpu.memory_space<vmem>>, vector<1x128x32xbf16>
    %174 = vector.shape_cast %173 : vector<1x128x32xbf16> to vector<128x32xbf16>
    %cst_116 = arith.constant dense<0.000000e+00> : vector<16x32xf32>
    %175 = tpu.matmul %25, %174, %cst_116 {dimension_numbers = #tpu.dot_dimension_numbers<[1], [0], [0], [1], [0, 0, 1, 1], [], []>} : vector<16x128xbf16>, vector<128x32xbf16>, vector<16x32xf32> -> vector<16x32xf32>
    %c3_117 = arith.constant 3 : index
    %c0_118 = arith.constant 0 : index
    %c0_119 = arith.constant 0 : index
    %176 = vector.load %arg9[%c3_117, %c0_118, %c0_119] : memref<4x1x32xf32, #tpu.memory_space<vmem>>, vector<1x1x32xf32>
    %177 = vector.shape_cast %176 : vector<1x1x32xf32> to vector<1x32xf32>
    %178 = vector.broadcast %177 : vector<1x32xf32> to vector<16x32xf32>
    %179 = arith.addf %175, %178 : vector<16x32xf32>
    %180 = arith.truncf %165 : vector<16x32xf32> to vector<16x32xbf16>
    %181 = arith.truncf %172 : vector<16x32xf32> to vector<16x32xbf16>
    %cst_120 = arith.constant dense<0.000000e+00> : vector<16x16xf32>
    %182 = tpu.matmul %180, %181, %cst_120 {dimension_numbers = #tpu.dot_dimension_numbers<[1], [1], [0], [0], [0, 0, 1, 0], [], []>} : vector<16x32xbf16>, vector<16x32xbf16>, vector<16x16xf32> -> vector<16x16xf32>
    %cst_121 = arith.constant dense<0xFF800000> : vector<16xf32>
    %183 = vector.multi_reduction <maximumf>, %182, %cst_121 [1] : vector<16x16xf32> to vector<16xf32>
    %184 = vector.shape_cast %183 : vector<16xf32> to vector<16x1xf32>
    %185 = vector.broadcast %184 : vector<16x1xf32> to vector<16x16xf32>
    %186 = arith.subf %182, %185 : vector<16x16xf32>
    %187 = math.exp %186 : vector<16x16xf32>
    %cst_122 = arith.constant dense<0.000000e+00> : vector<16xf32>
    %188 = vector.multi_reduction <add>, %187, %cst_122 [1] : vector<16x16xf32> to vector<16xf32>
    %189 = vector.shape_cast %188 : vector<16xf32> to vector<16x1xf32>
    %190 = vector.broadcast %189 : vector<16x1xf32> to vector<16x16xf32>
    %191 = arith.divf %187, %190 : vector<16x16xf32>
    %192 = arith.truncf %191 : vector<16x16xf32> to vector<16x16xbf16>
    %193 = arith.truncf %179 : vector<16x32xf32> to vector<16x32xbf16>
    %cst_123 = arith.constant dense<0.000000e+00> : vector<16x32xf32>
    %194 = tpu.matmul %192, %193, %cst_123 {dimension_numbers = #tpu.dot_dimension_numbers<[1], [0], [0], [1], [0, 0, 1, 1], [], []>} : vector<16x16xbf16>, vector<16x32xbf16>, vector<16x32xf32> -> vector<16x32xf32>
    %195 = arith.truncf %194 : vector<16x32xf32> to vector<16x32xbf16>
    %c3_124 = arith.constant 3 : index
    %c0_125 = arith.constant 0 : index
    %c0_126 = arith.constant 0 : index
    %196 = vector.load %arg10[%c3_124, %c0_125, %c0_126] : memref<4x32x128xbf16, #tpu.memory_space<vmem>>, vector<1x32x128xbf16>
    %197 = vector.shape_cast %196 : vector<1x32x128xbf16> to vector<32x128xbf16>
    %cst_127 = arith.constant dense<0.000000e+00> : vector<16x128xf32>
    %198 = tpu.matmul %195, %197, %cst_127 {dimension_numbers = #tpu.dot_dimension_numbers<[1], [0], [0], [1], [0, 0, 1, 1], [], []>} : vector<16x32xbf16>, vector<32x128xbf16>, vector<16x128xf32> -> vector<16x128xf32>
    %199 = arith.addf %156, %198 : vector<16x128xf32>
    %200 = arith.addf %0, %199 : vector<16x128xf32>
    %c0_128 = arith.constant 0 : index
    %c0_129 = arith.constant 0 : index
    %c0_130 = arith.constant 0 : index
    %201 = vector.load %arg16[%c0_128, %c0_129, %c0_130] : memref<1x16x128xf32, #tpu.memory_space<vmem>>, vector<1x16x128xf32>
    %202 = vector.shape_cast %201 : vector<1x16x128xf32> to vector<16x128xf32>
    %203 = vector.shape_cast %200 : vector<16x128xf32> to vector<1x16x128xf32>
    tpu.vector_store %arg16[%c0_128, %c0_129, %c0_130], %203 {strides = array<i32>} : memref<1x16x128xf32, #tpu.memory_space<vmem>>, vector<1x16x128xf32>,
    %c0_131 = arith.constant 0 : index
    %c0_132 = arith.constant 0 : index
    %204 = vector.load %arg12[%c0_131, %c0_132] : memref<1x128xf32, #tpu.memory_space<vmem>>, vector<1x128xf32>
    %c0_133 = arith.constant 0 : index
    %c0_134 = arith.constant 0 : index
    %205 = vector.load %arg13[%c0_133, %c0_134] : memref<1x128xf32, #tpu.memory_space<vmem>>, vector<1x128xf32>
    %cst_135 = arith.constant dense<0.000000e+00> : vector<16xf32>
    %206 = vector.multi_reduction <add>, %200, %cst_135 [1] : vector<16x128xf32> to vector<16xf32>
    %207 = vector.shape_cast %206 : vector<16xf32> to vector<16x1xf32>
    %cst_136 = arith.constant 1.280000e+02 : f32
    %208 = vector.broadcast %cst_136 : f32 to vector<16x1xf32>
    %209 = arith.divf %207, %208 : vector<16x1xf32>
    %210 = vector.broadcast %209 : vector<16x1xf32> to vector<16x128xf32>
    %211 = arith.subf %200, %210 : vector<16x128xf32>
    %212 = arith.mulf %211, %211 : vector<16x128xf32>
    %cst_137 = arith.constant dense<0.000000e+00> : vector<16xf32>
    %213 = vector.multi_reduction <add>, %212, %cst_137 [1] : vector<16x128xf32> to vector<16xf32>
    %214 = vector.shape_cast %213 : vector<16xf32> to vector<16x1xf32>
    %cst_138 = arith.constant 1.280000e+02 : f32
    %215 = vector.broadcast %cst_138 : f32 to vector<16x1xf32>
    %216 = arith.divf %214, %215 : vector<16x1xf32>
    %217 = vector.broadcast %209 : vector<16x1xf32> to vector<16x128xf32>
    %218 = arith.subf %200, %217 : vector<16x128xf32>
    %cst_139 = arith.constant 9.99999974E-6 : f32
    %219 = vector.broadcast %cst_139 : f32 to vector<16x1xf32>
    %220 = arith.addf %216, %219 : vector<16x1xf32>
    %221 = math.rsqrt %220 : vector<16x1xf32>
    %222 = vector.broadcast %221 : vector<16x1xf32> to vector<16x128xf32>
    %223 = arith.mulf %218, %222 : vector<16x128xf32>
    %224 = vector.broadcast %204 : vector<1x128xf32> to vector<16x128xf32>
    %225 = arith.mulf %223, %224 : vector<16x128xf32>
    %226 = vector.broadcast %205 : vector<1x128xf32> to vector<16x128xf32>
    %227 = arith.addf %225, %226 : vector<16x128xf32>
    %228 = arith.truncf %227 : vector<16x128xf32> to vector<16x128xbf16>
    %c0_140 = arith.constant 0 : index
    %c0_141 = arith.constant 0 : index
    %229 = vector.load %arg14[%c0_140, %c0_141] : memref<128x128xbf16, #tpu.memory_space<vmem>>, vector<128x128xbf16>
    %cst_142 = arith.constant dense<0.000000e+00> : vector<16x128xf32>
    %230 = tpu.matmul %228, %229, %cst_142 {dimension_numbers = #tpu.dot_dimension_numbers<[1], [0], [0], [1], [0, 0, 1, 1], [], []>} : vector<16x128xbf16>, vector<128x128xbf16>, vector<16x128xf32> -> vector<16x128xf32>
    %c0_143 = arith.constant 0 : index
    %c0_144 = arith.constant 0 : index
    %231 = vector.load %arg15[%c0_143, %c0_144] : memref<1x128xf32, #tpu.memory_space<vmem>>, vector<1x128xf32>
    %232 = vector.broadcast %231 : vector<1x128xf32> to vector<16x128xf32>
    %233 = arith.addf %230, %232 : vector<16x128xf32>
    %234 = arith.truncf %233 : vector<16x128xf32> to vector<16x128xbf16>
    %c0_145 = arith.constant 0 : index
    %c0_146 = arith.constant 0 : index
    %c0_147 = arith.constant 0 : index
    %235 = vector.load %arg17[%c0_145, %c0_146, %c0_147] : memref<1x16x128xbf16, #tpu.memory_space<vmem>>, vector<1x16x128xbf16>
    %236 = vector.shape_cast %235 : vector<1x16x128xbf16> to vector<16x128xbf16>
    %237 = vector.shape_cast %234 : vector<16x128xbf16> to vector<1x16x128xbf16>
    tpu.vector_store %arg17[%c0_145, %c0_146, %c0_147], %237 {strides = array<i32>} : memref<1x16x128xbf16, #tpu.memory_space<vmem>>, vector<1x16x128xbf16>,
    return
  }
  func.func @transform_0(%arg0: i32) -> (i32, i32) {
    %c0_i32 = arith.constant 0 : i32
    %c0_i32_0 = arith.constant 0 : i32
    return %c0_i32, %arg0 : i32, i32
  }
  func.func @transform_1(%arg0: i32) -> (i32, i32) {
    %c0_i32 = arith.constant 0 : i32
    %c0_i32_0 = arith.constant 0 : i32
    %c0_i32_1 = arith.constant 0 : i32
    return %c0_i32, %c0_i32_0 : i32, i32
  }
  func.func @transform_2(%arg0: i32) -> (i32, i32) {
    %c0_i32 = arith.constant 0 : i32
    %c0_i32_0 = arith.constant 0 : i32
    %c0_i32_1 = arith.constant 0 : i32
    return %c0_i32, %c0_i32_0 : i32, i32
  }
  func.func @transform_3(%arg0: i32) -> (i32, i32, i32) {
    %c0_i32 = arith.constant 0 : i32
    %c0_i32_0 = arith.constant 0 : i32
    %c0_i32_1 = arith.constant 0 : i32
    %c0_i32_2 = arith.constant 0 : i32
    return %c0_i32, %c0_i32_0, %c0_i32_1 : i32, i32, i32
  }
  func.func @transform_4(%arg0: i32) -> (i32, i32, i32) {
    %c0_i32 = arith.constant 0 : i32
    %c0_i32_0 = arith.constant 0 : i32
    %c0_i32_1 = arith.constant 0 : i32
    %c0_i32_2 = arith.constant 0 : i32
    return %c0_i32, %c0_i32_0, %c0_i32_1 : i32, i32, i32
  }
  func.func @transform_5(%arg0: i32) -> (i32, i32, i32) {
    %c0_i32 = arith.constant 0 : i32
    %c0_i32_0 = arith.constant 0 : i32
    %c0_i32_1 = arith.constant 0 : i32
    %c0_i32_2 = arith.constant 0 : i32
    return %c0_i32, %c0_i32_0, %c0_i32_1 : i32, i32, i32
  }
  func.func @transform_6(%arg0: i32) -> (i32, i32, i32) {
    %c0_i32 = arith.constant 0 : i32
    %c0_i32_0 = arith.constant 0 : i32
    %c0_i32_1 = arith.constant 0 : i32
    %c0_i32_2 = arith.constant 0 : i32
    return %c0_i32, %c0_i32_0, %c0_i32_1 : i32, i32, i32
  }
  func.func @transform_7(%arg0: i32) -> (i32, i32, i32) {
    %c0_i32 = arith.constant 0 : i32
    %c0_i32_0 = arith.constant 0 : i32
    %c0_i32_1 = arith.constant 0 : i32
    %c0_i32_2 = arith.constant 0 : i32
    return %c0_i32, %c0_i32_0, %c0_i32_1 : i32, i32, i32
  }
  func.func @transform_8(%arg0: i32) -> (i32, i32, i32) {
    %c0_i32 = arith.constant 0 : i32
    %c0_i32_0 = arith.constant 0 : i32
    %c0_i32_1 = arith.constant 0 : i32
    %c0_i32_2 = arith.constant 0 : i32
    return %c0_i32, %c0_i32_0, %c0_i32_1 : i32, i32, i32
  }
  func.func @transform_9(%arg0: i32) -> (i32, i32, i32) {
    %c0_i32 = arith.constant 0 : i32
    %c0_i32_0 = arith.constant 0 : i32
    %c0_i32_1 = arith.constant 0 : i32
    %c0_i32_2 = arith.constant 0 : i32
    return %c0_i32, %c0_i32_0, %c0_i32_1 : i32, i32, i32
  }
  func.func @transform_10(%arg0: i32) -> (i32, i32) {
    %c0_i32 = arith.constant 0 : i32
    %c0_i32_0 = arith.constant 0 : i32
    %c0_i32_1 = arith.constant 0 : i32
    return %c0_i32, %c0_i32_0 : i32, i32
  }
  func.func @transform_11(%arg0: i32) -> (i32, i32) {
    %c0_i32 = arith.constant 0 : i32
    %c0_i32_0 = arith.constant 0 : i32
    %c0_i32_1 = arith.constant 0 : i32
    return %c0_i32, %c0_i32_0 : i32, i32
  }
  func.func @transform_12(%arg0: i32) -> (i32, i32) {
    %c0_i32 = arith.constant 0 : i32
    %c0_i32_0 = arith.constant 0 : i32
    %c0_i32_1 = arith.constant 0 : i32
    return %c0_i32, %c0_i32_0 : i32, i32
  }
  func.func @transform_13(%arg0: i32) -> (i32, i32) {
    %c0_i32 = arith.constant 0 : i32
    %c0_i32_0 = arith.constant 0 : i32
    %c0_i32_1 = arith.constant 0 : i32
    return %c0_i32, %c0_i32_0 : i32, i32
  }
  func.func @transform_14(%arg0: i32) -> (i32, i32) {
    %c0_i32 = arith.constant 0 : i32
    %c0_i32_0 = arith.constant 0 : i32
    %c0_i32_1 = arith.constant 0 : i32
    return %c0_i32, %c0_i32_0 : i32, i32
  }
  func.func @transform_15(%arg0: i32) -> (i32, i32, i32) {
    %c0_i32 = arith.constant 0 : i32
    %c0_i32_0 = arith.constant 0 : i32
    %c0_i32_1 = arith.constant 0 : i32
    return %arg0, %c0_i32, %c0_i32_0 : i32, i32, i32
  }
  func.func @transform_16(%arg0: i32) -> (i32, i32, i32) {
    %c0_i32 = arith.constant 0 : i32
    %c0_i32_0 = arith.constant 0 : i32
    %c0_i32_1 = arith.constant 0 : i32
    return %arg0, %c0_i32, %c0_i32_0 : i32, i32, i32
  }
}

</mosaic_0001>

<llo_original>
// kernel: tpu_custom_call.1
$region0: #{tpu_custom_call.1}
  #allocation0 [shape = 'u32[]', space=smem, size = 0x4, offset = 0x4, fixed_abs, tag = 'smem constant byte address 0x4 - core index']
  #allocation1 [shape = 'u32[144,128]{1,0:T(1,128)}', space=vmem, size = 0x12000, scoped, tag = 'internal scratch']
  %s0 = inlined_call_operand.vmem [shape: f32[16,256], index: 0, kind: input, shape index: {}]
  %s1 = inlined_call_operand.vmem [shape: f32[1,128], index: 1, kind: input, shape index: {}]
  %s2 = inlined_call_operand.vmem [shape: f32[1,128], index: 2, kind: input, shape index: {}]
  %s3 = inlined_call_operand.vmem [shape: bf16[4,128,32], index: 3, kind: input, shape index: {}]
  %s4 = inlined_call_operand.vmem [shape: bf16[4,128,32], index: 4, kind: input, shape index: {}]
  %s5 = inlined_call_operand.vmem [shape: bf16[4,128,32], index: 5, kind: input, shape index: {}]
  %s6 = inlined_call_operand.vmem [shape: f32[4,1,32], index: 6, kind: input, shape index: {}]
  %s7 = inlined_call_operand.vmem [shape: f32[4,1,32], index: 7, kind: input, shape index: {}]
  %s8 = inlined_call_operand.vmem [shape: f32[4,1,32], index: 8, kind: input, shape index: {}]
  %s9 = inlined_call_operand.vmem [shape: bf16[4,32,128], index: 9, kind: input, shape index: {}]
  %s10 = inlined_call_operand.vmem [shape: f32[1,128], index: 10, kind: input, shape index: {}]
  %s11 = inlined_call_operand.vmem [shape: f32[1,128], index: 11, kind: input, shape index: {}]
  %s12 = inlined_call_operand.vmem [shape: f32[1,128], index: 12, kind: input, shape index: {}]
  %s13 = inlined_call_operand.vmem [shape: bf16[128,128], index: 13, kind: input, shape index: {}]
  %s14 = inlined_call_operand.vmem [shape: f32[1,128], index: 14, kind: input, shape index: {}]
  %s15 = inlined_call_operand.hbm [shape: f32[2,16,128], index: 15, kind: output, shape index: {0}]
  %s16 = inlined_call_operand.hbm [shape: bf16[2,16,128], index: 16, kind: output, shape index: {1}]
  %17 = xla_tuple %s15, %s16
  %s18 = sld [smem:[#allocation0]]
  $region139: #{tpu_custom_call.1} parent=0
    _
  %s20 = ssub.s32 1, %s18
  %s21 = scalar_select 0, %s20, %s18
  $region1: #{tpu_custom_call.1} parent=0
    #allocation2 [shape = 'u8[16384]{0}', space=vmem, size = 0x4000, scoped, tag = 'input window, operand 0']
    #allocation3 [shape = 'u8[16384]{0}', space=vmem, size = 0x4000, scoped, tag = 'output window, operand 0']
    #allocation4 [shape = 's32[2]{0}', space=sflag, size = 0x8, scoped, tag = 'scoped memory for tpu_custom_call.1']
    #allocation5 [shape = 'u8[8192]{0}', space=vmem, size = 0x2000, scoped, tag = 'output window, operand 1']
    #allocation6 [shape = 's32[2]{0}', space=sflag, size = 0x8, scoped, tag = 'scoped memory for tpu_custom_call.1']
    %22 = vsyncpa [#allocation4], 0
    %s23 = scalar_lea.sflag [#allocation4], 1
    %24 = vsyncpa %s23, 0
    %25 = vsyncpa [#allocation6], 0
    %s26 = scalar_lea.sflag [#allocation6], 1
    %27 = vsyncpa %s26, 0
    loop: start=0, step=1, limit=4
    $region2: #{tpu_custom_call.1} parent=1 // loop_pre_header
      _
    $region3: #{tpu_custom_call.1} parent=1 // loop_header
      %s29 = sphi 0, %s33
      %p30 = scmp.ge.s32.totalorder %s29, 4
      %s39 = sphi 0, %s41
      %s42 = sphi 0, %s39
      %s43 = sphi 0, %s42
      %s59 = sphi 0, %s43
      %s63 = sphi 0, %s63
      %s65 = sphi 0, %s63
      %s66 = sphi 0, %s65
      %s80 = sphi 0, %s66
      %s84 = sphi 0, %s84
      %s86 = sphi 0, %s84
      %s87 = sphi 0, %s86
      %s101 = sphi 0, %s87
      %s105 = sphi 0, %s105
      %s107 = sphi 0, %s105
      %s108 = sphi 0, %s107
      %s122 = sphi 0, %s108
      %s126 = sphi 0, %s126
      %s128 = sphi 0, %s126
      %s129 = sphi 0, %s128
      %s143 = sphi 0, %s129
      %s147 = sphi 0, %s147
      %s149 = sphi 0, %s147
      %s150 = sphi 0, %s149
      %s164 = sphi 0, %s150
      %s168 = sphi 0, %s168
      %s170 = sphi 0, %s168
      %s171 = sphi 0, %s170
      %s185 = sphi 0, %s171
      %s189 = sphi 0, %s189
      %s191 = sphi 0, %s189
      %s192 = sphi 0, %s191
      %s206 = sphi 0, %s192
      %s210 = sphi 0, %s210
      %s212 = sphi 0, %s210
      %s213 = sphi 0, %s212
      %s227 = sphi 0, %s213
      %s231 = sphi 0, %s231
      %s233 = sphi 0, %s231
      %s234 = sphi 0, %s233
      %s248 = sphi 0, %s234
      %s252 = sphi 0, %s252
      %s254 = sphi 0, %s252
      %s255 = sphi 0, %s254
      %s269 = sphi 0, %s255
      %s273 = sphi 0, %s273
      %s275 = sphi 0, %s273
      %s276 = sphi 0, %s275
      %s290 = sphi 0, %s276
      %s294 = sphi 0, %s294
      %s296 = sphi 0, %s294
      %s297 = sphi 0, %s296
      %s311 = sphi 0, %s297
      %s315 = sphi 0, %s315
      %s317 = sphi 0, %s315
      %s318 = sphi 0, %s317
      %s332 = sphi 0, %s318
      %s336 = sphi 0, %s336
      %s338 = sphi 0, %s336
      %s339 = sphi 0, %s338
      %s353 = sphi 0, %s339
      %s359 = sphi 0, %s361
      %s362 = sphi 0, %s359
      %s363 = sphi 0, %s362
      %s379 = sphi 0, %s363
      %s385 = sphi 0, %s387
      %s388 = sphi 0, %s385
      %s389 = sphi 0, %s388
      %s405 = sphi 0, %s389
    $region4: #{tpu_custom_call.1} parent=1 // loop_header_branch
      %32 = sbr.rel (%p30) target = $region8
    $region5: #{tpu_custom_call.1} parent=1 // loop_body
      %s34 = ssub.s32 %s29, 1
      %s35 = ssub.s32 %s29, 2
      %s36 = sadd.s32 %s29, 1
      %s37 = ssub.s32 %s29, %s36
      %p38 = scmp.eq.s32.totalorder %s37, 0
      %s40 = sadd.s32 %s39, 1
      %s41 = scalar_select %p38, %s39, %s40
      %p44 = pneg %p38
      %p45 = scmp.eq.s32.totalorder %s29, 1
      %p46 = por %p44, %p45
      %p47 = scmp.ne.s32.totalorder %s39, %s42
      %p48 = scmp.eq.s32.totalorder %s29, 0
      %p49 = por %p47, %p48
      %p50 = scmp.ne.s32.totalorder %s39, %s42
      %p51 = scmp.eq.s32.totalorder %s34, 1
      %p52 = por %p50, %p51
      %p53 = scmp.ne.s32.totalorder %s42, %s43
      %p54 = scmp.eq.s32.totalorder %s34, 0
      %p55 = por %p53, %p54
      %p56 = scmp.ne.s32.totalorder %s42, %s43
      %p57 = scmp.eq.s32.totalorder %s35, 1
      %p58 = por %p56, %p57
      %p60 = scmp.ne.s32.totalorder %s43, %s59
      %p61 = scmp.eq.s32.totalorder %s35, 0
      %p62 = por %p60, %p61
      %s64 = sadd.s32 %s63, 1
      %p67 = scmp.eq.s32.totalorder %s29, 1
      %p68 = scmp.ne.s32.totalorder %s63, %s65
      %p69 = scmp.eq.s32.totalorder %s29, 0
      %p70 = por %p68, %p69
      %p71 = scmp.ne.s32.totalorder %s63, %s65
      %p72 = scmp.eq.s32.totalorder %s34, 1
      %p73 = por %p71, %p72
      %p74 = scmp.ne.s32.totalorder %s65, %s66
      %p75 = scmp.eq.s32.totalorder %s34, 0
      %p76 = por %p74, %p75
      %p77 = scmp.ne.s32.totalorder %s65, %s66
      %p78 = scmp.eq.s32.totalorder %s35, 1
      %p79 = por %p77, %p78
      %p81 = scmp.ne.s32.totalorder %s66, %s80
      %p82 = scmp.eq.s32.totalorder %s35, 0
      %p83 = por %p81, %p82
      %s85 = sadd.s32 %s84, 1
      %p88 = scmp.eq.s32.totalorder %s29, 1
      %p89 = scmp.ne.s32.totalorder %s84, %s86
      %p90 = scmp.eq.s32.totalorder %s29, 0
      %p91 = por %p89, %p90
      %p92 = scmp.ne.s32.totalorder %s84, %s86
      %p93 = scmp.eq.s32.totalorder %s34, 1
      %p94 = por %p92, %p93
      %p95 = scmp.ne.s32.totalorder %s86, %s87
      %p96 = scmp.eq.s32.totalorder %s34, 0
      %p97 = por %p95, %p96
      %p98 = scmp.ne.s32.totalorder %s86, %s87
      %p99 = scmp.eq.s32.totalorder %s35, 1
      %p100 = por %p98, %p99
      %p102 = scmp.ne.s32.totalorder %s87, %s101
      %p103 = scmp.eq.s32.totalorder %s35, 0
      %p104 = por %p102, %p103
      %s106 = sadd.s32 %s105, 1
      %p109 = scmp.eq.s32.totalorder %s29, 1
      %p110 = scmp.ne.s32.totalorder %s105, %s107
      %p111 = scmp.eq.s32.totalorder %s29, 0
      %p112 = por %p110, %p111
      %p113 = scmp.ne.s32.totalorder %s105, %s107
      %p114 = scmp.eq.s32.totalorder %s34, 1
      %p115 = por %p113, %p114
      %p116 = scmp.ne.s32.totalorder %s107, %s108
      %p117 = scmp.eq.s32.totalorder %s34, 0
      %p118 = por %p116, %p117
      %p119 = scmp.ne.s32.totalorder %s107, %s108
      %p120 = scmp.eq.s32.totalorder %s35, 1
      %p121 = por %p119, %p120
      %p123 = scmp.ne.s32.totalorder %s108, %s122
      %p124 = scmp.eq.s32.totalorder %s35, 0
      %p125 = por %p123, %p124
      %s127 = sadd.s32 %s126, 1
      %p130 = scmp.eq.s32.totalorder %s29, 1
      %p131 = scmp.ne.s32.totalorder %s126, %s128
      %p132 = scmp.eq.s32.totalorder %s29, 0
      %p133 = por %p131, %p132
      %p134 = scmp.ne.s32.totalorder %s126, %s128
      %p135 = scmp.eq.s32.totalorder %s34, 1
      %p136 = por %p134, %p135
      %p137 = scmp.ne.s32.totalorder %s128, %s129
      %p138 = scmp.eq.s32.totalorder %s34, 0
      %p139 = por %p137, %p138
      %p140 = scmp.ne.s32.totalorder %s128, %s129
      %p141 = scmp.eq.s32.totalorder %s35, 1
      %p142 = por %p140, %p141
      %p144 = scmp.ne.s32.totalorder %s129, %s143
      %p145 = scmp.eq.s32.totalorder %s35, 0
      %p146 = por %p144, %p145
      %s148 = sadd.s32 %s147, 1
      %p151 = scmp.eq.s32.totalorder %s29, 1
      %p152 = scmp.ne.s32.totalorder %s147, %s149
      %p153 = scmp.eq.s32.totalorder %s29, 0
      %p154 = por %p152, %p153
      %p155 = scmp.ne.s32.totalorder %s147, %s149
      %p156 = scmp.eq.s32.totalorder %s34, 1
      %p157 = por %p155, %p156
      %p158 = scmp.ne.s32.totalorder %s149, %s150
      %p159 = scmp.eq.s32.totalorder %s34, 0
      %p160 = por %p158, %p159
      %p161 = scmp.ne.s32.totalorder %s149, %s150
      %p162 = scmp.eq.s32.totalorder %s35, 1
      %p163 = por %p161, %p162
      %p165 = scmp.ne.s32.totalorder %s150, %s164
      %p166 = scmp.eq.s32.totalorder %s35, 0
      %p167 = por %p165, %p166
      %s169 = sadd.s32 %s168, 1
      %p172 = scmp.eq.s32.totalorder %s29, 1
      %p173 = scmp.ne.s32.totalorder %s168, %s170
      %p174 = scmp.eq.s32.totalorder %s29, 0
      %p175 = por %p173, %p174
      %p176 = scmp.ne.s32.totalorder %s168, %s170
      %p177 = scmp.eq.s32.totalorder %s34, 1
      %p178 = por %p176, %p177
      %p179 = scmp.ne.s32.totalorder %s170, %s171
      %p180 = scmp.eq.s32.totalorder %s34, 0
      %p181 = por %p179, %p180
      %p182 = scmp.ne.s32.totalorder %s170, %s171
      %p183 = scmp.eq.s32.totalorder %s35, 1
      %p184 = por %p182, %p183
      %p186 = scmp.ne.s32.totalorder %s171, %s185
      %p187 = scmp.eq.s32.totalorder %s35, 0
      %p188 = por %p186, %p187
      %s190 = sadd.s32 %s189, 1
      %p193 = scmp.eq.s32.totalorder %s29, 1
      %p194 = scmp.ne.s32.totalorder %s189, %s191
      %p195 = scmp.eq.s32.totalorder %s29, 0
      %p196 = por %p194, %p195
      %p197 = scmp.ne.s32.totalorder %s189, %s191
      %p198 = scmp.eq.s32.totalorder %s34, 1
      %p199 = por %p197, %p198
      %p200 = scmp.ne.s32.totalorder %s191, %s192
      %p201 = scmp.eq.s32.totalorder %s34, 0
      %p202 = por %p200, %p201
      %p203 = scmp.ne.s32.totalorder %s191, %s192
      %p204 = scmp.eq.s32.totalorder %s35, 1
      %p205 = por %p203, %p204
      %p207 = scmp.ne.s32.totalorder %s192, %s206
      %p208 = scmp.eq.s32.totalorder %s35, 0
      %p209 = por %p207, %p208
      %s211 = sadd.s32 %s210, 1
      %p214 = scmp.eq.s32.totalorder %s29, 1
      %p215 = scmp.ne.s32.totalorder %s210, %s212
      %p216 = scmp.eq.s32.totalorder %s29, 0
      %p217 = por %p215, %p216
      %p218 = scmp.ne.s32.totalorder %s210, %s212
      %p219 = scmp.eq.s32.totalorder %s34, 1
      %p220 = por %p218, %p219
      %p221 = scmp.ne.s32.totalorder %s212, %s213
      %p222 = scmp.eq.s32.totalorder %s34, 0
      %p223 = por %p221, %p222
      %p224 = scmp.ne.s32.totalorder %s212, %s213
      %p225 = scmp.eq.s32.totalorder %s35, 1
      %p226 = por %p224, %p225
      %p228 = scmp.ne.s32.totalorder %s213, %s227
      %p229 = scmp.eq.s32.totalorder %s35, 0
      %p230 = por %p228, %p229
      %s232 = sadd.s32 %s231, 1
      %p235 = scmp.eq.s32.totalorder %s29, 1
      %p236 = scmp.ne.s32.totalorder %s231, %s233
      %p237 = scmp.eq.s32.totalorder %s29, 0
      %p238 = por %p236, %p237
      %p239 = scmp.ne.s32.totalorder %s231, %s233
      %p240 = scmp.eq.s32.totalorder %s34, 1
      %p241 = por %p239, %p240
      %p242 = scmp.ne.s32.totalorder %s233, %s234
      %p243 = scmp.eq.s32.totalorder %s34, 0
      %p244 = por %p242, %p243
      %p245 = scmp.ne.s32.totalorder %s233, %s234
      %p246 = scmp.eq.s32.totalorder %s35, 1
      %p247 = por %p245, %p246
      %p249 = scmp.ne.s32.totalorder %s234, %s248
      %p250 = scmp.eq.s32.totalorder %s35, 0
      %p251 = por %p249, %p250
      %s253 = sadd.s32 %s252, 1
      %p256 = scmp.eq.s32.totalorder %s29, 1
      %p257 = scmp.ne.s32.totalorder %s252, %s254
      %p258 = scmp.eq.s32.totalorder %s29, 0
      %p259 = por %p257, %p258
      %p260 = scmp.ne.s32.totalorder %s252, %s254
      %p261 = scmp.eq.s32.totalorder %s34, 1
      %p262 = por %p260, %p261
      %p263 = scmp.ne.s32.totalorder %s254, %s255
      %p264 = scmp.eq.s32.totalorder %s34, 0
      %p265 = por %p263, %p264
      %p266 = scmp.ne.s32.totalorder %s254, %s255
      %p267 = scmp.eq.s32.totalorder %s35, 1
      %p268 = por %p266, %p267
      %p270 = scmp.ne.s32.totalorder %s255, %s269
      %p271 = scmp.eq.s32.totalorder %s35, 0
      %p272 = por %p270, %p271
      %s274 = sadd.s32 %s273, 1
      %p277 = scmp.eq.s32.totalorder %s29, 1
      %p278 = scmp.ne.s32.totalorder %s273, %s275
      %p279 = scmp.eq.s32.totalorder %s29, 0
      %p280 = por %p278, %p279
      %p281 = scmp.ne.s32.totalorder %s273, %s275
      %p282 = scmp.eq.s32.totalorder %s34, 1
      %p283 = por %p281, %p282
      %p284 = scmp.ne.s32.totalorder %s275, %s276
      %p285 = scmp.eq.s32.totalorder %s34, 0
      %p286 = por %p284, %p285
      %p287 = scmp.ne.s32.totalorder %s275, %s276
      %p288 = scmp.eq.s32.totalorder %s35, 1
      %p289 = por %p287, %p288
      %p291 = scmp.ne.s32.totalorder %s276, %s290
      %p292 = scmp.eq.s32.totalorder %s35, 0
      %p293 = por %p291, %p292
      %s295 = sadd.s32 %s294, 1
      %p298 = scmp.eq.s32.totalorder %s29, 1
      %p299 = scmp.ne.s32.totalorder %s294, %s296
      %p300 = scmp.eq.s32.totalorder %s29, 0
      %p301 = por %p299, %p300
      %p302 = scmp.ne.s32.totalorder %s294, %s296
      %p303 = scmp.eq.s32.totalorder %s34, 1
      %p304 = por %p302, %p303
      %p305 = scmp.ne.s32.totalorder %s296, %s297
      %p306 = scmp.eq.s32.totalorder %s34, 0
      %p307 = por %p305, %p306
      %p308 = scmp.ne.s32.totalorder %s296, %s297
      %p309 = scmp.eq.s32.totalorder %s35, 1
      %p310 = por %p308, %p309
      %p312 = scmp.ne.s32.totalorder %s297, %s311
      %p313 = scmp.eq.s32.totalorder %s35, 0
      %p314 = por %p312, %p313
      %s316 = sadd.s32 %s315, 1
      %p319 = scmp.eq.s32.totalorder %s29, 1
      %p320 = scmp.ne.s32.totalorder %s315, %s317
      %p321 = scmp.eq.s32.totalorder %s29, 0
      %p322 = por %p320, %p321
      %p323 = scmp.ne.s32.totalorder %s315, %s317
      %p324 = scmp.eq.s32.totalorder %s34, 1
      %p325 = por %p323, %p324
      %p326 = scmp.ne.s32.totalorder %s317, %s318
      %p327 = scmp.eq.s32.totalorder %s34, 0
      %p328 = por %p326, %p327
      %p329 = scmp.ne.s32.totalorder %s317, %s318
      %p330 = scmp.eq.s32.totalorder %s35, 1
      %p331 = por %p329, %p330
      %p333 = scmp.ne.s32.totalorder %s318, %s332
      %p334 = scmp.eq.s32.totalorder %s35, 0
      %p335 = por %p333, %p334
      %s337 = sadd.s32 %s336, 1
      %p340 = scmp.eq.s32.totalorder %s29, 1
      %p341 = scmp.ne.s32.totalorder %s336, %s338
      %p342 = scmp.eq.s32.totalorder %s29, 0
      %p343 = por %p341, %p342
      %p344 = scmp.ne.s32.totalorder %s336, %s338
      %p345 = scmp.eq.s32.totalorder %s34, 1
      %p346 = por %p344, %p345
      %p347 = scmp.ne.s32.totalorder %s338, %s339
      %p348 = scmp.eq.s32.totalorder %s34, 0
      %p349 = por %p347, %p348
      %p350 = scmp.ne.s32.totalorder %s338, %s339
      %p351 = scmp.eq.s32.totalorder %s35, 1
      %p352 = por %p350, %p351
      %p354 = scmp.ne.s32.totalorder %s339, %s353
      %p355 = scmp.eq.s32.totalorder %s35, 0
      %p356 = por %p354, %p355
      %s357 = ssub.s32 %s29, %s36
      %p358 = scmp.eq.s32.totalorder %s357, 0
      %s360 = sadd.s32 %s359, 1
      %s361 = scalar_select %p358, %s359, %s360
      %p364 = pneg %p358
      %p365 = scmp.eq.s32.totalorder %s29, 1
      %p366 = por %p364, %p365
      %p367 = scmp.ne.s32.totalorder %s359, %s362
      %p368 = scmp.eq.s32.totalorder %s29, 0
      %p369 = por %p367, %p368
      %p370 = scmp.ne.s32.totalorder %s359, %s362
      %p371 = scmp.eq.s32.totalorder %s34, 1
      %p372 = por %p370, %p371
      %p373 = scmp.ne.s32.totalorder %s362, %s363
      %p374 = scmp.eq.s32.totalorder %s34, 0
      %p375 = por %p373, %p374
      %p376 = scmp.ne.s32.totalorder %s362, %s363
      %p377 = scmp.eq.s32.totalorder %s35, 1
      %p378 = por %p376, %p377
      %p380 = scmp.ne.s32.totalorder %s363, %s379
      %p381 = scmp.eq.s32.totalorder %s35, 0
      %p382 = por %p380, %p381
      %s383 = ssub.s32 %s29, %s36
      %p384 = scmp.eq.s32.totalorder %s383, 0
      %s386 = sadd.s32 %s385, 1
      %s387 = scalar_select %p384, %s385, %s386
      %p390 = pneg %p384
      %p391 = scmp.eq.s32.totalorder %s29, 1
      %p392 = por %p390, %p391
      %p393 = scmp.ne.s32.totalorder %s385, %s388
      %p394 = scmp.eq.s32.totalorder %s29, 0
      %p395 = por %p393, %p394
      %p396 = scmp.ne.s32.totalorder %s385, %s388
      %p397 = scmp.eq.s32.totalorder %s34, 1
      %p398 = por %p396, %p397
      %p399 = scmp.ne.s32.totalorder %s388, %s389
      %p400 = scmp.eq.s32.totalorder %s34, 0
      %p401 = por %p399, %p400
      %p402 = scmp.ne.s32.totalorder %s388, %s389
      %p403 = scmp.eq.s32.totalorder %s35, 1
      %p404 = por %p402, %p403
      %p406 = scmp.ne.s32.totalorder %s389, %s405
      %p407 = scmp.eq.s32.totalorder %s35, 0
      %p408 = por %p406, %p407
      %p409 = scmp.le.s32.totalorder 1, %s29
      %p410 = scmp.lt.s32.totalorder %s29, 3
      %p411 = pnand %p409, %p410
      %p412 = pneg %p411
      // Predicated region
      $region9: #{tpu_custom_call.1} parent=5 // pred_check
        _
      $region10: #{tpu_custom_call.1} parent=5 // pred_check_branch
        %414 = sbr.rel (%p411) target = $region12
      $region11: #{tpu_custom_call.1} parent=5 // pred_region
        %s415 = ssub.s32 %s29, 1
        // Predicated region
        $region13: #{tpu_custom_call.1} parent=11 // pred_check
          %p416 = pneg %p76
        $region14: #{tpu_custom_call.1} parent=11 // pred_check_branch
          %418 = sbr.rel (%p416) target = $region16
        $region15: #{tpu_custom_call.1} parent=11 // pred_region
          _
        $region16: #{tpu_custom_call.1} parent=11 // pred_fallthru
          _
        // Predicated region
        $region17: #{tpu_custom_call.1} parent=11 // pred_check
          %p419 = pneg %p97
        $region18: #{tpu_custom_call.1} parent=11 // pred_check_branch
          %421 = sbr.rel (%p419) target = $region20
        $region19: #{tpu_custom_call.1} parent=11 // pred_region
          _
        $region20: #{tpu_custom_call.1} parent=11 // pred_fallthru
          _
        // Predicated region
        $region21: #{tpu_custom_call.1} parent=11 // pred_check
          %p422 = pneg %p118
        $region22: #{tpu_custom_call.1} parent=11 // pred_check_branch
          %424 = sbr.rel (%p422) target = $region24
        $region23: #{tpu_custom_call.1} parent=11 // pred_region
          _
        $region24: #{tpu_custom_call.1} parent=11 // pred_fallthru
          _
        // Predicated region
        $region25: #{tpu_custom_call.1} parent=11 // pred_check
          %p425 = pneg %p139
        $region26: #{tpu_custom_call.1} parent=11 // pred_check_branch
          %427 = sbr.rel (%p425) target = $region28
        $region27: #{tpu_custom_call.1} parent=11 // pred_region
          _
        $region28: #{tpu_custom_call.1} parent=11 // pred_fallthru
          _
        // Predicated region
        $region29: #{tpu_custom_call.1} parent=11 // pred_check
          %p428 = pneg %p160
        $region30: #{tpu_custom_call.1} parent=11 // pred_check_branch
          %430 = sbr.rel (%p428) target = $region32
        $region31: #{tpu_custom_call.1} parent=11 // pred_region
          _
        $region32: #{tpu_custom_call.1} parent=11 // pred_fallthru
          _
        // Predicated region
        $region33: #{tpu_custom_call.1} parent=11 // pred_check
          %p431 = pneg %p181
        $region34: #{tpu_custom_call.1} parent=11 // pred_check_branch
          %433 = sbr.rel (%p431) target = $region36
        $region35: #{tpu_custom_call.1} parent=11 // pred_region
          _
        $region36: #{tpu_custom_call.1} parent=11 // pred_fallthru
          _
        // Predicated region
        $region37: #{tpu_custom_call.1} parent=11 // pred_check
          %p434 = pneg %p202
        $region38: #{tpu_custom_call.1} parent=11 // pred_check_branch
          %436 = sbr.rel (%p434) target = $region40
        $region39: #{tpu_custom_call.1} parent=11 // pred_region
          _
        $region40: #{tpu_custom_call.1} parent=11 // pred_fallthru
          _
        // Predicated region
        $region41: #{tpu_custom_call.1} parent=11 // pred_check
          %p437 = pneg %p223
        $region42: #{tpu_custom_call.1} parent=11 // pred_check_branch
          %439 = sbr.rel (%p437) target = $region44
        $region43: #{tpu_custom_call.1} parent=11 // pred_region
          _
        $region44: #{tpu_custom_call.1} parent=11 // pred_fallthru
          _
        // Predicated region
        $region45: #{tpu_custom_call.1} parent=11 // pred_check
          %p440 = pneg %p244
        $region46: #{tpu_custom_call.1} parent=11 // pred_check_branch
          %442 = sbr.rel (%p440) target = $region48
        $region47: #{tpu_custom_call.1} parent=11 // pred_region
          _
        $region48: #{tpu_custom_call.1} parent=11 // pred_fallthru
          _
        // Predicated region
        $region49: #{tpu_custom_call.1} parent=11 // pred_check
          %p443 = pneg %p265
        $region50: #{tpu_custom_call.1} parent=11 // pred_check_branch
          %445 = sbr.rel (%p443) target = $region52
        $region51: #{tpu_custom_call.1} parent=11 // pred_region
          _
        $region52: #{tpu_custom_call.1} parent=11 // pred_fallthru
          _
        // Predicated region
        $region53: #{tpu_custom_call.1} parent=11 // pred_check
          %p446 = pneg %p286
        $region54: #{tpu_custom_call.1} parent=11 // pred_check_branch
          %448 = sbr.rel (%p446) target = $region56
        $region55: #{tpu_custom_call.1} parent=11 // pred_region
          _
        $region56: #{tpu_custom_call.1} parent=11 // pred_fallthru
          _
        // Predicated region
        $region57: #{tpu_custom_call.1} parent=11 // pred_check
          %p449 = pneg %p307
        $region58: #{tpu_custom_call.1} parent=11 // pred_check_branch
          %451 = sbr.rel (%p449) target = $region60
        $region59: #{tpu_custom_call.1} parent=11 // pred_region
          _
        $region60: #{tpu_custom_call.1} parent=11 // pred_fallthru
          _
        // Predicated region
        $region61: #{tpu_custom_call.1} parent=11 // pred_check
          %p452 = pneg %p328
        $region62: #{tpu_custom_call.1} parent=11 // pred_check_branch
          %454 = sbr.rel (%p452) target = $region64
        $region63: #{tpu_custom_call.1} parent=11 // pred_region
          _
        $region64: #{tpu_custom_call.1} parent=11 // pred_fallthru
          _
        // Predicated region
        $region65: #{tpu_custom_call.1} parent=11 // pred_check
          %p455 = pneg %p349
        $region66: #{tpu_custom_call.1} parent=11 // pred_check_branch
          %457 = sbr.rel (%p455) target = $region68
        $region67: #{tpu_custom_call.1} parent=11 // pred_region
          _
        $region68: #{tpu_custom_call.1} parent=11 // pred_fallthru
          _
      $region12: #{tpu_custom_call.1} parent=5 // pred_fallthru
        _
      %p458 = scmp.lt.s32.totalorder %s29, 2
      // Predicated region
      $region69: #{tpu_custom_call.1} parent=5 // pred_check
        %p459 = pneg %p458
      $region70: #{tpu_custom_call.1} parent=5 // pred_check_branch
        %461 = sbr.rel (%p459) target = $region72
      $region71: #{tpu_custom_call.1} parent=5 // pred_region
        // Predicated region
        $region73: #{tpu_custom_call.1} parent=71 // pred_check
          %p462 = pneg %p49
        $region74: #{tpu_custom_call.1} parent=71 // pred_check_branch
          %464 = sbr.rel (%p462) target = $region76
        $region75: #{tpu_custom_call.1} parent=71 // pred_region
          %s465 = sand.u32 %s39, 1
          %s466 = sand.u32 %s39, 1
          %s467 = smul.addr %s466, 16
          %s468 = scalar_lea.vmem [#allocation2], %s467
          %s469 = smul.addr %s29, 8
          %s470 = scalar_lea.vmem %s0, %s469
          // Predicated region
          $region77: #{tpu_custom_call.1} parent=75 // pred_check
            _
          $region78: #{tpu_custom_call.1} parent=75 // pred_check_branch
            %472 = sbr.rel (0) target = $region80
          $region79: #{tpu_custom_call.1} parent=75 // pred_region
            // Predicated region
            $region81: #{tpu_custom_call.1} parent=79 // pred_check
              _
            $region82: #{tpu_custom_call.1} parent=79 // pred_check_branch
              %474 = sbr.rel (0) target = $region84
            $region83: #{tpu_custom_call.1} parent=79 // pred_region
              // Predicated region
              $region96: #{tpu_custom_call.1} parent=83 // pred_check
                _
              $region97: #{tpu_custom_call.1} parent=83 // pred_check_branch
                %491 = sbr.rel (0) target = $region99
              $region98: #{tpu_custom_call.1} parent=83 // pred_region
                loop: start=0, step=1, limit=1
                $region100: #{tpu_custom_call.1} parent=98 // loop_pre_header
                  _
                $region101: #{tpu_custom_call.1} parent=98 // loop_header
                  %s493 = sphi 0, %s497
                  %p494 = scmp.ge.s32.totalorder %s493, 1
                  %s498 = sphi %s470, %s470
                  %s499 = sphi %s468, %s468
                $region102: #{tpu_custom_call.1} parent=98 // loop_header_branch
                  %496 = sbr.rel (%p494) target = $region106
                $region103: #{tpu_custom_call.1} parent=98 // loop_body
                  %v500 = vld [vmem:[%s498] sm:$0xff]
                  %501 = vst [vmem:[%s499] sm:$0xff] %v500
                  %v502 = vld [vmem:[%s498 + $0x10] sm:$0xff]
                  %503 = vst [vmem:[%s499 + $0x8] sm:$0xff] %v502
                $region104: #{tpu_custom_call.1} parent=98 // loop_footer
                  %s497 = sadd.s32 1, %s493
                $region105: #{tpu_custom_call.1} parent=98 // loop_footer_branch
                  %492 = sbr.rel target = $region101
                $region106: #{tpu_custom_call.1} parent=98 // loop_exit
                  _
              $region99: #{tpu_custom_call.1} parent=83 // pred_fallthru
                _
              // Predicated region
              $region107: #{tpu_custom_call.1} parent=83 // pred_check
                _
              $region108: #{tpu_custom_call.1} parent=83 // pred_check_branch
                %505 = sbr.rel target = $region110
              $region109: #{tpu_custom_call.1} parent=83 // pred_region
                _
              $region110: #{tpu_custom_call.1} parent=83 // pred_fallthru
                _
            $region84: #{tpu_custom_call.1} parent=79 // pred_fallthru
              _
            // Predicated region
            $region85: #{tpu_custom_call.1} parent=79 // pred_check
              _
            $region86: #{tpu_custom_call.1} parent=79 // pred_check_branch
              %476 = sbr.rel target = $region88
            $region87: #{tpu_custom_call.1} parent=79 // pred_region
              loop: start=0, step=1, limit=1
              $region89: #{tpu_custom_call.1} parent=87 // loop_pre_header
                _
              $region90: #{tpu_custom_call.1} parent=87 // loop_header
                %s479 = sphi 0, %s483
                %p480 = scmp.ge.s32.totalorder %s479, 1
                %s484 = sphi %s470, %s470
                %s485 = sphi %s468, %s468
              $region91: #{tpu_custom_call.1} parent=87 // loop_header_branch
                %482 = sbr.rel (%p480) target = $region95
              $region92: #{tpu_custom_call.1} parent=87 // loop_body
                %v486 = vld [vmem:[%s484] sm:$0xff]
                %487 = vst [vmem:[%s485] sm:$0xff] %v486
                %v488 = vld [vmem:[%s484 + $0x10] sm:$0xff]
                %489 = vst [vmem:[%s485 + $0x8] sm:$0xff] %v488
              $region93: #{tpu_custom_call.1} parent=87 // loop_footer
                %s483 = sadd.s32 1, %s479
              $region94: #{tpu_custom_call.1} parent=87 // loop_footer_branch
                %478 = sbr.rel target = $region90
              $region95: #{tpu_custom_call.1} parent=87 // loop_exit
                _
            $region88: #{tpu_custom_call.1} parent=79 // pred_fallthru
              _
          $region80: #{tpu_custom_call.1} parent=75 // pred_fallthru
            _
          %506 = vnop
        $region76: #{tpu_custom_call.1} parent=71 // pred_fallthru
          _
      $region72: #{tpu_custom_call.1} parent=5 // pred_fallthru
        _
      %p507 = scmp.le.s32.totalorder 1, %s29
      %p508 = scmp.lt.s32.totalorder %s29, 3
      %p509 = pnand %p507, %p508
      %p510 = pneg %p509
      // Predicated region
      $region111: #{tpu_custom_call.1} parent=5 // pred_check
        _
      $region112: #{tpu_custom_call.1} parent=5 // pred_check_branch
        %512 = sbr.rel (%p509) target = $region114
      $region113: #{tpu_custom_call.1} parent=5 // pred_region
        %s513 = ssub.s32 %s29, 1
        %s514 = sand.u32 %s42, 1
        %s515 = sand.u32 %s42, 1
        %s516 = smul.addr %s515, 16
        %s517 = scalar_lea.vmem [#allocation2], %s516
        // Predicated region
        $region115: #{tpu_custom_call.1} parent=113 // pred_check
          %p518 = pneg %p55
        $region116: #{tpu_custom_call.1} parent=113 // pred_check_branch
          %520 = sbr.rel (%p518) target = $region118
        $region117: #{tpu_custom_call.1} parent=113 // pred_region
          _
        $region118: #{tpu_custom_call.1} parent=113 // pred_fallthru
          _
        %s521 = sand.u32 %s42, 1
        %s522 = sand.u32 %s42, 1
        %s523 = smul.addr %s522, 16
        %s524 = scalar_lea.vmem [#allocation2], %s523
        %p525 = pneg %p55
        %p526 = pneg %p52
        %p527 = pneg %p76
        %p528 = pneg %p73
        %p529 = pneg %p97
        %p530 = pneg %p94
        %p531 = pneg %p118
        %p532 = pneg %p115
        %p533 = pneg %p139
        %p534 = pneg %p136
        %p535 = pneg %p160
        %p536 = pneg %p157
        %p537 = pneg %p181
        %p538 = pneg %p178
        %p539 = pneg %p202
        %p540 = pneg %p199
        %p541 = pneg %p223
        %p542 = pneg %p220
        %p543 = pneg %p244
        %p544 = pneg %p241
        %p545 = pneg %p265
        %p546 = pneg %p262
        %p547 = pneg %p286
        %p548 = pneg %p283
        %p549 = pneg %p307
        %p550 = pneg %p304
        %p551 = pneg %p328
        %p552 = pneg %p325
        %p553 = pneg %p349
        %p554 = pneg %p346
        %p555 = pneg %p375
        %p556 = pneg %p372
        %s557 = sand.u32 %s362, 1
        %s558 = scalar_lea.sflag [#allocation4], %s557
        %s559 = sand.u32 %s362, 1
        %s560 = smul.addr %s559, 16
        %s561 = scalar_lea.vmem [#allocation3], %s560
        %p562 = pneg %p401
        %p563 = pneg %p398
        %s564 = sand.u32 %s388, 1
        %s565 = scalar_lea.sflag [#allocation6], %s564
        %s566 = sand.u32 %s388, 1
        %s567 = smul.addr %s566, 8
        %s568 = scalar_lea.vmem [#allocation5], %s567
        %v570 = vld [vmem:[%s517] sm:$0xff]
        %v571 = vld [vmem:[%s517 + $0x8] sm:$0xff]
        %v572 = vld [vmem:[%s1] sm:$0x1]
        %v573 = vld [vmem:[%s2] sm:$0x1]
        %574 = vadd.xlane.f32.xlu0 %v570
        %v575 = vpop.xlane.xlu0 %574
        %576 = vadd.xlane.f32.xlu0 %v571
        %v577 = vpop.xlane.xlu0 %576
        %v578 = vrcp.pop 128.0
        %v579 = vmul.f32 %v575, %v578
        %v580 = vmul.f32 %v577, %v578
        %v581 = vsub.f32 %v570, %v579
        %v582 = vsub.f32 %v571, %v580
        %v583 = vmul.f32 %v581, %v581
        %v584 = vmul.f32 %v582, %v582
        %585 = vadd.xlane.f32.xlu0 %v583
        %v586 = vpop.xlane.xlu0 %585
        %587 = vadd.xlane.f32.xlu0 %v584
        %v588 = vpop.xlane.xlu0 %587
        %v589 = vmul.f32 %v586, %v578
        %v590 = vmul.f32 %v588, %v578
        %v591 = vadd.f32 %v589, 1e-05
        %v592 = vadd.f32 %v590, 1e-05
        %v593 = vrsqrt.pop %v591
        %v594 = vrsqrt.pop %v592
        %v595 = vmul.f32 %v581, %v593
        %v596 = vmul.f32 %v582, %v594
        %v598 = vlaneseq
        %v599 = vshrl.u32 %v598, 7
        %v600 = vsub.s32 0, %v599
        %v601 = vrot.slane %v572, %v600
        %v603 = vmul.f32 %v595, %v601
        %v604 = vmul.f32 %v596, %v601
        %v606 = vlaneseq
        %v607 = vshrl.u32 %v606, 7
        %v608 = vsub.s32 0, %v607
        %v609 = vrot.slane %v573, %v608
        %v611 = vadd.f32 %v603, %v609
        %v612 = vadd.f32 %v604, %v609
        %v613 = vpack.c.bf16 %v612, %v611
        %v614 = vld [vmem:[%s10] sm:$0x1]
        %v615 = vld [vmem:[%s3] sm:$0xf]
        %v616 = vld [vmem:[%s3 + $0x4] sm:$0xf]
        %v617 = vld [vmem:[%s3 + $0x8] sm:$0xf]
        %v618 = vld [vmem:[%s3 + $0xc] sm:$0xf]
        %v619 = vld [vmem:[%s3 + $0x10] sm:$0xf]
        %v620 = vld [vmem:[%s3 + $0x14] sm:$0xf]
        %v621 = vld [vmem:[%s3 + $0x18] sm:$0xf]
        %v622 = vld [vmem:[%s3 + $0x1c] sm:$0xf]
        %v623 = vld [vmem:[%s3 + $0x20] sm:$0xf]
        %v624 = vld [vmem:[%s3 + $0x24] sm:$0xf]
        %v625 = vld [vmem:[%s3 + $0x28] sm:$0xf]
        %v626 = vld [vmem:[%s3 + $0x2c] sm:$0xf]
        %v627 = vld [vmem:[%s3 + $0x30] sm:$0xf]
        %v628 = vld [vmem:[%s3 + $0x34] sm:$0xf]
        %v629 = vld [vmem:[%s3 + $0x38] sm:$0xf]
        %v630 = vld [vmem:[%s3 + $0x3c] sm:$0xf]
        %v631 = vld [vmem:[%s6] sm:$0x1]
        %v633 = vlaneseq
        %v634 = vshrl.u32 %v633, 7
        %v635 = vsub.s32 0, %v634
        %v636 = vrot.slane %v631, %v635
        %v654 = vunpack.c.l.b16 %v615
        %v655 = vunpack.c.l.b16 %v616
        %v656 = vunpack.c.l.b16 %v617
        %v657 = vunpack.c.l.b16 %v618
        %v658 = vunpack.c.l.b16 %v619
        %v659 = vunpack.c.l.b16 %v620
        %v660 = vunpack.c.l.b16 %v621
        %v661 = vunpack.c.l.b16 %v622
        %v662 = vunpack.c.l.b16 %v623
        %v663 = vunpack.c.l.b16 %v624
        %v664 = vunpack.c.l.b16 %v625
        %v665 = vunpack.c.l.b16 %v626
        %v666 = vunpack.c.l.b16 %v627
        %v667 = vunpack.c.l.b16 %v628
        %v668 = vunpack.c.l.b16 %v629
        %v669 = vunpack.c.l.b16 %v630
        %v670 = vpack.c.b16 %v655, %v654
        %v671 = vpack.c.b16 %v657, %v656
        %v672 = vpack.c.b16 %v659, %v658
        %v673 = vpack.c.b16 %v661, %v660
        %v674 = vpack.c.b16 %v663, %v662
        %v675 = vpack.c.b16 %v665, %v664
        %v676 = vpack.c.b16 %v667, %v666
        %v677 = vpack.c.b16 %v669, %v668
        %686 = vmatprep.subr.bf16.mxu0 0
        %687 = vmatpush1.bf16.msra.mxu0 %v670
        %688 = vmatprep.subr.bf16.mxu0 0
        %689 = vmatpush1.bf16.msra.mxu0 %v671
        %690 = vmatprep.subr.bf16.mxu0 0
        %691 = vmatpush1.bf16.msra.mxu0 %v672
        %692 = vmatprep.subr.bf16.mxu0 0
        %693 = vmatpush1.bf16.msra.mxu0 %v673
        %694 = vmatprep.subr.bf16.mxu0 0
        %695 = vmatpush1.bf16.msra.mxu0 %v674
        %696 = vmatprep.subr.bf16.mxu0 0
        %697 = vmatpush1.bf16.msra.mxu0 %v675
        %698 = vmatprep.subr.bf16.mxu0 0
        %699 = vmatpush1.bf16.msra.mxu0 %v676
        %700 = vmatprep.subr.bf16.mxu0 0
        %701 = vmatpush1.bf16.msra.mxu0 %v677
        %702 = vmatprep.subr.bf16.mxu0 0
        %703 = vmatpush1.bf16.msra.mxu0 0
        %704 = vmatprep.subr.bf16.mxu0 0
        %705 = vmatpush1.bf16.msra.mxu0 0
        %706 = vmatprep.subr.bf16.mxu0 0
        %707 = vmatpush1.bf16.msra.mxu0 0
        %708 = vmatprep.subr.bf16.mxu0 0
        %709 = vmatpush1.bf16.msra.mxu0 0
        %710 = vmatprep.subr.bf16.mxu0 0
        %711 = vmatpush1.bf16.msra.mxu0 0
        %712 = vmatprep.subr.bf16.mxu0 0
        %713 = vmatpush1.bf16.msra.mxu0 0
        %714 = vmatprep.subr.bf16.mxu0 0
        %715 = vmatpush1.bf16.msra.mxu0 0
        %716 = vmatprep.subr.bf16.mxu0 0
        %717 = vmatpush1.bf16.msra.mxu0 0
        %718 = vmatprep.mubr.bf16.mxu0 0
        %719 = vmatmul.mubr.bf16.gmra.mrb[0].mxu0 %v613
        %v720 = vpop.f32.mrb[0].mxu0
        %v721 = vadd.f32 %v636, %v720
        %v722 = vpop.f32.mrb[0].mxu0
        %v723 = vpop.f32.mrb[0].mxu0
        %v724 = vadd.f32 %v636, %v723
        %v725 = vpop.f32.mrb[0].mxu0
        %726 = vdwg.mxu0
        %v727 = vmul.f32 %v721, 0.17677669
        %v728 = vmul.f32 %v724, 0.17677669
        %v729 = vld [vmem:[%s4] sm:$0xf]
        %v730 = vld [vmem:[%s4 + $0x4] sm:$0xf]
        %v731 = vld [vmem:[%s4 + $0x8] sm:$0xf]
        %v732 = vld [vmem:[%s4 + $0xc] sm:$0xf]
        %v733 = vld [vmem:[%s4 + $0x10] sm:$0xf]
        %v734 = vld [vmem:[%s4 + $0x14] sm:$0xf]
        %v735 = vld [vmem:[%s4 + $0x18] sm:$0xf]
        %v736 = vld [vmem:[%s4 + $0x1c] sm:$0xf]
        %v737 = vld [vmem:[%s4 + $0x20] sm:$0xf]
        %v738 = vld [vmem:[%s4 + $0x24] sm:$0xf]
        %v739 = vld [vmem:[%s4 + $0x28] sm:$0xf]
        %v740 = vld [vmem:[%s4 + $0x2c] sm:$0xf]
        %v741 = vld [vmem:[%s4 + $0x30] sm:$0xf]
        %v742 = vld [vmem:[%s4 + $0x34] sm:$0xf]
        %v743 = vld [vmem:[%s4 + $0x38] sm:$0xf]
        %v744 = vld [vmem:[%s4 + $0x3c] sm:$0xf]
        %v745 = vld [vmem:[%s7] sm:$0x1]
        %v747 = vlaneseq
        %v748 = vshrl.u32 %v747, 7
        %v749 = vsub.s32 0, %v748
        %v750 = vrot.slane %v745, %v749
        %v768 = vunpack.c.l.b16 %v729
        %v769 = vunpack.c.l.b16 %v730
        %v770 = vunpack.c.l.b16 %v731
        %v771 = vunpack.c.l.b16 %v732
        %v772 = vunpack.c.l.b16 %v733
        %v773 = vunpack.c.l.b16 %v734
        %v774 = vunpack.c.l.b16 %v735
        %v775 = vunpack.c.l.b16 %v736
        %v776 = vunpack.c.l.b16 %v737
        %v777 = vunpack.c.l.b16 %v738
        %v778 = vunpack.c.l.b16 %v739
        %v779 = vunpack.c.l.b16 %v740
        %v780 = vunpack.c.l.b16 %v741
        %v781 = vunpack.c.l.b16 %v742
        %v782 = vunpack.c.l.b16 %v743
        %v783 = vunpack.c.l.b16 %v744
        %v784 = vpack.c.b16 %v769, %v768
        %v785 = vpack.c.b16 %v771, %v770
        %v786 = vpack.c.b16 %v773, %v772
        %v787 = vpack.c.b16 %v775, %v774
        %v788 = vpack.c.b16 %v777, %v776
        %v789 = vpack.c.b16 %v779, %v778
        %v790 = vpack.c.b16 %v781, %v780
        %v791 = vpack.c.b16 %v783, %v782
        %800 = vmatprep.subr.bf16.mxu0 0
        %801 = vmatpush1.bf16.msra.mxu0 %v784
        %802 = vmatprep.subr.bf16.mxu0 0
        %803 = vmatpush1.bf16.msra.mxu0 %v785
        %804 = vmatprep.subr.bf16.mxu0 0
        %805 = vmatpush1.bf16.msra.mxu0 %v786
        %806 = vmatprep.subr.bf16.mxu0 0
        %807 = vmatpush1.bf16.msra.mxu0 %v787
        %808 = vmatprep.subr.bf16.mxu0 0
        %809 = vmatpush1.bf16.msra.mxu0 %v788
        %810 = vmatprep.subr.bf16.mxu0 0
        %811 = vmatpush1.bf16.msra.mxu0 %v789
        %812 = vmatprep.subr.bf16.mxu0 0
        %813 = vmatpush1.bf16.msra.mxu0 %v790
        %814 = vmatprep.subr.bf16.mxu0 0
        %815 = vmatpush1.bf16.msra.mxu0 %v791
        %816 = vmatprep.subr.bf16.mxu0 0
        %817 = vmatpush1.bf16.msra.mxu0 0
        %818 = vmatprep.subr.bf16.mxu0 0
        %819 = vmatpush1.bf16.msra.mxu0 0
        %820 = vmatprep.subr.bf16.mxu0 0
        %821 = vmatpush1.bf16.msra.mxu0 0
        %822 = vmatprep.subr.bf16.mxu0 0
        %823 = vmatpush1.bf16.msra.mxu0 0
        %824 = vmatprep.subr.bf16.mxu0 0
        %825 = vmatpush1.bf16.msra.mxu0 0
        %826 = vmatprep.subr.bf16.mxu0 0
        %827 = vmatpush1.bf16.msra.mxu0 0
        %828 = vmatprep.subr.bf16.mxu0 0
        %829 = vmatpush1.bf16.msra.mxu0 0
        %830 = vmatprep.subr.bf16.mxu0 0
        %831 = vmatpush1.bf16.msra.mxu0 0
        %832 = vmatprep.mubr.bf16.mxu0 0
        %833 = vmatmul.mubr.bf16.gmra.mrb[0].mxu0 %v613
        %v834 = vpop.f32.mrb[0].mxu0
        %v835 = vadd.f32 %v750, %v834
        %v836 = vpop.f32.mrb[0].mxu0
        %v837 = vpop.f32.mrb[0].mxu0
        %v838 = vadd.f32 %v750, %v837
        %v839 = vpop.f32.mrb[0].mxu0
        %840 = vdwg.mxu0
        %v841 = vld [vmem:[%s5] sm:$0xf]
        %v842 = vld [vmem:[%s5 + $0x4] sm:$0xf]
        %v843 = vld [vmem:[%s5 + $0x8] sm:$0xf]
        %v844 = vld [vmem:[%s5 + $0xc] sm:$0xf]
        %v845 = vld [vmem:[%s5 + $0x10] sm:$0xf]
        %v846 = vld [vmem:[%s5 + $0x14] sm:$0xf]
        %v847 = vld [vmem:[%s5 + $0x18] sm:$0xf]
        %v848 = vld [vmem:[%s5 + $0x1c] sm:$0xf]
        %v849 = vld [vmem:[%s5 + $0x20] sm:$0xf]
        %v850 = vld [vmem:[%s5 + $0x24] sm:$0xf]
        %v851 = vld [vmem:[%s5 + $0x28] sm:$0xf]
        %v852 = vld [vmem:[%s5 + $0x2c] sm:$0xf]
        %v853 = vld [vmem:[%s5 + $0x30] sm:$0xf]
        %v854 = vld [vmem:[%s5 + $0x34] sm:$0xf]
        %v855 = vld [vmem:[%s5 + $0x38] sm:$0xf]
        %v856 = vld [vmem:[%s5 + $0x3c] sm:$0xf]
        %v857 = vld [vmem:[%s8] sm:$0x1]
        %v859 = vlaneseq
        %v860 = vshrl.u32 %v859, 7
        %v861 = vsub.s32 0, %v860
        %v862 = vrot.slane %v857, %v861
        %v880 = vunpack.c.l.b16 %v841
        %v881 = vunpack.c.l.b16 %v842
        %v882 = vunpack.c.l.b16 %v843
        %v883 = vunpack.c.l.b16 %v844
        %v884 = vunpack.c.l.b16 %v845
        %v885 = vunpack.c.l.b16 %v846
        %v886 = vunpack.c.l.b16 %v847
        %v887 = vunpack.c.l.b16 %v848
        %v888 = vunpack.c.l.b16 %v849
        %v889 = vunpack.c.l.b16 %v850
        %v890 = vunpack.c.l.b16 %v851
        %v891 = vunpack.c.l.b16 %v852
        %v892 = vunpack.c.l.b16 %v853
        %v893 = vunpack.c.l.b16 %v854
        %v894 = vunpack.c.l.b16 %v855
        %v895 = vunpack.c.l.b16 %v856
        %v896 = vpack.c.b16 %v881, %v880
        %v897 = vpack.c.b16 %v883, %v882
        %v898 = vpack.c.b16 %v885, %v884
        %v899 = vpack.c.b16 %v887, %v886
        %v900 = vpack.c.b16 %v889, %v888
        %v901 = vpack.c.b16 %v891, %v890
        %v902 = vpack.c.b16 %v893, %v892
        %v903 = vpack.c.b16 %v895, %v894
        %912 = vmatprep.subr.bf16.mxu0 0
        %913 = vmatpush1.bf16.msra.mxu0 %v896
        %914 = vmatprep.subr.bf16.mxu0 0
        %915 = vmatpush1.bf16.msra.mxu0 %v897
        %916 = vmatprep.subr.bf16.mxu0 0
        %917 = vmatpush1.bf16.msra.mxu0 %v898
        %918 = vmatprep.subr.bf16.mxu0 0
        %919 = vmatpush1.bf16.msra.mxu0 %v899
        %920 = vmatprep.subr.bf16.mxu0 0
        %921 = vmatpush1.bf16.msra.mxu0 %v900
        %922 = vmatprep.subr.bf16.mxu0 0
        %923 = vmatpush1.bf16.msra.mxu0 %v901
        %924 = vmatprep.subr.bf16.mxu0 0
        %925 = vmatpush1.bf16.msra.mxu0 %v902
        %926 = vmatprep.subr.bf16.mxu0 0
        %927 = vmatpush1.bf16.msra.mxu0 %v903
        %928 = vmatprep.subr.bf16.mxu0 0
        %929 = vmatpush1.bf16.msra.mxu0 0
        %930 = vmatprep.subr.bf16.mxu0 0
        %931 = vmatpush1.bf16.msra.mxu0 0
        %932 = vmatprep.subr.bf16.mxu0 0
        %933 = vmatpush1.bf16.msra.mxu0 0
        %934 = vmatprep.subr.bf16.mxu0 0
        %935 = vmatpush1.bf16.msra.mxu0 0
        %936 = vmatprep.subr.bf16.mxu0 0
        %937 = vmatpush1.bf16.msra.mxu0 0
        %938 = vmatprep.subr.bf16.mxu0 0
        %939 = vmatpush1.bf16.msra.mxu0 0
        %940 = vmatprep.subr.bf16.mxu0 0
        %941 = vmatpush1.bf16.msra.mxu0 0
        %942 = vmatprep.subr.bf16.mxu0 0
        %943 = vmatpush1.bf16.msra.mxu0 0
        %944 = vmatprep.mubr.bf16.mxu0 0
        %945 = vmatmul.mubr.bf16.gmra.mrb[0].mxu0 %v613
        %v946 = vpop.f32.mrb[0].mxu0
        %v947 = vadd.f32 %v862, %v946
        %v948 = vpop.f32.mrb[0].mxu0
        %v949 = vpop.f32.mrb[0].mxu0
        %v950 = vadd.f32 %v862, %v949
        %v951 = vpop.f32.mrb[0].mxu0
        %952 = vdwg.mxu0
        %v953 = vpack.c.bf16 %v728, %v727
        %v954 = vpack.c.bf16 %v838, %v835
        %vm955 = vcmask 261120
        %v957 = vsel %vm955, %v953, 0
        %v960 = vsel %vm955, %v954, 0
        %962 = vmatprep.subr.bf16.mxu0 0
        %963 = vmatpush1.bf16.xpose.msra.mxu0 %v960
        %964 = vmatprep.subr.bf16.mxu0 0
        %965 = vmatpush1.bf16.xpose.msra.mxu0 0
        %966 = vmatprep.subr.bf16.mxu0 0
        %967 = vmatpush1.bf16.xpose.msra.mxu0 0
        %968 = vmatprep.subr.bf16.mxu0 0
        %969 = vmatpush1.bf16.xpose.msra.mxu0 0
        %970 = vmatprep.subr.bf16.mxu0 0
        %971 = vmatpush1.bf16.xpose.msra.mxu0 0
        %972 = vmatprep.subr.bf16.mxu0 0
        %973 = vmatpush1.bf16.xpose.msra.mxu0 0
        %974 = vmatprep.subr.bf16.mxu0 0
        %975 = vmatpush1.bf16.xpose.msra.mxu0 0
        %976 = vmatprep.subr.bf16.mxu0 0
        %977 = vmatpush1.bf16.xpose.msra.mxu0 0
        %978 = vmatprep.subr.bf16.mxu0 0
        %979 = vmatpush1.bf16.xpose.msra.mxu0 0
        %980 = vmatprep.subr.bf16.mxu0 0
        %981 = vmatpush1.bf16.xpose.msra.mxu0 0
        %982 = vmatprep.subr.bf16.mxu0 0
        %983 = vmatpush1.bf16.xpose.msra.mxu0 0
        %984 = vmatprep.subr.bf16.mxu0 0
        %985 = vmatpush1.bf16.xpose.msra.mxu0 0
        %986 = vmatprep.subr.bf16.mxu0 0
        %987 = vmatpush1.bf16.xpose.msra.mxu0 0
        %988 = vmatprep.subr.bf16.mxu0 0
        %989 = vmatpush1.bf16.xpose.msra.mxu0 0
        %990 = vmatprep.subr.bf16.mxu0 0
        %991 = vmatpush1.bf16.xpose.msra.mxu0 0
        %992 = vmatprep.subr.bf16.mxu0 0
        %993 = vmatpush1.bf16.xpose.msra.mxu0 0
        %994 = vmatprep.mubr.bf16.mxu0 0
        %995 = vmatmul.mubr.bf16.gmra.mrb[0].mxu0 %v957
        %v996 = vpop.f32.mrb[0].mxu0
        %v997 = vadd.f32 0.0, %v996
        %v998 = vpop.f32.mrb[0].mxu0
        %v999 = vpop.f32.mrb[0].mxu0
        %v1000 = vadd.f32 0.0, %v999
        %v1001 = vpop.f32.mrb[0].mxu0
        %1002 = vdwg.mxu0
        %vm1003 = vcmask 130048
        %v1004 = vsel %vm1003, %v997, -inf
        %1005 = vmax.xlane.f32.xlu0 %v1004
        %v1006 = vpop.xlane.xlu0 %1005
        %v1007 = vsel %vm1003, %v1000, -inf
        %1008 = vmax.xlane.f32.xlu0 %v1007
        %v1009 = vpop.xlane.xlu0 %1008
        %v1010 = vsub.f32 %v997, %v1006
        %v1011 = vsub.f32 %v1000, %v1009
        %v1012 = vmul.f32 %v1010, 1.442695
        %v1013 = vpow.pop %v1012
        %v1014 = vmul.f32 %v1011, 1.442695
        %v1015 = vpow.pop %v1014
        %v1016 = vsel %vm1003, %v1013, 0.0
        %1017 = vadd.xlane.f32.xlu0 %v1016
        %v1018 = vpop.xlane.xlu0 %1017
        %v1019 = vsel %vm1003, %v1015, 0.0
        %1020 = vadd.xlane.f32.xlu0 %v1019
        %v1021 = vpop.xlane.xlu0 %1020
        %v1022 = vrcp.pop %v1018
        %v1023 = vmul.f32 %v1013, %v1022
        %v1024 = vrcp.pop %v1021
        %v1025 = vmul.f32 %v1015, %v1024
        %v1026 = vpack.c.bf16 %v1025, %v1023
        %v1027 = vpack.c.bf16 %v950, %v947
        %v1029 = vsel %vm1003, %v1026, 0
        %1031 = vmatprep.subr.bf16.mxu0 0
        %1032 = vmatpush1.bf16.msra.mxu0 %v1027
        %1033 = vmatprep.subr.bf16.mxu0 0
        %1034 = vmatpush1.bf16.msra.mxu0 0
        %1035 = vmatprep.subr.bf16.mxu0 0
        %1036 = vmatpush1.bf16.msra.mxu0 0
        %1037 = vmatprep.subr.bf16.mxu0 0
        %1038 = vmatpush1.bf16.msra.mxu0 0
        %1039 = vmatprep.subr.bf16.mxu0 0
        %1040 = vmatpush1.bf16.msra.mxu0 0
        %1041 = vmatprep.subr.bf16.mxu0 0
        %1042 = vmatpush1.bf16.msra.mxu0 0
        %1043 = vmatprep.subr.bf16.mxu0 0
        %1044 = vmatpush1.bf16.msra.mxu0 0
        %1045 = vmatprep.subr.bf16.mxu0 0
        %1046 = vmatpush1.bf16.msra.mxu0 0
        %1047 = vmatprep.subr.bf16.mxu0 0
        %1048 = vmatpush1.bf16.msra.mxu0 0
        %1049 = vmatprep.subr.bf16.mxu0 0
        %1050 = vmatpush1.bf16.msra.mxu0 0
        %1051 = vmatprep.subr.bf16.mxu0 0
        %1052 = vmatpush1.bf16.msra.mxu0 0
        %1053 = vmatprep.subr.bf16.mxu0 0
        %1054 = vmatpush1.bf16.msra.mxu0 0
        %1055 = vmatprep.subr.bf16.mxu0 0
        %1056 = vmatpush1.bf16.msra.mxu0 0
        %1057 = vmatprep.subr.bf16.mxu0 0
        %1058 = vmatpush1.bf16.msra.mxu0 0
        %1059 = vmatprep.subr.bf16.mxu0 0
        %1060 = vmatpush1.bf16.msra.mxu0 0
        %1061 = vmatprep.subr.bf16.mxu0 0
        %1062 = vmatpush1.bf16.msra.mxu0 0
        %1063 = vmatprep.mubr.bf16.mxu0 0
        %1064 = vmatmul.mubr.bf16.gmra.mrb[0].mxu0 %v1029
        %v1065 = vpop.f32.mrb[0].mxu0
        %v1066 = vadd.f32 0.0, %v1065
        %v1067 = vpop.f32.mrb[0].mxu0
        %v1068 = vpop.f32.mrb[0].mxu0
        %v1069 = vadd.f32 0.0, %v1068
        %v1070 = vpop.f32.mrb[0].mxu0
        %1071 = vdwg.mxu0
        %v1072 = vpack.c.bf16 %v1069, %v1066
        %v1073 = vld [vmem:[%s9] sm:$0xf]
        %v1074 = vld [vmem:[%s9 + $0x4] sm:$0xf]
        %v1075 = vld [vmem:[%s9 + $0x8] sm:$0xf]
        %v1076 = vld [vmem:[%s9 + $0xc] sm:$0xf]
        %v1081 = vunpack.c.l.b16 %v1073
        %v1082 = vunpack.c.l.b16 %v1074
        %v1083 = vunpack.c.l.b16 %v1075
        %v1084 = vunpack.c.l.b16 %v1076
        %v1085 = vpack.c.b16 %v1082, %v1081
        %v1086 = vpack.c.b16 %v1084, %v1083
        %v1090 = vsel %vm955, %v1072, 0
        %1092 = vmatprep.subr.bf16.mxu0 0
        %1093 = vmatpush1.bf16.msra.mxu0 %v1085
        %1094 = vmatprep.subr.bf16.mxu0 0
        %1095 = vmatpush1.bf16.msra.mxu0 %v1086
        %1096 = vmatprep.subr.bf16.mxu0 0
        %1097 = vmatpush1.bf16.msra.mxu0 0
        %1098 = vmatprep.subr.bf16.mxu0 0
        %1099 = vmatpush1.bf16.msra.mxu0 0
        %1100 = vmatprep.subr.bf16.mxu0 0
        %1101 = vmatpush1.bf16.msra.mxu0 0
        %1102 = vmatprep.subr.bf16.mxu0 0
        %1103 = vmatpush1.bf16.msra.mxu0 0
        %1104 = vmatprep.subr.bf16.mxu0 0
        %1105 = vmatpush1.bf16.msra.mxu0 0
        %1106 = vmatprep.subr.bf16.mxu0 0
        %1107 = vmatpush1.bf16.msra.mxu0 0
        %1108 = vmatprep.subr.bf16.mxu0 0
        %1109 = vmatpush1.bf16.msra.mxu0 0
        %1110 = vmatprep.subr.bf16.mxu0 0
        %1111 = vmatpush1.bf16.msra.mxu0 0
        %1112 = vmatprep.subr.bf16.mxu0 0
        %1113 = vmatpush1.bf16.msra.mxu0 0
        %1114 = vmatprep.subr.bf16.mxu0 0
        %1115 = vmatpush1.bf16.msra.mxu0 0
        %1116 = vmatprep.subr.bf16.mxu0 0
        %1117 = vmatpush1.bf16.msra.mxu0 0
        %1118 = vmatprep.subr.bf16.mxu0 0
        %1119 = vmatpush1.bf16.msra.mxu0 0
        %1120 = vmatprep.subr.bf16.mxu0 0
        %1121 = vmatpush1.bf16.msra.mxu0 0
        %1122 = vmatprep.subr.bf16.mxu0 0
        %1123 = vmatpush1.bf16.msra.mxu0 0
        %1124 = vmatprep.mubr.bf16.mxu0 0
        %1125 = vmatmul.mubr.bf16.gmra.mrb[0].mxu0 %v1090
        %v1126 = vpop.f32.mrb[0].mxu0
        %v1127 = vadd.f32 0.0, %v1126
        %v1128 = vpop.f32.mrb[0].mxu0
        %v1129 = vpop.f32.mrb[0].mxu0
        %v1130 = vadd.f32 0.0, %v1129
        %v1131 = vpop.f32.mrb[0].mxu0
        %1132 = vdwg.mxu0
        %v1134 = vlaneseq
        %v1135 = vshrl.u32 %v1134, 7
        %v1136 = vsub.s32 0, %v1135
        %v1137 = vrot.slane %v614, %v1136
        %v1139 = vadd.f32 %v1137, %v1127
        %v1140 = vadd.f32 %v1137, %v1130
        %s1141 = scalar_lea.vmem %s3, 64
        %v1142 = vld [vmem:[%s1141] sm:$0xf]
        %v1143 = vld [vmem:[%s1141 + $0x4] sm:$0xf]
        %v1144 = vld [vmem:[%s1141 + $0x8] sm:$0xf]
        %v1145 = vld [vmem:[%s1141 + $0xc] sm:$0xf]
        %v1146 = vld [vmem:[%s1141 + $0x10] sm:$0xf]
        %v1147 = vld [vmem:[%s1141 + $0x14] sm:$0xf]
        %v1148 = vld [vmem:[%s1141 + $0x18] sm:$0xf]
        %v1149 = vld [vmem:[%s1141 + $0x1c] sm:$0xf]
        %v1150 = vld [vmem:[%s1141 + $0x20] sm:$0xf]
        %v1151 = vld [vmem:[%s1141 + $0x24] sm:$0xf]
        %v1152 = vld [vmem:[%s1141 + $0x28] sm:$0xf]
        %v1153 = vld [vmem:[%s1141 + $0x2c] sm:$0xf]
        %v1154 = vld [vmem:[%s1141 + $0x30] sm:$0xf]
        %v1155 = vld [vmem:[%s1141 + $0x34] sm:$0xf]
        %v1156 = vld [vmem:[%s1141 + $0x38] sm:$0xf]
        %v1157 = vld [vmem:[%s1141 + $0x3c] sm:$0xf]
        %s1158 = scalar_lea.vmem %s6, 1
        %v1159 = vld [vmem:[%s1158] sm:$0x1]
        %v1161 = vlaneseq
        %v1162 = vshrl.u32 %v1161, 7
        %v1163 = vsub.s32 0, %v1162
        %v1164 = vrot.slane %v1159, %v1163
        %v1182 = vunpack.c.l.b16 %v1142
        %v1183 = vunpack.c.l.b16 %v1143
        %v1184 = vunpack.c.l.b16 %v1144
        %v1185 = vunpack.c.l.b16 %v1145
        %v1186 = vunpack.c.l.b16 %v1146
        %v1187 = vunpack.c.l.b16 %v1147
        %v1188 = vunpack.c.l.b16 %v1148
        %v1189 = vunpack.c.l.b16 %v1149
        %v1190 = vunpack.c.l.b16 %v1150
        %v1191 = vunpack.c.l.b16 %v1151
        %v1192 = vunpack.c.l.b16 %v1152
        %v1193 = vunpack.c.l.b16 %v1153
        %v1194 = vunpack.c.l.b16 %v1154
        %v1195 = vunpack.c.l.b16 %v1155
        %v1196 = vunpack.c.l.b16 %v1156
        %v1197 = vunpack.c.l.b16 %v1157
        %v1198 = vpack.c.b16 %v1183, %v1182
        %v1199 = vpack.c.b16 %v1185, %v1184
        %v1200 = vpack.c.b16 %v1187, %v1186
        %v1201 = vpack.c.b16 %v1189, %v1188
        %v1202 = vpack.c.b16 %v1191, %v1190
        %v1203 = vpack.c.b16 %v1193, %v1192
        %v1204 = vpack.c.b16 %v1195, %v1194
        %v1205 = vpack.c.b16 %v1197, %v1196
        %1214 = vmatprep.subr.bf16.mxu0 0
        %1215 = vmatpush1.bf16.msra.mxu0 %v1198
        %1216 = vmatprep.subr.bf16.mxu0 0
        %1217 = vmatpush1.bf16.msra.mxu0 %v1199
        %1218 = vmatprep.subr.bf16.mxu0 0
        %1219 = vmatpush1.bf16.msra.mxu0 %v1200
        %1220 = vmatprep.subr.bf16.mxu0 0
        %1221 = vmatpush1.bf16.msra.mxu0 %v1201
        %1222 = vmatprep.subr.bf16.mxu0 0
        %1223 = vmatpush1.bf16.msra.mxu0 %v1202
        %1224 = vmatprep.subr.bf16.mxu0 0
        %1225 = vmatpush1.bf16.msra.mxu0 %v1203
        %1226 = vmatprep.subr.bf16.mxu0 0
        %1227 = vmatpush1.bf16.msra.mxu0 %v1204
        %1228 = vmatprep.subr.bf16.mxu0 0
        %1229 = vmatpush1.bf16.msra.mxu0 %v1205
        %1230 = vmatprep.subr.bf16.mxu0 0
        %1231 = vmatpush1.bf16.msra.mxu0 0
        %1232 = vmatprep.subr.bf16.mxu0 0
        %1233 = vmatpush1.bf16.msra.mxu0 0
        %1234 = vmatprep.subr.bf16.mxu0 0
        %1235 = vmatpush1.bf16.msra.mxu0 0
        %1236 = vmatprep.subr.bf16.mxu0 0
        %1237 = vmatpush1.bf16.msra.mxu0 0
        %1238 = vmatprep.subr.bf16.mxu0 0
        %1239 = vmatpush1.bf16.msra.mxu0 0
        %1240 = vmatprep.subr.bf16.mxu0 0
        %1241 = vmatpush1.bf16.msra.mxu0 0
        %1242 = vmatprep.subr.bf16.mxu0 0
        %1243 = vmatpush1.bf16.msra.mxu0 0
        %1244 = vmatprep.subr.bf16.mxu0 0
        %1245 = vmatpush1.bf16.msra.mxu0 0
        %1246 = vmatprep.mubr.bf16.mxu0 0
        %1247 = vmatmul.mubr.bf16.gmra.mrb[0].mxu0 %v613
        %v1248 = vpop.f32.mrb[0].mxu0
        %v1249 = vadd.f32 %v1164, %v1248
        %v1250 = vpop.f32.mrb[0].mxu0
        %v1251 = vpop.f32.mrb[0].mxu0
        %v1252 = vadd.f32 %v1164, %v1251
        %v1253 = vpop.f32.mrb[0].mxu0
        %1254 = vdwg.mxu0
        %v1255 = vmul.f32 %v1249, 0.17677669
        %v1256 = vmul.f32 %v1252, 0.17677669
        %s1257 = scalar_lea.vmem %s4, 64
        %v1258 = vld [vmem:[%s1257] sm:$0xf]
        %v1259 = vld [vmem:[%s1257 + $0x4] sm:$0xf]
        %v1260 = vld [vmem:[%s1257 + $0x8] sm:$0xf]
        %v1261 = vld [vmem:[%s1257 + $0xc] sm:$0xf]
        %v1262 = vld [vmem:[%s1257 + $0x10] sm:$0xf]
        %v1263 = vld [vmem:[%s1257 + $0x14] sm:$0xf]
        %v1264 = vld [vmem:[%s1257 + $0x18] sm:$0xf]
        %v1265 = vld [vmem:[%s1257 + $0x1c] sm:$0xf]
        %v1266 = vld [vmem:[%s1257 + $0x20] sm:$0xf]
        %v1267 = vld [vmem:[%s1257 + $0x24] sm:$0xf]
        %v1268 = vld [vmem:[%s1257 + $0x28] sm:$0xf]
        %v1269 = vld [vmem:[%s1257 + $0x2c] sm:$0xf]
        %v1270 = vld [vmem:[%s1257 + $0x30] sm:$0xf]
        %v1271 = vld [vmem:[%s1257 + $0x34] sm:$0xf]
        %v1272 = vld [vmem:[%s1257 + $0x38] sm:$0xf]
        %v1273 = vld [vmem:[%s1257 + $0x3c] sm:$0xf]
        %s1274 = scalar_lea.vmem %s7, 1
        %v1275 = vld [vmem:[%s1274] sm:$0x1]
        %v1277 = vlaneseq
        %v1278 = vshrl.u32 %v1277, 7
        %v1279 = vsub.s32 0, %v1278
        %v1280 = vrot.slane %v1275, %v1279
        %v1298 = vunpack.c.l.b16 %v1258
        %v1299 = vunpack.c.l.b16 %v1259
        %v1300 = vunpack.c.l.b16 %v1260
        %v1301 = vunpack.c.l.b16 %v1261
        %v1302 = vunpack.c.l.b16 %v1262
        %v1303 = vunpack.c.l.b16 %v1263
        %v1304 = vunpack.c.l.b16 %v1264
        %v1305 = vunpack.c.l.b16 %v1265
        %v1306 = vunpack.c.l.b16 %v1266
        %v1307 = vunpack.c.l.b16 %v1267
        %v1308 = vunpack.c.l.b16 %v1268
        %v1309 = vunpack.c.l.b16 %v1269
        %v1310 = vunpack.c.l.b16 %v1270
        %v1311 = vunpack.c.l.b16 %v1271
        %v1312 = vunpack.c.l.b16 %v1272
        %v1313 = vunpack.c.l.b16 %v1273
        %v1314 = vpack.c.b16 %v1299, %v1298
        %v1315 = vpack.c.b16 %v1301, %v1300
        %v1316 = vpack.c.b16 %v1303, %v1302
        %v1317 = vpack.c.b16 %v1305, %v1304
        %v1318 = vpack.c.b16 %v1307, %v1306
        %v1319 = vpack.c.b16 %v1309, %v1308
        %v1320 = vpack.c.b16 %v1311, %v1310
        %v1321 = vpack.c.b16 %v1313, %v1312
        %1330 = vmatprep.subr.bf16.mxu0 0
        %1331 = vmatpush1.bf16.msra.mxu0 %v1314
        %1332 = vmatprep.subr.bf16.mxu0 0
        %1333 = vmatpush1.bf16.msra.mxu0 %v1315
        %1334 = vmatprep.subr.bf16.mxu0 0
        %1335 = vmatpush1.bf16.msra.mxu0 %v1316
        %1336 = vmatprep.subr.bf16.mxu0 0
        %1337 = vmatpush1.bf16.msra.mxu0 %v1317
        %1338 = vmatprep.subr.bf16.mxu0 0
        %1339 = vmatpush1.bf16.msra.mxu0 %v1318
        %1340 = vmatprep.subr.bf16.mxu0 0
        %1341 = vmatpush1.bf16.msra.mxu0 %v1319
        %1342 = vmatprep.subr.bf16.mxu0 0
        %1343 = vmatpush1.bf16.msra.mxu0 %v1320
        %1344 = vmatprep.subr.bf16.mxu0 0
        %1345 = vmatpush1.bf16.msra.mxu0 %v1321
        %1346 = vmatprep.subr.bf16.mxu0 0
        %1347 = vmatpush1.bf16.msra.mxu0 0
        %1348 = vmatprep.subr.bf16.mxu0 0
        %1349 = vmatpush1.bf16.msra.mxu0 0
        %1350 = vmatprep.subr.bf16.mxu0 0
        %1351 = vmatpush1.bf16.msra.mxu0 0
        %1352 = vmatprep.subr.bf16.mxu0 0
        %1353 = vmatpush1.bf16.msra.mxu0 0
        %1354 = vmatprep.subr.bf16.mxu0 0
        %1355 = vmatpush1.bf16.msra.mxu0 0
        %1356 = vmatprep.subr.bf16.mxu0 0
        %1357 = vmatpush1.bf16.msra.mxu0 0
        %1358 = vmatprep.subr.bf16.mxu0 0
        %1359 = vmatpush1.bf16.msra.mxu0 0
        %1360 = vmatprep.subr.bf16.mxu0 0
        %1361 = vmatpush1.bf16.msra.mxu0 0
        %1362 = vmatprep.mubr.bf16.mxu0 0
        %1363 = vmatmul.mubr.bf16.gmra.mrb[0].mxu0 %v613
        %v1364 = vpop.f32.mrb[0].mxu0
        %v1365 = vadd.f32 %v1280, %v1364
        %v1366 = vpop.f32.mrb[0].mxu0
        %v1367 = vpop.f32.mrb[0].mxu0
        %v1368 = vadd.f32 %v1280, %v1367
        %v1369 = vpop.f32.mrb[0].mxu0
        %1370 = vdwg.mxu0
        %s1371 = scalar_lea.vmem %s5, 64
        %v1372 = vld [vmem:[%s1371] sm:$0xf]
        %v1373 = vld [vmem:[%s1371 + $0x4] sm:$0xf]
        %v1374 = vld [vmem:[%s1371 + $0x8] sm:$0xf]
        %v1375 = vld [vmem:[%s1371 + $0xc] sm:$0xf]
        %v1376 = vld [vmem:[%s1371 + $0x10] sm:$0xf]
        %v1377 = vld [vmem:[%s1371 + $0x14] sm:$0xf]
        %v1378 = vld [vmem:[%s1371 + $0x18] sm:$0xf]
        %v1379 = vld [vmem:[%s1371 + $0x1c] sm:$0xf]
        %v1380 = vld [vmem:[%s1371 + $0x20] sm:$0xf]
        %v1381 = vld [vmem:[%s1371 + $0x24] sm:$0xf]
        %v1382 = vld [vmem:[%s1371 + $0x28] sm:$0xf]
        %v1383 = vld [vmem:[%s1371 + $0x2c] sm:$0xf]
        %v1384 = vld [vmem:[%s1371 + $0x30] sm:$0xf]
        %v1385 = vld [vmem:[%s1371 + $0x34] sm:$0xf]
        %v1386 = vld [vmem:[%s1371 + $0x38] sm:$0xf]
        %v1387 = vld [vmem:[%s1371 + $0x3c] sm:$0xf]
        %s1388 = scalar_lea.vmem %s8, 1
        %v1389 = vld [vmem:[%s1388] sm:$0x1]
        %v1391 = vlaneseq
        %v1392 = vshrl.u32 %v1391, 7
        %v1393 = vsub.s32 0, %v1392
        %v1394 = vrot.slane %v1389, %v1393
        %v1412 = vunpack.c.l.b16 %v1372
        %v1413 = vunpack.c.l.b16 %v1373
        %v1414 = vunpack.c.l.b16 %v1374
        %v1415 = vunpack.c.l.b16 %v1375
        %v1416 = vunpack.c.l.b16 %v1376
        %v1417 = vunpack.c.l.b16 %v1377
        %v1418 = vunpack.c.l.b16 %v1378
        %v1419 = vunpack.c.l.b16 %v1379
        %v1420 = vunpack.c.l.b16 %v1380
        %v1421 = vunpack.c.l.b16 %v1381
        %v1422 = vunpack.c.l.b16 %v1382
        %v1423 = vunpack.c.l.b16 %v1383
        %v1424 = vunpack.c.l.b16 %v1384
        %v1425 = vunpack.c.l.b16 %v1385
        %v1426 = vunpack.c.l.b16 %v1386
        %v1427 = vunpack.c.l.b16 %v1387
        %v1428 = vpack.c.b16 %v1413, %v1412
        %v1429 = vpack.c.b16 %v1415, %v1414
        %v1430 = vpack.c.b16 %v1417, %v1416
        %v1431 = vpack.c.b16 %v1419, %v1418
        %v1432 = vpack.c.b16 %v1421, %v1420
        %v1433 = vpack.c.b16 %v1423, %v1422
        %v1434 = vpack.c.b16 %v1425, %v1424
        %v1435 = vpack.c.b16 %v1427, %v1426
        %1444 = vmatprep.subr.bf16.mxu0 0
        %1445 = vmatpush1.bf16.msra.mxu0 %v1428
        %1446 = vmatprep.subr.bf16.mxu0 0
        %1447 = vmatpush1.bf16.msra.mxu0 %v1429
        %1448 = vmatprep.subr.bf16.mxu0 0
        %1449 = vmatpush1.bf16.msra.mxu0 %v1430
        %1450 = vmatprep.subr.bf16.mxu0 0
        %1451 = vmatpush1.bf16.msra.mxu0 %v1431
        %1452 = vmatprep.subr.bf16.mxu0 0
        %1453 = vmatpush1.bf16.msra.mxu0 %v1432
        %1454 = vmatprep.subr.bf16.mxu0 0
        %1455 = vmatpush1.bf16.msra.mxu0 %v1433
        %1456 = vmatprep.subr.bf16.mxu0 0
        %1457 = vmatpush1.bf16.msra.mxu0 %v1434
        %1458 = vmatprep.subr.bf16.mxu0 0
        %1459 = vmatpush1.bf16.msra.mxu0 %v1435
        %1460 = vmatprep.subr.bf16.mxu0 0
        %1461 = vmatpush1.bf16.msra.mxu0 0
        %1462 = vmatprep.subr.bf16.mxu0 0
        %1463 = vmatpush1.bf16.msra.mxu0 0
        %1464 = vmatprep.subr.bf16.mxu0 0
        %1465 = vmatpush1.bf16.msra.mxu0 0
        %1466 = vmatprep.subr.bf16.mxu0 0
        %1467 = vmatpush1.bf16.msra.mxu0 0
        %1468 = vmatprep.subr.bf16.mxu0 0
        %1469 = vmatpush1.bf16.msra.mxu0 0
        %1470 = vmatprep.subr.bf16.mxu0 0
        %1471 = vmatpush1.bf16.msra.mxu0 0
        %1472 = vmatprep.subr.bf16.mxu0 0
        %1473 = vmatpush1.bf16.msra.mxu0 0
        %1474 = vmatprep.subr.bf16.mxu0 0
        %1475 = vmatpush1.bf16.msra.mxu0 0
        %1476 = vmatprep.mubr.bf16.mxu0 0
        %1477 = vmatmul.mubr.bf16.gmra.mrb[0].mxu0 %v613
        %v1478 = vpop.f32.mrb[0].mxu0
        %v1479 = vadd.f32 %v1394, %v1478
        %v1480 = vpop.f32.mrb[0].mxu0
        %v1481 = vpop.f32.mrb[0].mxu0
        %v1482 = vadd.f32 %v1394, %v1481
        %v1483 = vpop.f32.mrb[0].mxu0
        %1484 = vdwg.mxu0
        %v1485 = vpack.c.bf16 %v1256, %v1255
        %v1486 = vpack.c.bf16 %v1368, %v1365
        %v1488 = vsel %vm955, %v1485, 0
        %v1491 = vsel %vm955, %v1486, 0
        %1493 = vmatprep.subr.bf16.mxu0 0
        %1494 = vmatpush1.bf16.xpose.msra.mxu0 %v1491
        %1495 = vmatprep.subr.bf16.mxu0 0
        %1496 = vmatpush1.bf16.xpose.msra.mxu0 0
        %1497 = vmatprep.subr.bf16.mxu0 0
        %1498 = vmatpush1.bf16.xpose.msra.mxu0 0
        %1499 = vmatprep.subr.bf16.mxu0 0
        %1500 = vmatpush1.bf16.xpose.msra.mxu0 0
        %1501 = vmatprep.subr.bf16.mxu0 0
        %1502 = vmatpush1.bf16.xpose.msra.mxu0 0
        %1503 = vmatprep.subr.bf16.mxu0 0
        %1504 = vmatpush1.bf16.xpose.msra.mxu0 0
        %1505 = vmatprep.subr.bf16.mxu0 0
        %1506 = vmatpush1.bf16.xpose.msra.mxu0 0
        %1507 = vmatprep.subr.bf16.mxu0 0
        %1508 = vmatpush1.bf16.xpose.msra.mxu0 0
        %1509 = vmatprep.subr.bf16.mxu0 0
        %1510 = vmatpush1.bf16.xpose.msra.mxu0 0
        %1511 = vmatprep.subr.bf16.mxu0 0
        %1512 = vmatpush1.bf16.xpose.msra.mxu0 0
        %1513 = vmatprep.subr.bf16.mxu0 0
        %1514 = vmatpush1.bf16.xpose.msra.mxu0 0
        %1515 = vmatprep.subr.bf16.mxu0 0
        %1516 = vmatpush1.bf16.xpose.msra.mxu0 0
        %1517 = vmatprep.subr.bf16.mxu0 0
        %1518 = vmatpush1.bf16.xpose.msra.mxu0 0
        %1519 = vmatprep.subr.bf16.mxu0 0
        %1520 = vmatpush1.bf16.xpose.msra.mxu0 0
        %1521 = vmatprep.subr.bf16.mxu0 0
        %1522 = vmatpush1.bf16.xpose.msra.mxu0 0
        %1523 = vmatprep.subr.bf16.mxu0 0
        %1524 = vmatpush1.bf16.xpose.msra.mxu0 0
        %1525 = vmatprep.mubr.bf16.mxu0 0
        %1526 = vmatmul.mubr.bf16.gmra.mrb[0].mxu0 %v1488
        %v1527 = vpop.f32.mrb[0].mxu0
        %v1528 = vadd.f32 0.0, %v1527
        %v1529 = vpop.f32.mrb[0].mxu0
        %v1530 = vpop.f32.mrb[0].mxu0
        %v1531 = vadd.f32 0.0, %v1530
        %v1532 = vpop.f32.mrb[0].mxu0
        %1533 = vdwg.mxu0
        %v1534 = vsel %vm1003, %v1528, -inf
        %1535 = vmax.xlane.f32.xlu0 %v1534
        %v1536 = vpop.xlane.xlu0 %1535
        %v1537 = vsel %vm1003, %v1531, -inf
        %1538 = vmax.xlane.f32.xlu0 %v1537
        %v1539 = vpop.xlane.xlu0 %1538
        %v1540 = vsub.f32 %v1528, %v1536
        %v1541 = vsub.f32 %v1531, %v1539
        %v1542 = vmul.f32 %v1540, 1.442695
        %v1543 = vpow.pop %v1542
        %v1544 = vmul.f32 %v1541, 1.442695
        %v1545 = vpow.pop %v1544
        %v1546 = vsel %vm1003, %v1543, 0.0
        %1547 = vadd.xlane.f32.xlu0 %v1546
        %v1548 = vpop.xlane.xlu0 %1547
        %v1549 = vsel %vm1003, %v1545, 0.0
        %1550 = vadd.xlane.f32.xlu0 %v1549
        %v1551 = vpop.xlane.xlu0 %1550
        %v1552 = vrcp.pop %v1548
        %v1553 = vmul.f32 %v1543, %v1552
        %v1554 = vrcp.pop %v1551
        %v1555 = vmul.f32 %v1545, %v1554
        %v1556 = vpack.c.bf16 %v1555, %v1553
        %v1557 = vpack.c.bf16 %v1482, %v1479
        %v1559 = vsel %vm1003, %v1556, 0
        %1561 = vmatprep.subr.bf16.mxu0 0
        %1562 = vmatpush1.bf16.msra.mxu0 %v1557
        %1563 = vmatprep.subr.bf16.mxu0 0
        %1564 = vmatpush1.bf16.msra.mxu0 0
        %1565 = vmatprep.subr.bf16.mxu0 0
        %1566 = vmatpush1.bf16.msra.mxu0 0
        %1567 = vmatprep.subr.bf16.mxu0 0
        %1568 = vmatpush1.bf16.msra.mxu0 0
        %1569 = vmatprep.subr.bf16.mxu0 0
        %1570 = vmatpush1.bf16.msra.mxu0 0
        %1571 = vmatprep.subr.bf16.mxu0 0
        %1572 = vmatpush1.bf16.msra.mxu0 0
        %1573 = vmatprep.subr.bf16.mxu0 0
        %1574 = vmatpush1.bf16.msra.mxu0 0
        %1575 = vmatprep.subr.bf16.mxu0 0
        %1576 = vmatpush1.bf16.msra.mxu0 0
        %1577 = vmatprep.subr.bf16.mxu0 0
        %1578 = vmatpush1.bf16.msra.mxu0 0
        %1579 = vmatprep.subr.bf16.mxu0 0
        %1580 = vmatpush1.bf16.msra.mxu0 0
        %1581 = vmatprep.subr.bf16.mxu0 0
        %1582 = vmatpush1.bf16.msra.mxu0 0
        %1583 = vmatprep.subr.bf16.mxu0 0
        %1584 = vmatpush1.bf16.msra.mxu0 0
        %1585 = vmatprep.subr.bf16.mxu0 0
        %1586 = vmatpush1.bf16.msra.mxu0 0
        %1587 = vmatprep.subr.bf16.mxu0 0
        %1588 = vmatpush1.bf16.msra.mxu0 0
        %1589 = vmatprep.subr.bf16.mxu0 0
        %1590 = vmatpush1.bf16.msra.mxu0 0
        %1591 = vmatprep.subr.bf16.mxu0 0
        %1592 = vmatpush1.bf16.msra.mxu0 0
        %1593 = vmatprep.mubr.bf16.mxu0 0
        %1594 = vmatmul.mubr.bf16.gmra.mrb[0].mxu0 %v1559
        %v1595 = vpop.f32.mrb[0].mxu0
        %v1596 = vadd.f32 0.0, %v1595
        %v1597 = vpop.f32.mrb[0].mxu0
        %v1598 = vpop.f32.mrb[0].mxu0
        %v1599 = vadd.f32 0.0, %v1598
        %v1600 = vpop.f32.mrb[0].mxu0
        %1601 = vdwg.mxu0
        %v1602 = vpack.c.bf16 %v1599, %v1596
        %s1603 = scalar_lea.vmem %s9, 16
        %v1604 = vld [vmem:[%s1603] sm:$0xf]
        %v1605 = vld [vmem:[%s1603 + $0x4] sm:$0xf]
        %v1606 = vld [vmem:[%s1603 + $0x8] sm:$0xf]
        %v1607 = vld [vmem:[%s1603 + $0xc] sm:$0xf]
        %v1612 = vunpack.c.l.b16 %v1604
        %v1613 = vunpack.c.l.b16 %v1605
        %v1614 = vunpack.c.l.b16 %v1606
        %v1615 = vunpack.c.l.b16 %v1607
        %v1616 = vpack.c.b16 %v1613, %v1612
        %v1617 = vpack.c.b16 %v1615, %v1614
        %v1621 = vsel %vm955, %v1602, 0
        %1623 = vmatprep.subr.bf16.mxu0 0
        %1624 = vmatpush1.bf16.msra.mxu0 %v1616
        %1625 = vmatprep.subr.bf16.mxu0 0
        %1626 = vmatpush1.bf16.msra.mxu0 %v1617
        %1627 = vmatprep.subr.bf16.mxu0 0
        %1628 = vmatpush1.bf16.msra.mxu0 0
        %1629 = vmatprep.subr.bf16.mxu0 0
        %1630 = vmatpush1.bf16.msra.mxu0 0
        %1631 = vmatprep.subr.bf16.mxu0 0
        %1632 = vmatpush1.bf16.msra.mxu0 0
        %1633 = vmatprep.subr.bf16.mxu0 0
        %1634 = vmatpush1.bf16.msra.mxu0 0
        %1635 = vmatprep.subr.bf16.mxu0 0
        %1636 = vmatpush1.bf16.msra.mxu0 0
        %1637 = vmatprep.subr.bf16.mxu0 0
        %1638 = vmatpush1.bf16.msra.mxu0 0
        %1639 = vmatprep.subr.bf16.mxu0 0
        %1640 = vmatpush1.bf16.msra.mxu0 0
        %1641 = vmatprep.subr.bf16.mxu0 0
        %1642 = vmatpush1.bf16.msra.mxu0 0
        %1643 = vmatprep.subr.bf16.mxu0 0
        %1644 = vmatpush1.bf16.msra.mxu0 0
        %1645 = vmatprep.subr.bf16.mxu0 0
        %1646 = vmatpush1.bf16.msra.mxu0 0
        %1647 = vmatprep.subr.bf16.mxu0 0
        %1648 = vmatpush1.bf16.msra.mxu0 0
        %1649 = vmatprep.subr.bf16.mxu0 0
        %1650 = vmatpush1.bf16.msra.mxu0 0
        %1651 = vmatprep.subr.bf16.mxu0 0
        %1652 = vmatpush1.bf16.msra.mxu0 0
        %1653 = vmatprep.subr.bf16.mxu0 0
        %1654 = vmatpush1.bf16.msra.mxu0 0
        %1655 = vmatprep.mubr.bf16.mxu0 0
        %1656 = vmatmul.mubr.bf16.gmra.mrb[0].mxu0 %v1621
        %v1657 = vpop.f32.mrb[0].mxu0
        %v1658 = vadd.f32 0.0, %v1657
        %v1659 = vpop.f32.mrb[0].mxu0
        %v1660 = vpop.f32.mrb[0].mxu0
        %v1661 = vadd.f32 0.0, %v1660
        %v1662 = vpop.f32.mrb[0].mxu0
        %1663 = vdwg.mxu0
        %v1664 = vadd.f32 %v1139, %v1658
        %v1665 = vadd.f32 %v1140, %v1661
        %s1666 = scalar_lea.vmem %s3, 128
        %v1667 = vld [vmem:[%s1666] sm:$0xf]
        %v1668 = vld [vmem:[%s1666 + $0x4] sm:$0xf]
        %v1669 = vld [vmem:[%s1666 + $0x8] sm:$0xf]
        %v1670 = vld [vmem:[%s1666 + $0xc] sm:$0xf]
        %v1671 = vld [vmem:[%s1666 + $0x10] sm:$0xf]
        %v1672 = vld [vmem:[%s1666 + $0x14] sm:$0xf]
        %v1673 = vld [vmem:[%s1666 + $0x18] sm:$0xf]
        %v1674 = vld [vmem:[%s1666 + $0x1c] sm:$0xf]
        %v1675 = vld [vmem:[%s1666 + $0x20] sm:$0xf]
        %v1676 = vld [vmem:[%s1666 + $0x24] sm:$0xf]
        %v1677 = vld [vmem:[%s1666 + $0x28] sm:$0xf]
        %v1678 = vld [vmem:[%s1666 + $0x2c] sm:$0xf]
        %v1679 = vld [vmem:[%s1666 + $0x30] sm:$0xf]
        %v1680 = vld [vmem:[%s1666 + $0x34] sm:$0xf]
        %v1681 = vld [vmem:[%s1666 + $0x38] sm:$0xf]
        %v1682 = vld [vmem:[%s1666 + $0x3c] sm:$0xf]
        %s1683 = scalar_lea.vmem %s6, 2
        %v1684 = vld [vmem:[%s1683] sm:$0x1]
        %v1686 = vlaneseq
        %v1687 = vshrl.u32 %v1686, 7
        %v1688 = vsub.s32 0, %v1687
        %v1689 = vrot.slane %v1684, %v1688
        %v1707 = vunpack.c.l.b16 %v1667
        %v1708 = vunpack.c.l.b16 %v1668
        %v1709 = vunpack.c.l.b16 %v1669
        %v1710 = vunpack.c.l.b16 %v1670
        %v1711 = vunpack.c.l.b16 %v1671
        %v1712 = vunpack.c.l.b16 %v1672
        %v1713 = vunpack.c.l.b16 %v1673
        %v1714 = vunpack.c.l.b16 %v1674
        %v1715 = vunpack.c.l.b16 %v1675
        %v1716 = vunpack.c.l.b16 %v1676
        %v1717 = vunpack.c.l.b16 %v1677
        %v1718 = vunpack.c.l.b16 %v1678
        %v1719 = vunpack.c.l.b16 %v1679
        %v1720 = vunpack.c.l.b16 %v1680
        %v1721 = vunpack.c.l.b16 %v1681
        %v1722 = vunpack.c.l.b16 %v1682
        %v1723 = vpack.c.b16 %v1708, %v1707
        %v1724 = vpack.c.b16 %v1710, %v1709
        %v1725 = vpack.c.b16 %v1712, %v1711
        %v1726 = vpack.c.b16 %v1714, %v1713
        %v1727 = vpack.c.b16 %v1716, %v1715
        %v1728 = vpack.c.b16 %v1718, %v1717
        %v1729 = vpack.c.b16 %v1720, %v1719
        %v1730 = vpack.c.b16 %v1722, %v1721
        %1739 = vmatprep.subr.bf16.mxu0 0
        %1740 = vmatpush1.bf16.msra.mxu0 %v1723
        %1741 = vmatprep.subr.bf16.mxu0 0
        %1742 = vmatpush1.bf16.msra.mxu0 %v1724
        %1743 = vmatprep.subr.bf16.mxu0 0
        %1744 = vmatpush1.bf16.msra.mxu0 %v1725
        %1745 = vmatprep.subr.bf16.mxu0 0
        %1746 = vmatpush1.bf16.msra.mxu0 %v1726
        %1747 = vmatprep.subr.bf16.mxu0 0
        %1748 = vmatpush1.bf16.msra.mxu0 %v1727
        %1749 = vmatprep.subr.bf16.mxu0 0
        %1750 = vmatpush1.bf16.msra.mxu0 %v1728
        %1751 = vmatprep.subr.bf16.mxu0 0
        %1752 = vmatpush1.bf16.msra.mxu0 %v1729
        %1753 = vmatprep.subr.bf16.mxu0 0
        %1754 = vmatpush1.bf16.msra.mxu0 %v1730
        %1755 = vmatprep.subr.bf16.mxu0 0
        %1756 = vmatpush1.bf16.msra.mxu0 0
        %1757 = vmatprep.subr.bf16.mxu0 0
        %1758 = vmatpush1.bf16.msra.mxu0 0
        %1759 = vmatprep.subr.bf16.mxu0 0
        %1760 = vmatpush1.bf16.msra.mxu0 0
        %1761 = vmatprep.subr.bf16.mxu0 0
        %1762 = vmatpush1.bf16.msra.mxu0 0
        %1763 = vmatprep.subr.bf16.mxu0 0
        %1764 = vmatpush1.bf16.msra.mxu0 0
        %1765 = vmatprep.subr.bf16.mxu0 0
        %1766 = vmatpush1.bf16.msra.mxu0 0
        %1767 = vmatprep.subr.bf16.mxu0 0
        %1768 = vmatpush1.bf16.msra.mxu0 0
        %1769 = vmatprep.subr.bf16.mxu0 0
        %1770 = vmatpush1.bf16.msra.mxu0 0
        %1771 = vmatprep.mubr.bf16.mxu0 0
        %1772 = vmatmul.mubr.bf16.gmra.mrb[0].mxu0 %v613
        %v1773 = vpop.f32.mrb[0].mxu0
        %v1774 = vadd.f32 %v1689, %v1773
        %v1775 = vpop.f32.mrb[0].mxu0
        %v1776 = vpop.f32.mrb[0].mxu0
        %v1777 = vadd.f32 %v1689, %v1776
        %v1778 = vpop.f32.mrb[0].mxu0
        %1779 = vdwg.mxu0
        %v1780 = vmul.f32 %v1774, 0.17677669
        %v1781 = vmul.f32 %v1777, 0.17677669
        %s1782 = scalar_lea.vmem %s4, 128
        %v1783 = vld [vmem:[%s1782] sm:$0xf]
        %v1784 = vld [vmem:[%s1782 + $0x4] sm:$0xf]
        %v1785 = vld [vmem:[%s1782 + $0x8] sm:$0xf]
        %v1786 = vld [vmem:[%s1782 + $0xc] sm:$0xf]
        %v1787 = vld [vmem:[%s1782 + $0x10] sm:$0xf]
        %v1788 = vld [vmem:[%s1782 + $0x14] sm:$0xf]
        %v1789 = vld [vmem:[%s1782 + $0x18] sm:$0xf]
        %v1790 = vld [vmem:[%s1782 + $0x1c] sm:$0xf]
        %v1791 = vld [vmem:[%s1782 + $0x20] sm:$0xf]
        %v1792 = vld [vmem:[%s1782 + $0x24] sm:$0xf]
        %v1793 = vld [vmem:[%s1782 + $0x28] sm:$0xf]
        %v1794 = vld [vmem:[%s1782 + $0x2c] sm:$0xf]
        %v1795 = vld [vmem:[%s1782 + $0x30] sm:$0xf]
        %v1796 = vld [vmem:[%s1782 + $0x34] sm:$0xf]
        %v1797 = vld [vmem:[%s1782 + $0x38] sm:$0xf]
        %v1798 = vld [vmem:[%s1782 + $0x3c] sm:$0xf]
        %s1799 = scalar_lea.vmem %s7, 2
        %v1800 = vld [vmem:[%s1799] sm:$0x1]
        %v1802 = vlaneseq
        %v1803 = vshrl.u32 %v1802, 7
        %v1804 = vsub.s32 0, %v1803
        %v1805 = vrot.slane %v1800, %v1804
        %v1823 = vunpack.c.l.b16 %v1783
        %v1824 = vunpack.c.l.b16 %v1784
        %v1825 = vunpack.c.l.b16 %v1785
        %v1826 = vunpack.c.l.b16 %v1786
        %v1827 = vunpack.c.l.b16 %v1787
        %v1828 = vunpack.c.l.b16 %v1788
        %v1829 = vunpack.c.l.b16 %v1789
        %v1830 = vunpack.c.l.b16 %v1790
        %v1831 = vunpack.c.l.b16 %v1791
        %v1832 = vunpack.c.l.b16 %v1792
        %v1833 = vunpack.c.l.b16 %v1793
        %v1834 = vunpack.c.l.b16 %v1794
        %v1835 = vunpack.c.l.b16 %v1795
        %v1836 = vunpack.c.l.b16 %v1796
        %v1837 = vunpack.c.l.b16 %v1797
        %v1838 = vunpack.c.l.b16 %v1798
        %v1839 = vpack.c.b16 %v1824, %v1823
        %v1840 = vpack.c.b16 %v1826, %v1825
        %v1841 = vpack.c.b16 %v1828, %v1827
        %v1842 = vpack.c.b16 %v1830, %v1829
        %v1843 = vpack.c.b16 %v1832, %v1831
        %v1844 = vpack.c.b16 %v1834, %v1833
        %v1845 = vpack.c.b16 %v1836, %v1835
        %v1846 = vpack.c.b16 %v1838, %v1837
        %1855 = vmatprep.subr.bf16.mxu0 0
        %1856 = vmatpush1.bf16.msra.mxu0 %v1839
        %1857 = vmatprep.subr.bf16.mxu0 0
        %1858 = vmatpush1.bf16.msra.mxu0 %v1840
        %1859 = vmatprep.subr.bf16.mxu0 0
        %1860 = vmatpush1.bf16.msra.mxu0 %v1841
        %1861 = vmatprep.subr.bf16.mxu0 0
        %1862 = vmatpush1.bf16.msra.mxu0 %v1842
        %1863 = vmatprep.subr.bf16.mxu0 0
        %1864 = vmatpush1.bf16.msra.mxu0 %v1843
        %1865 = vmatprep.subr.bf16.mxu0 0
        %1866 = vmatpush1.bf16.msra.mxu0 %v1844
        %1867 = vmatprep.subr.bf16.mxu0 0
        %1868 = vmatpush1.bf16.msra.mxu0 %v1845
        %1869 = vmatprep.subr.bf16.mxu0 0
        %1870 = vmatpush1.bf16.msra.mxu0 %v1846
        %1871 = vmatprep.subr.bf16.mxu0 0
        %1872 = vmatpush1.bf16.msra.mxu0 0
        %1873 = vmatprep.subr.bf16.mxu0 0
        %1874 = vmatpush1.bf16.msra.mxu0 0
        %1875 = vmatprep.subr.bf16.mxu0 0
        %1876 = vmatpush1.bf16.msra.mxu0 0
        %1877 = vmatprep.subr.bf16.mxu0 0
        %1878 = vmatpush1.bf16.msra.mxu0 0
        %1879 = vmatprep.subr.bf16.mxu0 0
        %1880 = vmatpush1.bf16.msra.mxu0 0
        %1881 = vmatprep.subr.bf16.mxu0 0
        %1882 = vmatpush1.bf16.msra.mxu0 0
        %1883 = vmatprep.subr.bf16.mxu0 0
        %1884 = vmatpush1.bf16.msra.mxu0 0
        %1885 = vmatprep.subr.bf16.mxu0 0
        %1886 = vmatpush1.bf16.msra.mxu0 0
        %1887 = vmatprep.mubr.bf16.mxu0 0
        %1888 = vmatmul.mubr.bf16.gmra.mrb[0].mxu0 %v613
        %v1889 = vpop.f32.mrb[0].mxu0
        %v1890 = vadd.f32 %v1805, %v1889
        %v1891 = vpop.f32.mrb[0].mxu0
        %v1892 = vpop.f32.mrb[0].mxu0
        %v1893 = vadd.f32 %v1805, %v1892
        %v1894 = vpop.f32.mrb[0].mxu0
        %1895 = vdwg.mxu0
        %s1896 = scalar_lea.vmem %s5, 128
        %v1897 = vld [vmem:[%s1896] sm:$0xf]
        %v1898 = vld [vmem:[%s1896 + $0x4] sm:$0xf]
        %v1899 = vld [vmem:[%s1896 + $0x8] sm:$0xf]
        %v1900 = vld [vmem:[%s1896 + $0xc] sm:$0xf]
        %v1901 = vld [vmem:[%s1896 + $0x10] sm:$0xf]
        %v1902 = vld [vmem:[%s1896 + $0x14] sm:$0xf]
        %v1903 = vld [vmem:[%s1896 + $0x18] sm:$0xf]
        %v1904 = vld [vmem:[%s1896 + $0x1c] sm:$0xf]
        %v1905 = vld [vmem:[%s1896 + $0x20] sm:$0xf]
        %v1906 = vld [vmem:[%s1896 + $0x24] sm:$0xf]
        %v1907 = vld [vmem:[%s1896 + $0x28] sm:$0xf]
        %v1908 = vld [vmem:[%s1896 + $0x2c] sm:$0xf]
        %v1909 = vld [vmem:[%s1896 + $0x30] sm:$0xf]
        %v1910 = vld [vmem:[%s1896 + $0x34] sm:$0xf]
        %v1911 = vld [vmem:[%s1896 + $0x38] sm:$0xf]
        %v1912 = vld [vmem:[%s1896 + $0x3c] sm:$0xf]
        %s1913 = scalar_lea.vmem %s8, 2
        %v1914 = vld [vmem:[%s1913] sm:$0x1]
        %v1916 = vlaneseq
        %v1917 = vshrl.u32 %v1916, 7
        %v1918 = vsub.s32 0, %v1917
        %v1919 = vrot.slane %v1914, %v1918
        %v1937 = vunpack.c.l.b16 %v1897
        %v1938 = vunpack.c.l.b16 %v1898
        %v1939 = vunpack.c.l.b16 %v1899
        %v1940 = vunpack.c.l.b16 %v1900
        %v1941 = vunpack.c.l.b16 %v1901
        %v1942 = vunpack.c.l.b16 %v1902
        %v1943 = vunpack.c.l.b16 %v1903
        %v1944 = vunpack.c.l.b16 %v1904
        %v1945 = vunpack.c.l.b16 %v1905
        %v1946 = vunpack.c.l.b16 %v1906
        %v1947 = vunpack.c.l.b16 %v1907
        %v1948 = vunpack.c.l.b16 %v1908
        %v1949 = vunpack.c.l.b16 %v1909
        %v1950 = vunpack.c.l.b16 %v1910
        %v1951 = vunpack.c.l.b16 %v1911
        %v1952 = vunpack.c.l.b16 %v1912
        %v1953 = vpack.c.b16 %v1938, %v1937
        %v1954 = vpack.c.b16 %v1940, %v1939
        %v1955 = vpack.c.b16 %v1942, %v1941
        %v1956 = vpack.c.b16 %v1944, %v1943
        %v1957 = vpack.c.b16 %v1946, %v1945
        %v1958 = vpack.c.b16 %v1948, %v1947
        %v1959 = vpack.c.b16 %v1950, %v1949
        %v1960 = vpack.c.b16 %v1952, %v1951
        %1969 = vmatprep.subr.bf16.mxu0 0
        %1970 = vmatpush1.bf16.msra.mxu0 %v1953
        %1971 = vmatprep.subr.bf16.mxu0 0
        %1972 = vmatpush1.bf16.msra.mxu0 %v1954
        %1973 = vmatprep.subr.bf16.mxu0 0
        %1974 = vmatpush1.bf16.msra.mxu0 %v1955
        %1975 = vmatprep.subr.bf16.mxu0 0
        %1976 = vmatpush1.bf16.msra.mxu0 %v1956
        %1977 = vmatprep.subr.bf16.mxu0 0
        %1978 = vmatpush1.bf16.msra.mxu0 %v1957
        %1979 = vmatprep.subr.bf16.mxu0 0
        %1980 = vmatpush1.bf16.msra.mxu0 %v1958
        %1981 = vmatprep.subr.bf16.mxu0 0
        %1982 = vmatpush1.bf16.msra.mxu0 %v1959
        %1983 = vmatprep.subr.bf16.mxu0 0
        %1984 = vmatpush1.bf16.msra.mxu0 %v1960
        %1985 = vmatprep.subr.bf16.mxu0 0
        %1986 = vmatpush1.bf16.msra.mxu0 0
        %1987 = vmatprep.subr.bf16.mxu0 0
        %1988 = vmatpush1.bf16.msra.mxu0 0
        %1989 = vmatprep.subr.bf16.mxu0 0
        %1990 = vmatpush1.bf16.msra.mxu0 0
        %1991 = vmatprep.subr.bf16.mxu0 0
        %1992 = vmatpush1.bf16.msra.mxu0 0
        %1993 = vmatprep.subr.bf16.mxu0 0
        %1994 = vmatpush1.bf16.msra.mxu0 0
        %1995 = vmatprep.subr.bf16.mxu0 0
        %1996 = vmatpush1.bf16.msra.mxu0 0
        %1997 = vmatprep.subr.bf16.mxu0 0
        %1998 = vmatpush1.bf16.msra.mxu0 0
        %1999 = vmatprep.subr.bf16.mxu0 0
        %2000 = vmatpush1.bf16.msra.mxu0 0
        %2001 = vmatprep.mubr.bf16.mxu0 0
        %2002 = vmatmul.mubr.bf16.gmra.mrb[0].mxu0 %v613
        %v2003 = vpop.f32.mrb[0].mxu0
        %v2004 = vadd.f32 %v1919, %v2003
        %v2005 = vpop.f32.mrb[0].mxu0
        %v2006 = vpop.f32.mrb[0].mxu0
        %v2007 = vadd.f32 %v1919, %v2006
        %v2008 = vpop.f32.mrb[0].mxu0
        %2009 = vdwg.mxu0
        %v2010 = vpack.c.bf16 %v1781, %v1780
        %v2011 = vpack.c.bf16 %v1893, %v1890
        %v2013 = vsel %vm955, %v2010, 0
        %v2016 = vsel %vm955, %v2011, 0
        %2018 = vmatprep.subr.bf16.mxu0 0
        %2019 = vmatpush1.bf16.xpose.msra.mxu0 %v2016
        %2020 = vmatprep.subr.bf16.mxu0 0
        %2021 = vmatpush1.bf16.xpose.msra.mxu0 0
        %2022 = vmatprep.subr.bf16.mxu0 0
        %2023 = vmatpush1.bf16.xpose.msra.mxu0 0
        %2024 = vmatprep.subr.bf16.mxu0 0
        %2025 = vmatpush1.bf16.xpose.msra.mxu0 0
        %2026 = vmatprep.subr.bf16.mxu0 0
        %2027 = vmatpush1.bf16.xpose.msra.mxu0 0
        %2028 = vmatprep.subr.bf16.mxu0 0
        %2029 = vmatpush1.bf16.xpose.msra.mxu0 0
        %2030 = vmatprep.subr.bf16.mxu0 0
        %2031 = vmatpush1.bf16.xpose.msra.mxu0 0
        %2032 = vmatprep.subr.bf16.mxu0 0
        %2033 = vmatpush1.bf16.xpose.msra.mxu0 0
        %2034 = vmatprep.subr.bf16.mxu0 0
        %2035 = vmatpush1.bf16.xpose.msra.mxu0 0
        %2036 = vmatprep.subr.bf16.mxu0 0
        %2037 = vmatpush1.bf16.xpose.msra.mxu0 0
        %2038 = vmatprep.subr.bf16.mxu0 0
        %2039 = vmatpush1.bf16.xpose.msra.mxu0 0
        %2040 = vmatprep.subr.bf16.mxu0 0
        %2041 = vmatpush1.bf16.xpose.msra.mxu0 0
        %2042 = vmatprep.subr.bf16.mxu0 0
        %2043 = vmatpush1.bf16.xpose.msra.mxu0 0
        %2044 = vmatprep.subr.bf16.mxu0 0
        %2045 = vmatpush1.bf16.xpose.msra.mxu0 0
        %2046 = vmatprep.subr.bf16.mxu0 0
        %2047 = vmatpush1.bf16.xpose.msra.mxu0 0
        %2048 = vmatprep.subr.bf16.mxu0 0
        %2049 = vmatpush1.bf16.xpose.msra.mxu0 0
        %2050 = vmatprep.mubr.bf16.mxu0 0
        %2051 = vmatmul.mubr.bf16.gmra.mrb[0].mxu0 %v2013
        %v2052 = vpop.f32.mrb[0].mxu0
        %v2053 = vadd.f32 0.0, %v2052
        %v2054 = vpop.f32.mrb[0].mxu0
        %v2055 = vpop.f32.mrb[0].mxu0
        %v2056 = vadd.f32 0.0, %v2055
        %v2057 = vpop.f32.mrb[0].mxu0
        %2058 = vdwg.mxu0
        %v2059 = vsel %vm1003, %v2053, -inf
        %2060 = vmax.xlane.f32.xlu0 %v2059
        %v2061 = vpop.xlane.xlu0 %2060
        %v2062 = vsel %vm1003, %v2056, -inf
        %2063 = vmax.xlane.f32.xlu0 %v2062
        %v2064 = vpop.xlane.xlu0 %2063
        %v2065 = vsub.f32 %v2053, %v2061
        %v2066 = vsub.f32 %v2056, %v2064
        %v2067 = vmul.f32 %v2065, 1.442695
        %v2068 = vpow.pop %v2067
        %v2069 = vmul.f32 %v2066, 1.442695
        %v2070 = vpow.pop %v2069
        %v2071 = vsel %vm1003, %v2068, 0.0
        %2072 = vadd.xlane.f32.xlu0 %v2071
        %v2073 = vpop.xlane.xlu0 %2072
        %v2074 = vsel %vm1003, %v2070, 0.0
        %2075 = vadd.xlane.f32.xlu0 %v2074
        %v2076 = vpop.xlane.xlu0 %2075
        %v2077 = vrcp.pop %v2073
        %v2078 = vmul.f32 %v2068, %v2077
        %v2079 = vrcp.pop %v2076
        %v2080 = vmul.f32 %v2070, %v2079
        %v2081 = vpack.c.bf16 %v2080, %v2078
        %v2082 = vpack.c.bf16 %v2007, %v2004
        %v2084 = vsel %vm1003, %v2081, 0
        %2086 = vmatprep.subr.bf16.mxu0 0
        %2087 = vmatpush1.bf16.msra.mxu0 %v2082
        %2088 = vmatprep.subr.bf16.mxu0 0
        %2089 = vmatpush1.bf16.msra.mxu0 0
        %2090 = vmatprep.subr.bf16.mxu0 0
        %2091 = vmatpush1.bf16.msra.mxu0 0
        %2092 = vmatprep.subr.bf16.mxu0 0
        %2093 = vmatpush1.bf16.msra.mxu0 0
        %2094 = vmatprep.subr.bf16.mxu0 0
        %2095 = vmatpush1.bf16.msra.mxu0 0
        %2096 = vmatprep.subr.bf16.mxu0 0
        %2097 = vmatpush1.bf16.msra.mxu0 0
        %2098 = vmatprep.subr.bf16.mxu0 0
        %2099 = vmatpush1.bf16.msra.mxu0 0
        %2100 = vmatprep.subr.bf16.mxu0 0
        %2101 = vmatpush1.bf16.msra.mxu0 0
        %2102 = vmatprep.subr.bf16.mxu0 0
        %2103 = vmatpush1.bf16.msra.mxu0 0
        %2104 = vmatprep.subr.bf16.mxu0 0
        %2105 = vmatpush1.bf16.msra.mxu0 0
        %2106 = vmatprep.subr.bf16.mxu0 0
        %2107 = vmatpush1.bf16.msra.mxu0 0
        %2108 = vmatprep.subr.bf16.mxu0 0
        %2109 = vmatpush1.bf16.msra.mxu0 0
        %2110 = vmatprep.subr.bf16.mxu0 0
        %2111 = vmatpush1.bf16.msra.mxu0 0
        %2112 = vmatprep.subr.bf16.mxu0 0
        %2113 = vmatpush1.bf16.msra.mxu0 0
        %2114 = vmatprep.subr.bf16.mxu0 0
        %2115 = vmatpush1.bf16.msra.mxu0 0
        %2116 = vmatprep.subr.bf16.mxu0 0
        %2117 = vmatpush1.bf16.msra.mxu0 0
        %2118 = vmatprep.mubr.bf16.mxu0 0
        %2119 = vmatmul.mubr.bf16.gmra.mrb[0].mxu0 %v2084
        %v2120 = vpop.f32.mrb[0].mxu0
        %v2121 = vadd.f32 0.0, %v2120
        %v2122 = vpop.f32.mrb[0].mxu0
        %v2123 = vpop.f32.mrb[0].mxu0
        %v2124 = vadd.f32 0.0, %v2123
        %v2125 = vpop.f32.mrb[0].mxu0
        %2126 = vdwg.mxu0
        %v2127 = vpack.c.bf16 %v2124, %v2121
        %s2128 = scalar_lea.vmem %s9, 32
        %v2129 = vld [vmem:[%s2128] sm:$0xf]
        %v2130 = vld [vmem:[%s2128 + $0x4] sm:$0xf]
        %v2131 = vld [vmem:[%s2128 + $0x8] sm:$0xf]
        %v2132 = vld [vmem:[%s2128 + $0xc] sm:$0xf]
        %v2137 = vunpack.c.l.b16 %v2129
        %v2138 = vunpack.c.l.b16 %v2130
        %v2139 = vunpack.c.l.b16 %v2131
        %v2140 = vunpack.c.l.b16 %v2132
        %v2141 = vpack.c.b16 %v2138, %v2137
        %v2142 = vpack.c.b16 %v2140, %v2139
        %v2146 = vsel %vm955, %v2127, 0
        %2148 = vmatprep.subr.bf16.mxu0 0
        %2149 = vmatpush1.bf16.msra.mxu0 %v2141
        %2150 = vmatprep.subr.bf16.mxu0 0
        %2151 = vmatpush1.bf16.msra.mxu0 %v2142
        %2152 = vmatprep.subr.bf16.mxu0 0
        %2153 = vmatpush1.bf16.msra.mxu0 0
        %2154 = vmatprep.subr.bf16.mxu0 0
        %2155 = vmatpush1.bf16.msra.mxu0 0
        %2156 = vmatprep.subr.bf16.mxu0 0
        %2157 = vmatpush1.bf16.msra.mxu0 0
        %2158 = vmatprep.subr.bf16.mxu0 0
        %2159 = vmatpush1.bf16.msra.mxu0 0
        %2160 = vmatprep.subr.bf16.mxu0 0
        %2161 = vmatpush1.bf16.msra.mxu0 0
        %2162 = vmatprep.subr.bf16.mxu0 0
        %2163 = vmatpush1.bf16.msra.mxu0 0
        %2164 = vmatprep.subr.bf16.mxu0 0
        %2165 = vmatpush1.bf16.msra.mxu0 0
        %2166 = vmatprep.subr.bf16.mxu0 0
        %2167 = vmatpush1.bf16.msra.mxu0 0
        %2168 = vmatprep.subr.bf16.mxu0 0
        %2169 = vmatpush1.bf16.msra.mxu0 0
        %2170 = vmatprep.subr.bf16.mxu0 0
        %2171 = vmatpush1.bf16.msra.mxu0 0
        %2172 = vmatprep.subr.bf16.mxu0 0
        %2173 = vmatpush1.bf16.msra.mxu0 0
        %2174 = vmatprep.subr.bf16.mxu0 0
        %2175 = vmatpush1.bf16.msra.mxu0 0
        %2176 = vmatprep.subr.bf16.mxu0 0
        %2177 = vmatpush1.bf16.msra.mxu0 0
        %2178 = vmatprep.subr.bf16.mxu0 0
        %2179 = vmatpush1.bf16.msra.mxu0 0
        %2180 = vmatprep.mubr.bf16.mxu0 0
        %2181 = vmatmul.mubr.bf16.gmra.mrb[0].mxu0 %v2146
        %v2182 = vpop.f32.mrb[0].mxu0
        %v2183 = vadd.f32 0.0, %v2182
        %v2184 = vpop.f32.mrb[0].mxu0
        %v2185 = vpop.f32.mrb[0].mxu0
        %v2186 = vadd.f32 0.0, %v2185
        %v2187 = vpop.f32.mrb[0].mxu0
        %2188 = vdwg.mxu0
        %v2189 = vadd.f32 %v1664, %v2183
        %v2190 = vadd.f32 %v1665, %v2186
        %s2191 = scalar_lea.vmem %s3, 192
        %v2192 = vld [vmem:[%s2191] sm:$0xf]
        %v2193 = vld [vmem:[%s2191 + $0x4] sm:$0xf]
        %v2194 = vld [vmem:[%s2191 + $0x8] sm:$0xf]
        %v2195 = vld [vmem:[%s2191 + $0xc] sm:$0xf]
        %v2196 = vld [vmem:[%s2191 + $0x10] sm:$0xf]
        %v2197 = vld [vmem:[%s2191 + $0x14] sm:$0xf]
        %v2198 = vld [vmem:[%s2191 + $0x18] sm:$0xf]
        %v2199 = vld [vmem:[%s2191 + $0x1c] sm:$0xf]
        %v2200 = vld [vmem:[%s2191 + $0x20] sm:$0xf]
        %v2201 = vld [vmem:[%s2191 + $0x24] sm:$0xf]
        %v2202 = vld [vmem:[%s2191 + $0x28] sm:$0xf]
        %v2203 = vld [vmem:[%s2191 + $0x2c] sm:$0xf]
        %v2204 = vld [vmem:[%s2191 + $0x30] sm:$0xf]
        %v2205 = vld [vmem:[%s2191 + $0x34] sm:$0xf]
        %v2206 = vld [vmem:[%s2191 + $0x38] sm:$0xf]
        %v2207 = vld [vmem:[%s2191 + $0x3c] sm:$0xf]
        %s2208 = scalar_lea.vmem %s6, 3
        %v2209 = vld [vmem:[%s2208] sm:$0x1]
        %v2211 = vlaneseq
        %v2212 = vshrl.u32 %v2211, 7
        %v2213 = vsub.s32 0, %v2212
        %v2214 = vrot.slane %v2209, %v2213
        %v2232 = vunpack.c.l.b16 %v2192
        %v2233 = vunpack.c.l.b16 %v2193
        %v2234 = vunpack.c.l.b16 %v2194
        %v2235 = vunpack.c.l.b16 %v2195
        %v2236 = vunpack.c.l.b16 %v2196
        %v2237 = vunpack.c.l.b16 %v2197
        %v2238 = vunpack.c.l.b16 %v2198
        %v2239 = vunpack.c.l.b16 %v2199
        %v2240 = vunpack.c.l.b16 %v2200
        %v2241 = vunpack.c.l.b16 %v2201
        %v2242 = vunpack.c.l.b16 %v2202
        %v2243 = vunpack.c.l.b16 %v2203
        %v2244 = vunpack.c.l.b16 %v2204
        %v2245 = vunpack.c.l.b16 %v2205
        %v2246 = vunpack.c.l.b16 %v2206
        %v2247 = vunpack.c.l.b16 %v2207
        %v2248 = vpack.c.b16 %v2233, %v2232
        %v2249 = vpack.c.b16 %v2235, %v2234
        %v2250 = vpack.c.b16 %v2237, %v2236
        %v2251 = vpack.c.b16 %v2239, %v2238
        %v2252 = vpack.c.b16 %v2241, %v2240
        %v2253 = vpack.c.b16 %v2243, %v2242
        %v2254 = vpack.c.b16 %v2245, %v2244
        %v2255 = vpack.c.b16 %v2247, %v2246
        %2264 = vmatprep.subr.bf16.mxu0 0
        %2265 = vmatpush1.bf16.msra.mxu0 %v2248
        %2266 = vmatprep.subr.bf16.mxu0 0
        %2267 = vmatpush1.bf16.msra.mxu0 %v2249
        %2268 = vmatprep.subr.bf16.mxu0 0
        %2269 = vmatpush1.bf16.msra.mxu0 %v2250
        %2270 = vmatprep.subr.bf16.mxu0 0
        %2271 = vmatpush1.bf16.msra.mxu0 %v2251
        %2272 = vmatprep.subr.bf16.mxu0 0
        %2273 = vmatpush1.bf16.msra.mxu0 %v2252
        %2274 = vmatprep.subr.bf16.mxu0 0
        %2275 = vmatpush1.bf16.msra.mxu0 %v2253
        %2276 = vmatprep.subr.bf16.mxu0 0
        %2277 = vmatpush1.bf16.msra.mxu0 %v2254
        %2278 = vmatprep.subr.bf16.mxu0 0
        %2279 = vmatpush1.bf16.msra.mxu0 %v2255
        %2280 = vmatprep.subr.bf16.mxu0 0
        %2281 = vmatpush1.bf16.msra.mxu0 0
        %2282 = vmatprep.subr.bf16.mxu0 0
        %2283 = vmatpush1.bf16.msra.mxu0 0
        %2284 = vmatprep.subr.bf16.mxu0 0
        %2285 = vmatpush1.bf16.msra.mxu0 0
        %2286 = vmatprep.subr.bf16.mxu0 0
        %2287 = vmatpush1.bf16.msra.mxu0 0
        %2288 = vmatprep.subr.bf16.mxu0 0
        %2289 = vmatpush1.bf16.msra.mxu0 0
        %2290 = vmatprep.subr.bf16.mxu0 0
        %2291 = vmatpush1.bf16.msra.mxu0 0
        %2292 = vmatprep.subr.bf16.mxu0 0
        %2293 = vmatpush1.bf16.msra.mxu0 0
        %2294 = vmatprep.subr.bf16.mxu0 0
        %2295 = vmatpush1.bf16.msra.mxu0 0
        %2296 = vmatprep.mubr.bf16.mxu0 0
        %2297 = vmatmul.mubr.bf16.gmra.mrb[0].mxu0 %v613
        %v2298 = vpop.f32.mrb[0].mxu0
        %v2299 = vadd.f32 %v2214, %v2298
        %v2300 = vpop.f32.mrb[0].mxu0
        %v2301 = vpop.f32.mrb[0].mxu0
        %v2302 = vadd.f32 %v2214, %v2301
        %v2303 = vpop.f32.mrb[0].mxu0
        %2304 = vdwg.mxu0
        %v2305 = vmul.f32 %v2299, 0.17677669
        %v2306 = vmul.f32 %v2302, 0.17677669
        %s2307 = scalar_lea.vmem %s4, 192
        %v2308 = vld [vmem:[%s2307] sm:$0xf]
        %v2309 = vld [vmem:[%s2307 + $0x4] sm:$0xf]
        %v2310 = vld [vmem:[%s2307 + $0x8] sm:$0xf]
        %v2311 = vld [vmem:[%s2307 + $0xc] sm:$0xf]
        %v2312 = vld [vmem:[%s2307 + $0x10] sm:$0xf]
        %v2313 = vld [vmem:[%s2307 + $0x14] sm:$0xf]
        %v2314 = vld [vmem:[%s2307 + $0x18] sm:$0xf]
        %v2315 = vld [vmem:[%s2307 + $0x1c] sm:$0xf]
        %v2316 = vld [vmem:[%s2307 + $0x20] sm:$0xf]
        %v2317 = vld [vmem:[%s2307 + $0x24] sm:$0xf]
        %v2318 = vld [vmem:[%s2307 + $0x28] sm:$0xf]
        %v2319 = vld [vmem:[%s2307 + $0x2c] sm:$0xf]
        %v2320 = vld [vmem:[%s2307 + $0x30] sm:$0xf]
        %v2321 = vld [vmem:[%s2307 + $0x34] sm:$0xf]
        %v2322 = vld [vmem:[%s2307 + $0x38] sm:$0xf]
        %v2323 = vld [vmem:[%s2307 + $0x3c] sm:$0xf]
        %s2324 = scalar_lea.vmem %s7, 3
        %v2325 = vld [vmem:[%s2324] sm:$0x1]
        %v2327 = vlaneseq
        %v2328 = vshrl.u32 %v2327, 7
        %v2329 = vsub.s32 0, %v2328
        %v2330 = vrot.slane %v2325, %v2329
        %v2348 = vunpack.c.l.b16 %v2308
        %v2349 = vunpack.c.l.b16 %v2309
        %v2350 = vunpack.c.l.b16 %v2310
        %v2351 = vunpack.c.l.b16 %v2311
        %v2352 = vunpack.c.l.b16 %v2312
        %v2353 = vunpack.c.l.b16 %v2313
        %v2354 = vunpack.c.l.b16 %v2314
        %v2355 = vunpack.c.l.b16 %v2315
        %v2356 = vunpack.c.l.b16 %v2316
        %v2357 = vunpack.c.l.b16 %v2317
        %v2358 = vunpack.c.l.b16 %v2318
        %v2359 = vunpack.c.l.b16 %v2319
        %v2360 = vunpack.c.l.b16 %v2320
        %v2361 = vunpack.c.l.b16 %v2321
        %v2362 = vunpack.c.l.b16 %v2322
        %v2363 = vunpack.c.l.b16 %v2323
        %v2364 = vpack.c.b16 %v2349, %v2348
        %v2365 = vpack.c.b16 %v2351, %v2350
        %v2366 = vpack.c.b16 %v2353, %v2352
        %v2367 = vpack.c.b16 %v2355, %v2354
        %v2368 = vpack.c.b16 %v2357, %v2356
        %v2369 = vpack.c.b16 %v2359, %v2358
        %v2370 = vpack.c.b16 %v2361, %v2360
        %v2371 = vpack.c.b16 %v2363, %v2362
        %2380 = vmatprep.subr.bf16.mxu0 0
        %2381 = vmatpush1.bf16.msra.mxu0 %v2364
        %2382 = vmatprep.subr.bf16.mxu0 0
        %2383 = vmatpush1.bf16.msra.mxu0 %v2365
        %2384 = vmatprep.subr.bf16.mxu0 0
        %2385 = vmatpush1.bf16.msra.mxu0 %v2366
        %2386 = vmatprep.subr.bf16.mxu0 0
        %2387 = vmatpush1.bf16.msra.mxu0 %v2367
        %2388 = vmatprep.subr.bf16.mxu0 0
        %2389 = vmatpush1.bf16.msra.mxu0 %v2368
        %2390 = vmatprep.subr.bf16.mxu0 0
        %2391 = vmatpush1.bf16.msra.mxu0 %v2369
        %2392 = vmatprep.subr.bf16.mxu0 0
        %2393 = vmatpush1.bf16.msra.mxu0 %v2370
        %2394 = vmatprep.subr.bf16.mxu0 0
        %2395 = vmatpush1.bf16.msra.mxu0 %v2371
        %2396 = vmatprep.subr.bf16.mxu0 0
        %2397 = vmatpush1.bf16.msra.mxu0 0
        %2398 = vmatprep.subr.bf16.mxu0 0
        %2399 = vmatpush1.bf16.msra.mxu0 0
        %2400 = vmatprep.subr.bf16.mxu0 0
        %2401 = vmatpush1.bf16.msra.mxu0 0
        %2402 = vmatprep.subr.bf16.mxu0 0
        %2403 = vmatpush1.bf16.msra.mxu0 0
        %2404 = vmatprep.subr.bf16.mxu0 0
        %2405 = vmatpush1.bf16.msra.mxu0 0
        %2406 = vmatprep.subr.bf16.mxu0 0
        %2407 = vmatpush1.bf16.msra.mxu0 0
        %2408 = vmatprep.subr.bf16.mxu0 0
        %2409 = vmatpush1.bf16.msra.mxu0 0
        %2410 = vmatprep.subr.bf16.mxu0 0
        %2411 = vmatpush1.bf16.msra.mxu0 0
        %2412 = vmatprep.mubr.bf16.mxu0 0
        %2413 = vmatmul.mubr.bf16.gmra.mrb[0].mxu0 %v613
        %v2414 = vpop.f32.mrb[0].mxu0
        %v2415 = vadd.f32 %v2330, %v2414
        %v2416 = vpop.f32.mrb[0].mxu0
        %v2417 = vpop.f32.mrb[0].mxu0
        %v2418 = vadd.f32 %v2330, %v2417
        %v2419 = vpop.f32.mrb[0].mxu0
        %2420 = vdwg.mxu0
        %s2421 = scalar_lea.vmem %s5, 192
        %v2422 = vld [vmem:[%s2421] sm:$0xf]
        %v2423 = vld [vmem:[%s2421 + $0x4] sm:$0xf]
        %v2424 = vld [vmem:[%s2421 + $0x8] sm:$0xf]
        %v2425 = vld [vmem:[%s2421 + $0xc] sm:$0xf]
        %v2426 = vld [vmem:[%s2421 + $0x10] sm:$0xf]
        %v2427 = vld [vmem:[%s2421 + $0x14] sm:$0xf]
        %v2428 = vld [vmem:[%s2421 + $0x18] sm:$0xf]
        %v2429 = vld [vmem:[%s2421 + $0x1c] sm:$0xf]
        %v2430 = vld [vmem:[%s2421 + $0x20] sm:$0xf]
        %v2431 = vld [vmem:[%s2421 + $0x24] sm:$0xf]
        %v2432 = vld [vmem:[%s2421 + $0x28] sm:$0xf]
        %v2433 = vld [vmem:[%s2421 + $0x2c] sm:$0xf]
        %v2434 = vld [vmem:[%s2421 + $0x30] sm:$0xf]
        %v2435 = vld [vmem:[%s2421 + $0x34] sm:$0xf]
        %v2436 = vld [vmem:[%s2421 + $0x38] sm:$0xf]
        %v2437 = vld [vmem:[%s2421 + $0x3c] sm:$0xf]
        %s2438 = scalar_lea.vmem %s8, 3
        %v2439 = vld [vmem:[%s2438] sm:$0x1]
        %v2441 = vlaneseq
        %v2442 = vshrl.u32 %v2441, 7
        %v2443 = vsub.s32 0, %v2442
        %v2444 = vrot.slane %v2439, %v2443
        %v2462 = vunpack.c.l.b16 %v2422
        %v2463 = vunpack.c.l.b16 %v2423
        %v2464 = vunpack.c.l.b16 %v2424
        %v2465 = vunpack.c.l.b16 %v2425
        %v2466 = vunpack.c.l.b16 %v2426
        %v2467 = vunpack.c.l.b16 %v2427
        %v2468 = vunpack.c.l.b16 %v2428
        %v2469 = vunpack.c.l.b16 %v2429
        %v2470 = vunpack.c.l.b16 %v2430
        %v2471 = vunpack.c.l.b16 %v2431
        %v2472 = vunpack.c.l.b16 %v2432
        %v2473 = vunpack.c.l.b16 %v2433
        %v2474 = vunpack.c.l.b16 %v2434
        %v2475 = vunpack.c.l.b16 %v2435
        %v2476 = vunpack.c.l.b16 %v2436
        %v2477 = vunpack.c.l.b16 %v2437
        %v2478 = vpack.c.b16 %v2463, %v2462
        %v2479 = vpack.c.b16 %v2465, %v2464
        %v2480 = vpack.c.b16 %v2467, %v2466
        %v2481 = vpack.c.b16 %v2469, %v2468
        %v2482 = vpack.c.b16 %v2471, %v2470
        %v2483 = vpack.c.b16 %v2473, %v2472
        %v2484 = vpack.c.b16 %v2475, %v2474
        %v2485 = vpack.c.b16 %v2477, %v2476
        %2494 = vmatprep.subr.bf16.mxu0 0
        %2495 = vmatpush1.bf16.msra.mxu0 %v2478
        %2496 = vmatprep.subr.bf16.mxu0 0
        %2497 = vmatpush1.bf16.msra.mxu0 %v2479
        %2498 = vmatprep.subr.bf16.mxu0 0
        %2499 = vmatpush1.bf16.msra.mxu0 %v2480
        %2500 = vmatprep.subr.bf16.mxu0 0
        %2501 = vmatpush1.bf16.msra.mxu0 %v2481
        %2502 = vmatprep.subr.bf16.mxu0 0
        %2503 = vmatpush1.bf16.msra.mxu0 %v2482
        %2504 = vmatprep.subr.bf16.mxu0 0
        %2505 = vmatpush1.bf16.msra.mxu0 %v2483
        %2506 = vmatprep.subr.bf16.mxu0 0
        %2507 = vmatpush1.bf16.msra.mxu0 %v2484
        %2508 = vmatprep.subr.bf16.mxu0 0
        %2509 = vmatpush1.bf16.msra.mxu0 %v2485
        %2510 = vmatprep.subr.bf16.mxu0 0
        %2511 = vmatpush1.bf16.msra.mxu0 0
        %2512 = vmatprep.subr.bf16.mxu0 0
        %2513 = vmatpush1.bf16.msra.mxu0 0
        %2514 = vmatprep.subr.bf16.mxu0 0
        %2515 = vmatpush1.bf16.msra.mxu0 0
        %2516 = vmatprep.subr.bf16.mxu0 0
        %2517 = vmatpush1.bf16.msra.mxu0 0
        %2518 = vmatprep.subr.bf16.mxu0 0
        %2519 = vmatpush1.bf16.msra.mxu0 0
        %2520 = vmatprep.subr.bf16.mxu0 0
        %2521 = vmatpush1.bf16.msra.mxu0 0
        %2522 = vmatprep.subr.bf16.mxu0 0
        %2523 = vmatpush1.bf16.msra.mxu0 0
        %2524 = vmatprep.subr.bf16.mxu0 0
        %2525 = vmatpush1.bf16.msra.mxu0 0
        %2526 = vmatprep.mubr.bf16.mxu0 0
        %2527 = vmatmul.mubr.bf16.gmra.mrb[0].mxu0 %v613
        %v2528 = vpop.f32.mrb[0].mxu0
        %v2529 = vadd.f32 %v2444, %v2528
        %v2530 = vpop.f32.mrb[0].mxu0
        %v2531 = vpop.f32.mrb[0].mxu0
        %v2532 = vadd.f32 %v2444, %v2531
        %v2533 = vpop.f32.mrb[0].mxu0
        %2534 = vdwg.mxu0
        %v2535 = vpack.c.bf16 %v2306, %v2305
        %v2536 = vpack.c.bf16 %v2418, %v2415
        %v2538 = vsel %vm955, %v2535, 0
        %v2541 = vsel %vm955, %v2536, 0
        %2543 = vmatprep.subr.bf16.mxu0 0
        %2544 = vmatpush1.bf16.xpose.msra.mxu0 %v2541
        %2545 = vmatprep.subr.bf16.mxu0 0
        %2546 = vmatpush1.bf16.xpose.msra.mxu0 0
        %2547 = vmatprep.subr.bf16.mxu0 0
        %2548 = vmatpush1.bf16.xpose.msra.mxu0 0
        %2549 = vmatprep.subr.bf16.mxu0 0
        %2550 = vmatpush1.bf16.xpose.msra.mxu0 0
        %2551 = vmatprep.subr.bf16.mxu0 0
        %2552 = vmatpush1.bf16.xpose.msra.mxu0 0
        %2553 = vmatprep.subr.bf16.mxu0 0
        %2554 = vmatpush1.bf16.xpose.msra.mxu0 0
        %2555 = vmatprep.subr.bf16.mxu0 0
        %2556 = vmatpush1.bf16.xpose.msra.mxu0 0
        %2557 = vmatprep.subr.bf16.mxu0 0
        %2558 = vmatpush1.bf16.xpose.msra.mxu0 0
        %2559 = vmatprep.subr.bf16.mxu0 0
        %2560 = vmatpush1.bf16.xpose.msra.mxu0 0
        %2561 = vmatprep.subr.bf16.mxu0 0
        %2562 = vmatpush1.bf16.xpose.msra.mxu0 0
        %2563 = vmatprep.subr.bf16.mxu0 0
        %2564 = vmatpush1.bf16.xpose.msra.mxu0 0
        %2565 = vmatprep.subr.bf16.mxu0 0
        %2566 = vmatpush1.bf16.xpose.msra.mxu0 0
        %2567 = vmatprep.subr.bf16.mxu0 0
        %2568 = vmatpush1.bf16.xpose.msra.mxu0 0
        %2569 = vmatprep.subr.bf16.mxu0 0
        %2570 = vmatpush1.bf16.xpose.msra.mxu0 0
        %2571 = vmatprep.subr.bf16.mxu0 0
        %2572 = vmatpush1.bf16.xpose.msra.mxu0 0
        %2573 = vmatprep.subr.bf16.mxu0 0
        %2574 = vmatpush1.bf16.xpose.msra.mxu0 0
        %2575 = vmatprep.mubr.bf16.mxu0 0
        %2576 = vmatmul.mubr.bf16.gmra.mrb[0].mxu0 %v2538
        %v2577 = vpop.f32.mrb[0].mxu0
        %v2578 = vadd.f32 0.0, %v2577
        %v2579 = vpop.f32.mrb[0].mxu0
        %v2580 = vpop.f32.mrb[0].mxu0
        %v2581 = vadd.f32 0.0, %v2580
        %v2582 = vpop.f32.mrb[0].mxu0
        %2583 = vdwg.mxu0
        %v2584 = vsel %vm1003, %v2578, -inf
        %2585 = vmax.xlane.f32.xlu0 %v2584
        %v2586 = vpop.xlane.xlu0 %2585
        %v2587 = vsel %vm1003, %v2581, -inf
        %2588 = vmax.xlane.f32.xlu0 %v2587
        %v2589 = vpop.xlane.xlu0 %2588
        %v2590 = vsub.f32 %v2578, %v2586
        %v2591 = vsub.f32 %v2581, %v2589
        %v2592 = vmul.f32 %v2590, 1.442695
        %v2593 = vpow.pop %v2592
        %v2594 = vmul.f32 %v2591, 1.442695
        %v2595 = vpow.pop %v2594
        %v2596 = vsel %vm1003, %v2593, 0.0
        %2597 = vadd.xlane.f32.xlu0 %v2596
        %v2598 = vpop.xlane.xlu0 %2597
        %v2599 = vsel %vm1003, %v2595, 0.0
        %2600 = vadd.xlane.f32.xlu0 %v2599
        %v2601 = vpop.xlane.xlu0 %2600
        %v2602 = vrcp.pop %v2598
        %v2603 = vmul.f32 %v2593, %v2602
        %v2604 = vrcp.pop %v2601
        %v2605 = vmul.f32 %v2595, %v2604
        %v2606 = vpack.c.bf16 %v2605, %v2603
        %v2607 = vpack.c.bf16 %v2532, %v2529
        %v2609 = vsel %vm1003, %v2606, 0
        %2611 = vmatprep.subr.bf16.mxu0 0
        %2612 = vmatpush1.bf16.msra.mxu0 %v2607
        %2613 = vmatprep.subr.bf16.mxu0 0
        %2614 = vmatpush1.bf16.msra.mxu0 0
        %2615 = vmatprep.subr.bf16.mxu0 0
        %2616 = vmatpush1.bf16.msra.mxu0 0
        %2617 = vmatprep.subr.bf16.mxu0 0
        %2618 = vmatpush1.bf16.msra.mxu0 0
        %2619 = vmatprep.subr.bf16.mxu0 0
        %2620 = vmatpush1.bf16.msra.mxu0 0
        %2621 = vmatprep.subr.bf16.mxu0 0
        %2622 = vmatpush1.bf16.msra.mxu0 0
        %2623 = vmatprep.subr.bf16.mxu0 0
        %2624 = vmatpush1.bf16.msra.mxu0 0
        %2625 = vmatprep.subr.bf16.mxu0 0
        %2626 = vmatpush1.bf16.msra.mxu0 0
        %2627 = vmatprep.subr.bf16.mxu0 0
        %2628 = vmatpush1.bf16.msra.mxu0 0
        %2629 = vmatprep.subr.bf16.mxu0 0
        %2630 = vmatpush1.bf16.msra.mxu0 0
        %2631 = vmatprep.subr.bf16.mxu0 0
        %2632 = vmatpush1.bf16.msra.mxu0 0
        %2633 = vmatprep.subr.bf16.mxu0 0
        %2634 = vmatpush1.bf16.msra.mxu0 0
        %2635 = vmatprep.subr.bf16.mxu0 0
        %2636 = vmatpush1.bf16.msra.mxu0 0
        %2637 = vmatprep.subr.bf16.mxu0 0
        %2638 = vmatpush1.bf16.msra.mxu0 0
        %2639 = vmatprep.subr.bf16.mxu0 0
        %2640 = vmatpush1.bf16.msra.mxu0 0
        %2641 = vmatprep.subr.bf16.mxu0 0
        %2642 = vmatpush1.bf16.msra.mxu0 0
        %2643 = vmatprep.mubr.bf16.mxu0 0
        %2644 = vmatmul.mubr.bf16.gmra.mrb[0].mxu0 %v2609
        %v2645 = vpop.f32.mrb[0].mxu0
        %v2646 = vadd.f32 0.0, %v2645
        %v2647 = vpop.f32.mrb[0].mxu0
        %v2648 = vpop.f32.mrb[0].mxu0
        %v2649 = vadd.f32 0.0, %v2648
        %v2650 = vpop.f32.mrb[0].mxu0
        %2651 = vdwg.mxu0
        %v2652 = vpack.c.bf16 %v2649, %v2646
        %s2653 = scalar_lea.vmem %s9, 48
        %v2654 = vld [vmem:[%s2653] sm:$0xf]
        %v2655 = vld [vmem:[%s2653 + $0x4] sm:$0xf]
        %v2656 = vld [vmem:[%s2653 + $0x8] sm:$0xf]
        %v2657 = vld [vmem:[%s2653 + $0xc] sm:$0xf]
        %v2662 = vunpack.c.l.b16 %v2654
        %v2663 = vunpack.c.l.b16 %v2655
        %v2664 = vunpack.c.l.b16 %v2656
        %v2665 = vunpack.c.l.b16 %v2657
        %v2666 = vpack.c.b16 %v2663, %v2662
        %v2667 = vpack.c.b16 %v2665, %v2664
        %v2671 = vsel %vm955, %v2652, 0
        %2673 = vmatprep.subr.bf16.mxu0 0
        %2674 = vmatpush1.bf16.msra.mxu0 %v2666
        %2675 = vmatprep.subr.bf16.mxu0 0
        %2676 = vmatpush1.bf16.msra.mxu0 %v2667
        %2677 = vmatprep.subr.bf16.mxu0 0
        %2678 = vmatpush1.bf16.msra.mxu0 0
        %2679 = vmatprep.subr.bf16.mxu0 0
        %2680 = vmatpush1.bf16.msra.mxu0 0
        %2681 = vmatprep.subr.bf16.mxu0 0
        %2682 = vmatpush1.bf16.msra.mxu0 0
        %2683 = vmatprep.subr.bf16.mxu0 0
        %2684 = vmatpush1.bf16.msra.mxu0 0
        %2685 = vmatprep.subr.bf16.mxu0 0
        %2686 = vmatpush1.bf16.msra.mxu0 0
        %2687 = vmatprep.subr.bf16.mxu0 0
        %2688 = vmatpush1.bf16.msra.mxu0 0
        %2689 = vmatprep.subr.bf16.mxu0 0
        %2690 = vmatpush1.bf16.msra.mxu0 0
        %2691 = vmatprep.subr.bf16.mxu0 0
        %2692 = vmatpush1.bf16.msra.mxu0 0
        %2693 = vmatprep.subr.bf16.mxu0 0
        %2694 = vmatpush1.bf16.msra.mxu0 0
        %2695 = vmatprep.subr.bf16.mxu0 0
        %2696 = vmatpush1.bf16.msra.mxu0 0
        %2697 = vmatprep.subr.bf16.mxu0 0
        %2698 = vmatpush1.bf16.msra.mxu0 0
        %2699 = vmatprep.subr.bf16.mxu0 0
        %2700 = vmatpush1.bf16.msra.mxu0 0
        %2701 = vmatprep.subr.bf16.mxu0 0
        %2702 = vmatpush1.bf16.msra.mxu0 0
        %2703 = vmatprep.subr.bf16.mxu0 0
        %2704 = vmatpush1.bf16.msra.mxu0 0
        %2705 = vmatprep.mubr.bf16.mxu0 0
        %2706 = vmatmul.mubr.bf16.gmra.mrb[0].mxu0 %v2671
        %v2707 = vpop.f32.mrb[0].mxu0
        %v2708 = vadd.f32 0.0, %v2707
        %v2709 = vpop.f32.mrb[0].mxu0
        %v2710 = vpop.f32.mrb[0].mxu0
        %v2711 = vadd.f32 0.0, %v2710
        %v2712 = vpop.f32.mrb[0].mxu0
        %2713 = vdwg.mxu0
        %v2714 = vadd.f32 %v2189, %v2708
        %v2715 = vadd.f32 %v2190, %v2711
        %v2716 = vadd.f32 %v570, %v2714
        %v2717 = vadd.f32 %v571, %v2715
        %2718 = vst [vmem:[%s561] sm:$0xff] %v2716
        %2719 = vst [vmem:[%s561 + $0x8] sm:$0xff] %v2717
        %v2720 = vld [vmem:[%s11] sm:$0x1]
        %v2721 = vld [vmem:[%s12] sm:$0x1]
        %2722 = vadd.xlane.f32.xlu0 %v2716
        %v2723 = vpop.xlane.xlu0 %2722
        %2724 = vadd.xlane.f32.xlu0 %v2717
        %v2725 = vpop.xlane.xlu0 %2724
        %v2726 = vmul.f32 %v2723, %v578
        %v2727 = vmul.f32 %v2725, %v578
        %v2728 = vsub.f32 %v2716, %v2726
        %v2729 = vsub.f32 %v2717, %v2727
        %v2730 = vmul.f32 %v2728, %v2728
        %v2731 = vmul.f32 %v2729, %v2729
        %2732 = vadd.xlane.f32.xlu0 %v2730
        %v2733 = vpop.xlane.xlu0 %2732
        %2734 = vadd.xlane.f32.xlu0 %v2731
        %v2735 = vpop.xlane.xlu0 %2734
        %v2736 = vmul.f32 %v2733, %v578
        %v2737 = vmul.f32 %v2735, %v578
        %v2738 = vadd.f32 %v2736, 1e-05
        %v2739 = vadd.f32 %v2737, 1e-05
        %v2740 = vrsqrt.pop %v2738
        %v2741 = vrsqrt.pop %v2739
        %v2742 = vmul.f32 %v2728, %v2740
        %v2743 = vmul.f32 %v2729, %v2741
        %v2745 = vlaneseq
        %v2746 = vshrl.u32 %v2745, 7
        %v2747 = vsub.s32 0, %v2746
        %v2748 = vrot.slane %v2720, %v2747
        %v2750 = vmul.f32 %v2742, %v2748
        %v2751 = vmul.f32 %v2743, %v2748
        %v2753 = vlaneseq
        %v2754 = vshrl.u32 %v2753, 7
        %v2755 = vsub.s32 0, %v2754
        %v2756 = vrot.slane %v2721, %v2755
        %v2758 = vadd.f32 %v2750, %v2756
        %v2759 = vadd.f32 %v2751, %v2756
        %v2760 = vpack.c.bf16 %v2759, %v2758
        %v2761 = vld [vmem:[%s13] sm:$0xf]
        %v2762 = vld [vmem:[%s13 + $0x4] sm:$0xf]
        %v2763 = vld [vmem:[%s13 + $0x8] sm:$0xf]
        %v2764 = vld [vmem:[%s13 + $0xc] sm:$0xf]
        %v2765 = vld [vmem:[%s13 + $0x10] sm:$0xf]
        %v2766 = vld [vmem:[%s13 + $0x14] sm:$0xf]
        %v2767 = vld [vmem:[%s13 + $0x18] sm:$0xf]
        %v2768 = vld [vmem:[%s13 + $0x1c] sm:$0xf]
        %v2769 = vld [vmem:[%s13 + $0x20] sm:$0xf]
        %v2770 = vld [vmem:[%s13 + $0x24] sm:$0xf]
        %v2771 = vld [vmem:[%s13 + $0x28] sm:$0xf]
        %v2772 = vld [vmem:[%s13 + $0x2c] sm:$0xf]
        %v2773 = vld [vmem:[%s13 + $0x30] sm:$0xf]
        %v2774 = vld [vmem:[%s13 + $0x34] sm:$0xf]
        %v2775 = vld [vmem:[%s13 + $0x38] sm:$0xf]
        %v2776 = vld [vmem:[%s13 + $0x3c] sm:$0xf]
        %v2777 = vld [vmem:[%s14] sm:$0x1]
        %v2779 = vlaneseq
        %v2780 = vshrl.u32 %v2779, 7
        %v2781 = vsub.s32 0, %v2780
        %v2782 = vrot.slane %v2777, %v2781
        %v2800 = vunpack.c.l.b16 %v2761
        %v2801 = vunpack.c.l.b16 %v2762
        %v2802 = vunpack.c.l.b16 %v2763
        %v2803 = vunpack.c.l.b16 %v2764
        %v2804 = vunpack.c.l.b16 %v2765
        %v2805 = vunpack.c.l.b16 %v2766
        %v2806 = vunpack.c.l.b16 %v2767
        %v2807 = vunpack.c.l.b16 %v2768
        %v2808 = vunpack.c.l.b16 %v2769
        %v2809 = vunpack.c.l.b16 %v2770
        %v2810 = vunpack.c.l.b16 %v2771
        %v2811 = vunpack.c.l.b16 %v2772
        %v2812 = vunpack.c.l.b16 %v2773
        %v2813 = vunpack.c.l.b16 %v2774
        %v2814 = vunpack.c.l.b16 %v2775
        %v2815 = vunpack.c.l.b16 %v2776
        %v2816 = vpack.c.b16 %v2801, %v2800
        %v2817 = vpack.c.b16 %v2803, %v2802
        %v2818 = vpack.c.b16 %v2805, %v2804
        %v2819 = vpack.c.b16 %v2807, %v2806
        %v2820 = vpack.c.b16 %v2809, %v2808
        %v2821 = vpack.c.b16 %v2811, %v2810
        %v2822 = vpack.c.b16 %v2813, %v2812
        %v2823 = vpack.c.b16 %v2815, %v2814
        %2832 = vmatprep.subr.bf16.mxu0 0
        %2833 = vmatpush1.bf16.msra.mxu0 %v2816
        %2834 = vmatprep.subr.bf16.mxu0 0
        %2835 = vmatpush1.bf16.msra.mxu0 %v2817
        %2836 = vmatprep.subr.bf16.mxu0 0
        %2837 = vmatpush1.bf16.msra.mxu0 %v2818
        %2838 = vmatprep.subr.bf16.mxu0 0
        %2839 = vmatpush1.bf16.msra.mxu0 %v2819
        %2840 = vmatprep.subr.bf16.mxu0 0
        %2841 = vmatpush1.bf16.msra.mxu0 %v2820
        %2842 = vmatprep.subr.bf16.mxu0 0
        %2843 = vmatpush1.bf16.msra.mxu0 %v2821
        %2844 = vmatprep.subr.bf16.mxu0 0
        %2845 = vmatpush1.bf16.msra.mxu0 %v2822
        %2846 = vmatprep.subr.bf16.mxu0 0
        %2847 = vmatpush1.bf16.msra.mxu0 %v2823
        %2848 = vmatprep.subr.bf16.mxu0 0
        %2849 = vmatpush1.bf16.msra.mxu0 0
        %2850 = vmatprep.subr.bf16.mxu0 0
        %2851 = vmatpush1.bf16.msra.mxu0 0
        %2852 = vmatprep.subr.bf16.mxu0 0
        %2853 = vmatpush1.bf16.msra.mxu0 0
        %2854 = vmatprep.subr.bf16.mxu0 0
        %2855 = vmatpush1.bf16.msra.mxu0 0
        %2856 = vmatprep.subr.bf16.mxu0 0
        %2857 = vmatpush1.bf16.msra.mxu0 0
        %2858 = vmatprep.subr.bf16.mxu0 0
        %2859 = vmatpush1.bf16.msra.mxu0 0
        %2860 = vmatprep.subr.bf16.mxu0 0
        %2861 = vmatpush1.bf16.msra.mxu0 0
        %2862 = vmatprep.subr.bf16.mxu0 0
        %2863 = vmatpush1.bf16.msra.mxu0 0
        %2864 = vmatprep.mubr.bf16.mxu0 0
        %2865 = vmatmul.mubr.bf16.gmra.mrb[0].mxu0 %v2760
        %v2866 = vpop.f32.mrb[0].mxu0
        %v2867 = vadd.f32 %v2782, %v2866
        %v2868 = vpop.f32.mrb[0].mxu0
        %v2869 = vpop.f32.mrb[0].mxu0
        %v2870 = vadd.f32 %v2782, %v2869
        %v2871 = vpop.f32.mrb[0].mxu0
        %2872 = vdwg.mxu0
        %v2873 = vpack.c.bf16 %v2870, %v2867
        %v2875 = vunpack.c.l.b16 %v2873
        %v2876 = vunpack.c.h.b16 %v2873
        %v2877 = vpack.c.b16 %v2875, %v2875
        %v2878 = vpack.c.b16 %v2876, %v2876
        %2881 = vst [vmem:[%s568] sm:$0xf] %v2877
        %2882 = vst [vmem:[%s568 + $0x4] sm:$0xf] %v2878
        %s2883 = sand.u32 %s362, 1
        %s2884 = scalar_lea.sflag [#allocation4], %s2883
        %s2885 = sand.u32 %s362, 1
        %s2886 = smul.addr %s2885, 16
        %s2887 = scalar_lea.vmem [#allocation3], %s2886
        %s2888 = sand.u32 %s388, 1
        %s2889 = scalar_lea.sflag [#allocation6], %s2888
        %s2890 = sand.u32 %s388, 1
        %s2891 = smul.addr %s2890, 8
        %s2892 = scalar_lea.vmem [#allocation5], %s2891
        // Predicated region
        $region119: #{tpu_custom_call.1} parent=113 // pred_check
          %p2893 = pneg %p372
        $region120: #{tpu_custom_call.1} parent=113 // pred_check_branch
          %2895 = sbr.rel (%p2893) target = $region122
        $region121: #{tpu_custom_call.1} parent=113 // pred_region
          %s2897 = ssub.s32 256, 256
          %2898 = vsyncadd %s2884, %s2897
          %s2899 = smul.addr %s34, 2
          %s2900 = smul.addr %s2899, 128
          %s2901 = scalar_lea.hbm %s15, %s2900
          %s2902 = sshll.u32 %s2887, 4
          %s2903 = int_to_ptr.vmem [resolvable:$true] %s2902
          %2908 = dma.vmem_to_hbm [thread:$0]  %s2903, 256, %s2901, %s2884, 128, 128, 8
        $region122: #{tpu_custom_call.1} parent=113 // pred_fallthru
          _
        // Predicated region
        $region123: #{tpu_custom_call.1} parent=113 // pred_check
          %p2909 = pneg %p398
        $region124: #{tpu_custom_call.1} parent=113 // pred_check_branch
          %2911 = sbr.rel (%p2909) target = $region126
        $region125: #{tpu_custom_call.1} parent=113 // pred_region
          %s2913 = ssub.s32 128, 128
          %2914 = vsyncadd %s2889, %s2913
          %s2915 = smul.addr %s34, 2
          %s2916 = smul.addr %s2915, 64
          %s2917 = scalar_lea.hbm %s16, %s2916
          %s2918 = sshll.u32 %s2892, 4
          %s2919 = int_to_ptr.vmem [resolvable:$true] %s2918
          %2924 = dma.vmem_to_hbm [thread:$0]  %s2919, 128, %s2917, %s2889, 64, 64, 4
        $region126: #{tpu_custom_call.1} parent=113 // pred_fallthru
          _
      $region114: #{tpu_custom_call.1} parent=5 // pred_fallthru
        _
      %p2925 = scmp.le.s32.totalorder 2, %s29
      // Predicated region
      $region127: #{tpu_custom_call.1} parent=5 // pred_check
        %p2926 = pneg %p2925
      $region128: #{tpu_custom_call.1} parent=5 // pred_check_branch
        %2928 = sbr.rel (%p2926) target = $region130
      $region129: #{tpu_custom_call.1} parent=5 // pred_region
        %s2929 = ssub.s32 %s29, 2
        // Predicated region
        $region131: #{tpu_custom_call.1} parent=129 // pred_check
          %p2930 = pneg %p378
        $region132: #{tpu_custom_call.1} parent=129 // pred_check_branch
          %2932 = sbr.rel (%p2930) target = $region134
        $region133: #{tpu_custom_call.1} parent=129 // pred_region
          %s2933 = sand.u32 %s363, 1
          %s2934 = scalar_lea.sflag [#allocation4], %s2933
          %s2935 = sand.u32 %s363, 1
          %s2936 = smul.addr %s2935, 16
          %s2937 = scalar_lea.vmem [#allocation3], %s2936
          %2938 = dma.done %s2934, 256
        $region134: #{tpu_custom_call.1} parent=129 // pred_fallthru
          _
        // Predicated region
        $region135: #{tpu_custom_call.1} parent=129 // pred_check
          %p2939 = pneg %p404
        $region136: #{tpu_custom_call.1} parent=129 // pred_check_branch
          %2941 = sbr.rel (%p2939) target = $region138
        $region137: #{tpu_custom_call.1} parent=129 // pred_region
          %s2942 = sand.u32 %s389, 1
          %s2943 = scalar_lea.sflag [#allocation6], %s2942
          %s2944 = sand.u32 %s389, 1
          %s2945 = smul.addr %s2944, 8
          %s2946 = scalar_lea.vmem [#allocation5], %s2945
          %2947 = dma.done %s2943, 128
        $region138: #{tpu_custom_call.1} parent=129 // pred_fallthru
          _
      $region130: #{tpu_custom_call.1} parent=5 // pred_fallthru
        _
    $region6: #{tpu_custom_call.1} parent=1 // loop_footer
      %s33 = sadd.s32 1, %s29
    $region7: #{tpu_custom_call.1} parent=1 // loop_footer_branch
      %28 = sbr.rel target = $region3
    $region8: #{tpu_custom_call.1} parent=1 // loop_exit
      _
    %2948 = vsyncpa [#allocation4], 1
    %s2949 = scalar_lea.sflag [#allocation4], 1
    %2950 = vsyncpa %s2949, 1
    %2951 = vsyncpa [#allocation6], 1
    %s2952 = scalar_lea.sflag [#allocation6], 1
    %2953 = vsyncpa %s2952, 1

</llo_original>
